<compile_context>
chip_gen: v7x
topology: tpu7x:2x2x1
jax: 0.10.0
libtpu: 0.0.40
codegen_flags: <defaults>
</compile_context>

<pallas_src>
import math

import jax
import jax.numpy as jnp
import numpy as np
from jax import lax
from jax.experimental import pallas as pl
from jax.experimental.pallas import tpu as pltpu

# ----------------------------- model sizes ---------------------------------
B, S, H = 2, 64, 256         # batch, seq, hidden
M = B * S                    # batch folded into matmul rows -> 128
NUM_HEADS = 2
DH = H // NUM_HEADS          # 128: per-head slices are lane-aligned
FF = 512                     # intermediate size
NUM_LAYERS = 2
VOCAB = 32
TYPE_VOCAB = 2
EPS = 1e-12
INIT_RANGE = 0.02


# ----------------------------- small helpers -------------------------------
def _layernorm(x, g, b):
    mu = jnp.mean(x, axis=-1, keepdims=True)
    var = jnp.mean((x - mu) ** 2, axis=-1, keepdims=True)
    return (x - mu) * lax.rsqrt(var + EPS) * g + b


def _gelu(x):
    c = math.sqrt(2.0 / math.pi)
    return 0.5 * x * (1.0 + jnp.tanh(c * (x + 0.044715 * x ** 3)))


# =========================== fused Pallas kernel ===========================
def fused_encoder_head_kernel(
        x0_ref, bias_ref, wqkv_ref, bqkv_ref, wo_ref, bo_ref,
        w1_ref, b1_ref, w2_ref, b2_ref, ln_ref,
        wd_ref, bd_ref, wp_ref, bp_ref, labels_ref,
        logits_ref, loss_ref, x_sc):
    """One grid step = one BERT encoder layer; the last step also runs the
    BinaryClassificationHead + BCEWithLogitsLoss.  The (M, H) f32 activation
    stays resident in the x_sc VMEM scratch across the whole grid while bf16
    layer weights stream underneath."""
    l = pl.program_id(0)

    @pl.when(l == 0)
    def _():
        x_sc[...] = x0_ref[...]

    x = x_sc[...]                                        # (M, H) f32
    ln = ln_ref[0]                                       # (4, H): g1, b1, g2, b2
    bias = bias_ref[...]                                 # (M, M) f32, all heads

    # ---- fused QKV projection: bf16 operands, f32 accumulation ----
    qkv = jnp.dot(x.astype(jnp.bfloat16), wqkv_ref[0],
                  preferred_element_type=jnp.float32) + bqkv_ref[0]   # (M, 3H)
    # 1/sqrt(DH) is already folded into the Q weights/bias (weight-side).
    q = qkv[:, 0:H].astype(jnp.bfloat16)      # 128-aligned lane slices: free
    k = qkv[:, H:2 * H].astype(jnp.bfloat16)
    v = qkv[:, 2 * H:3 * H].astype(jnp.bfloat16)

    # ---- per-head attention: DH = 128 -> aligned slices, MXU-shaped dots ----
    ctx_heads = []
    for h in range(NUM_HEADS):                           # unrolled (2 heads)
        sl = slice(h * DH, (h + 1) * DH)
        s = jnp.einsum("qd,kd->qk", q[:, sl], k[:, sl],
                       preferred_element_type=jnp.float32)           # (M, M)
        s = s + bias                                     # same-batch + padding
        s = s - jnp.max(s, axis=-1, keepdims=True)
        e = jnp.exp(s)                                   # f32 softmax
        p = e * pl.reciprocal(jnp.sum(e, axis=-1, keepdims=True), approx=True)
        ctx_heads.append(jnp.dot(p.astype(jnp.bfloat16), v[:, sl],
                                 preferred_element_type=jnp.float32))  # (M,DH)
    ctx = jnp.concatenate(ctx_heads, axis=-1)            # (M, H), lane-aligned

    attn = jnp.dot(ctx.astype(jnp.bfloat16), wo_ref[0],
                   preferred_element_type=jnp.float32) + bo_ref[0]
    h1 = _layernorm(x + attn, ln[0:1], ln[1:2])

    ff = _gelu(jnp.dot(h1.astype(jnp.bfloat16), w1_ref[0],
                       preferred_element_type=jnp.float32) + b1_ref[0])
    y = _layernorm(
        h1 + jnp.dot(ff.astype(jnp.bfloat16), w2_ref[0],
                     preferred_element_type=jnp.float32) + b2_ref[0],
        ln[2:3], ln[3:4])
    x_sc[...] = y

    # ---- classifier head + BCEWithLogitsLoss: epilogue on the last layer ----
    @pl.when(l == pl.num_programs(0) - 1)
    def _():
        # CLS tokens are rows {0, S} of the (M, H) activation (sublane slices).
        cls = jnp.concatenate([y[b * S:b * S + 1, :] for b in range(B)], axis=0)
        # dropout: identity at inference
        hc = jnp.tanh(jnp.dot(cls, wd_ref[...],
                              preferred_element_type=jnp.float32) + bd_ref[...])
        # out_proj (H -> 1) as a VPU row-reduction instead of an N=1 MXU matmul
        z = jnp.sum(hc * wp_ref[...], axis=-1, keepdims=True) + bp_ref[...]
        logits_ref[...] = z                              # (B, 1)
        yl = labels_ref[...]
        # numerically stable BCE-with-logits, mean reduction
        per = (jnp.maximum(z, 0.0) - z * yl
               + jnp.log(1.0 + jnp.exp(-jnp.abs(z))))
        loss_ref[...] = jnp.mean(per, axis=(0, 1), keepdims=True)


# =========================== Pallas wrapper ================================
def forward(params, input_ids, attention_mask, token_type_ids, labels):
    # --- embeddings (glue, plain JAX: table gathers) ---
    pos_ids = jnp.arange(S)[None, :]
    emb = (params["word_emb"][input_ids]
           + params["pos_emb"][pos_ids]
           + params["type_emb"][token_type_ids])
    x0 = _layernorm(emb, params["emb_ln_g"], params["emb_ln_b"]).reshape(M, H)

    # Attention bias with batch folded into M: attend only within the same
    # batch element and only to non-padded keys.  Built once per forward; a
    # single (M, M) array shared by all heads and layers.  Masked columns
    # underflow to exactly 0 after the f32 softmax, so this matches per-batch
    # attention bit-for-bit.
    keep = attention_mask.astype(jnp.float32).reshape(M)             # (M,)
    batch_ids = jnp.repeat(jnp.arange(B), S)                         # (M,)
    same_batch = (batch_ids[:, None] == batch_ids[None, :]).astype(jnp.float32)
    attn_bias = (1.0 - same_batch * keep[None, :]) * -1e9            # (M, M)

    logits, loss = pl.pallas_call(
        fused_encoder_head_kernel,
        out_shape=(jax.ShapeDtypeStruct((B, 1), jnp.float32),
                   jax.ShapeDtypeStruct((1, 1), jnp.float32)),
        grid=(NUM_LAYERS,),
        in_specs=[
            pl.BlockSpec((M, H), lambda l: (0, 0)),                  # x0
            pl.BlockSpec((M, M), lambda l: (0, 0)),                  # attn bias
            pl.BlockSpec((1, H, 3 * H), lambda l: (l, 0, 0)),        # wqkv (bf16)
            pl.BlockSpec((1, 1, 3 * H), lambda l: (l, 0, 0)),        # bqkv
            pl.BlockSpec((1, H, H), lambda l: (l, 0, 0)),            # wo   (bf16)
            pl.BlockSpec((1, 1, H), lambda l: (l, 0, 0)),            # bo
            pl.BlockSpec((1, H, FF), lambda l: (l, 0, 0)),           # w1   (bf16)
            pl.BlockSpec((1, 1, FF), lambda l: (l, 0, 0)),           # b1
            pl.BlockSpec((1, FF, H), lambda l: (l, 0, 0)),           # w2   (bf16)
            pl.BlockSpec((1, 1, H), lambda l: (l, 0, 0)),            # b2
            pl.BlockSpec((1, 4, H), lambda l: (l, 0, 0)),            # ln params
            pl.BlockSpec((H, H), lambda l: (0, 0)),                  # cls dense W
            pl.BlockSpec((1, H), lambda l: (0, 0)),                  # cls dense b
            pl.BlockSpec((1, H), lambda l: (0, 0)),                  # out_proj W row
            pl.BlockSpec((1, 1), lambda l: (0, 0)),                  # out_proj b
            pl.BlockSpec((B, 1), lambda l: (0, 0)),                  # labels
        ],
        out_specs=(pl.BlockSpec((B, 1), lambda l: (0, 0)),
                   pl.BlockSpec((1, 1), lambda l: (0, 0))),
        scratch_shapes=[pltpu.VMEM((M, H), jnp.float32)],
        compiler_params=pltpu.CompilerParams(
            dimension_semantics=("arbitrary",)),   # layer axis is sequential
    )(x0, attn_bias,
      params["wqkv"], params["bqkv"], params["wo"], params["bo"],
      params["w1"], params["b1"], params["w2"], params["b2"], params["ln"],
      params["cls_dense_w"], params["cls_dense_b"],
      params["cls_out_w"], params["cls_out_b"], labels)
    return loss[0, 0], logits


# =========================== parameter init ================================
def init_params(key):
    keys = iter(jax.random.split(key, 32))
    nrm = lambda shape: (INIT_RANGE *
                         jax.random.normal(next(keys), shape, jnp.float32))
    scale = 1.0 / math.sqrt(DH)

    wqkv = nrm((NUM_LAYERS, H, 3 * H))        # [Wq | Wk | Wv]
    bqkv = nrm((NUM_LAYERS, 1, 3 * H))
    # Fold the attention 1/sqrt(DH) scale weight-side into the Q projection.
    wqkv = wqkv.at[:, :, :H].multiply(scale)
    bqkv = bqkv.at[:, :, :H].multiply(scale)

    ln = jnp.concatenate([
        1.0 + nrm((NUM_LAYERS, 1, H)), nrm((NUM_LAYERS, 1, H)),  # attn LN g, b
        1.0 + nrm((NUM_LAYERS, 1, H)), nrm((NUM_LAYERS, 1, H)),  # ffn  LN g, b
    ], axis=1)                                                   # (L, 4, H)

    return {
        "word_emb": nrm((VOCAB, H)),
        "pos_emb": nrm((S, H)),
        "type_emb": nrm((TYPE_VOCAB, H)),
        "emb_ln_g": jnp.ones((1, H), jnp.float32),
        "emb_ln_b": jnp.zeros((1, H), jnp.float32),
        # per-layer weights stacked on a leading layer axis, streamed as bf16
        "wqkv": wqkv.astype(jnp.bfloat16),
        "bqkv": bqkv,
        "wo": nrm((NUM_LAYERS, H, H)).astype(jnp.bfloat16),
        "bo": nrm((NUM_LAYERS, 1, H)),
        "w1": nrm((NUM_LAYERS, H, FF)).astype(jnp.bfloat16),
        "b1": nrm((NUM_LAYERS, 1, FF)),
        "w2": nrm((NUM_LAYERS, FF, H)).astype(jnp.bfloat16),
        "b2": nrm((NUM_LAYERS, 1, H)),
        "ln": ln,
        # BinaryClassificationHead.init_weights: dense ~ N(0, initializer_range)
        "cls_dense_w": nrm((H, H)),
        "cls_dense_b": jnp.zeros((1, H), jnp.float32),
        "cls_out_w": nrm((1, H)),                # stored as a row (VPU reduce)
        "cls_out_b": jnp.zeros((1, 1), jnp.float32),
    }


# ---------------------- pure-JAX reference (for check) ---------------------
def forward_ref(params, input_ids, attention_mask, token_type_ids, labels):
    bf16, f32 = jnp.bfloat16, jnp.float32
    pos_ids = jnp.arange(S)[None, :]
    emb = (params["word_emb"][input_ids]
           + params["pos_emb"][pos_ids]
           + params["type_emb"][token_type_ids])
    x = _layernorm(emb, params["emb_ln_g"], params["emb_ln_b"])      # (B,S,H)
    mask = attention_mask.astype(f32)                                # (B, S)
    bias = (1.0 - mask)[:, None, None, :] * -1e9                     # (B,1,1,S)

    for li in range(NUM_LAYERS):
        qkv = jnp.dot(x.astype(bf16), params["wqkv"][li],
                      preferred_element_type=f32) + params["bqkv"][li]
        q, k, v = qkv[..., :H], qkv[..., H:2 * H], qkv[..., 2 * H:]
        qh = q.reshape(B, S, NUM_HEADS, DH).transpose(0, 2, 1, 3).astype(bf16)
        kh = k.reshape(B, S, NUM_HEADS, DH).transpose(0, 2, 1, 3).astype(bf16)
        vh = v.reshape(B, S, NUM_HEADS, DH).transpose(0, 2, 1, 3).astype(bf16)
        # 1/sqrt(DH) already folded into the Q weights at init.
        s = jnp.einsum("bhqd,bhkd->bhqk", qh, kh,
                       preferred_element_type=f32) + bias
        p = jax.nn.softmax(s, axis=-1)
        ctx = jnp.einsum("bhqk,bhkd->bhqd", p.astype(bf16), vh,
                         preferred_element_type=f32)
        ctx = ctx.transpose(0, 2, 1, 3).reshape(B, S, H)
        attn = jnp.dot(ctx.astype(bf16), params["wo"][li],
                       preferred_element_type=f32) + params["bo"][li]
        ln = params["ln"][li]
        h1 = _layernorm(x + attn, ln[0:1], ln[1:2])
        ff = _gelu(jnp.dot(h1.astype(bf16), params["w1"][li],
                           preferred_element_type=f32) + params["b1"][li])
        x = _layernorm(h1 + jnp.dot(ff.astype(bf16), params["w2"][li],
                                    preferred_element_type=f32)
                       + params["b2"][li],
                       ln[2:3], ln[3:4])

    cls = x[:, 0, :]
    h = jnp.tanh(cls @ params["cls_dense_w"] + params["cls_dense_b"])
    z = (jnp.sum(h * params["cls_out_w"], axis=-1, keepdims=True)
         + params["cls_out_b"])
    per = jnp.maximum(z, 0.0) - z * labels + jnp.log(1.0 + jnp.exp(-jnp.abs(z)))
    return jnp.mean(per), z


# ================================= main ====================================
if __name__ == "__main__":
    key = jax.random.PRNGKey(0)
    k_params, k_ids, k_lbl = jax.random.split(key, 3)

    params = init_params(k_params)

    input_ids = jax.random.randint(k_ids, (B, S), 0, VOCAB, dtype=jnp.int32)
    token_type_ids = jnp.zeros((B, S), jnp.int32)
    attention_mask = jnp.ones((B, S), jnp.int32).at[1, S - 8:].set(0)  # pad 8
    labels = jax.random.bernoulli(k_lbl, 0.5, (B, 1)).astype(jnp.float32)

    loss, logits = jax.jit(forward)(params, input_ids, attention_mask,
                                    token_type_ids, labels)
    jax.block_until_ready((loss, logits))

    loss_ref, logits_ref = forward_ref(params, input_ids, attention_mask,
                                       token_type_ids, labels)
    np.testing.assert_allclose(np.asarray(logits), np.asarray(logits_ref),
                               rtol=1e-2, atol=5e-3)
    np.testing.assert_allclose(float(loss), float(loss_ref),
                               rtol=1e-2, atol=5e-3)

    print("KERNEL_OK")
</pallas_src>

<mosaic_0001>
module attributes {stable_mosaic.version = 11 : i64} {
  func.func @fused_encoder_head_kernel(%arg0: i32, %arg1: memref<128x256xf32, #tpu.memory_space<vmem>>, %arg2: memref<128x128xf32, #tpu.memory_space<vmem>>, %arg3: memref<1x256x768xbf16, #tpu.memory_space<vmem>>, %arg4: memref<1x1x768xf32, #tpu.memory_space<vmem>>, %arg5: memref<1x256x256xbf16, #tpu.memory_space<vmem>>, %arg6: memref<1x1x256xf32, #tpu.memory_space<vmem>>, %arg7: memref<1x256x512xbf16, #tpu.memory_space<vmem>>, %arg8: memref<1x1x512xf32, #tpu.memory_space<vmem>>, %arg9: memref<1x512x256xbf16, #tpu.memory_space<vmem>>, %arg10: memref<1x1x256xf32, #tpu.memory_space<vmem>>, %arg11: memref<1x4x256xf32, #tpu.memory_space<vmem>>, %arg12: memref<256x256xf32, #tpu.memory_space<vmem>>, %arg13: memref<1x256xf32, #tpu.memory_space<vmem>>, %arg14: memref<1x256xf32, #tpu.memory_space<vmem>>, %arg15: memref<1x1xf32, #tpu.memory_space<vmem>>, %arg16: memref<2x1xf32, #tpu.memory_space<vmem>>, %arg17: memref<2x1xf32, #tpu.memory_space<vmem>>, %arg18: memref<1x1xf32, #tpu.memory_space<vmem>>, %arg19: memref<128x256xf32, #tpu.memory_space<vmem>>) attributes {dimension_semantics = [#tpu.dimension_semantics<arbitrary>], iteration_bounds = array<i64: 2>, scalar_prefetch = 0 : i64, scratch_operands = 1 : i64, tpu.core_type = #tpu.core_type<tc>, window_params = [{pipeline_mode = #tpu.pipeline_mode<synchronous>, transform_indices = @transform_0, window_bounds = array<i64: 128, 256>}, {pipeline_mode = #tpu.pipeline_mode<synchronous>, transform_indices = @transform_1, window_bounds = array<i64: 128, 128>}, {transform_indices = @transform_2, window_bounds = array<i64: 1, 256, 768>}, {transform_indices = @transform_3, window_bounds = array<i64: 1, 1, 768>}, {transform_indices = @transform_4, window_bounds = array<i64: 1, 256, 256>}, {transform_indices = @transform_5, window_bounds = array<i64: 1, 1, 256>}, {transform_indices = @transform_6, window_bounds = array<i64: 1, 256, 512>}, {transform_indices = @transform_7, window_bounds = array<i64: 1, 1, 512>}, {transform_indices = @transform_8, window_bounds = array<i64: 1, 512, 256>}, {transform_indices = @transform_9, window_bounds = array<i64: 1, 1, 256>}, {transform_indices = @transform_10, window_bounds = array<i64: 1, 4, 256>}, {pipeline_mode = #tpu.pipeline_mode<synchronous>, transform_indices = @transform_11, window_bounds = array<i64: 256, 256>}, {pipeline_mode = #tpu.pipeline_mode<synchronous>, transform_indices = @transform_12, window_bounds = array<i64: 1, 256>}, {pipeline_mode = #tpu.pipeline_mode<synchronous>, transform_indices = @transform_13, window_bounds = array<i64: 1, 256>}, {pipeline_mode = #tpu.pipeline_mode<synchronous>, transform_indices = @transform_14, window_bounds = array<i64: 1, 1>}, {pipeline_mode = #tpu.pipeline_mode<synchronous>, transform_indices = @transform_15, window_bounds = array<i64: 2, 1>}, {pipeline_mode = #tpu.pipeline_mode<synchronous>, transform_indices = @transform_16, window_bounds = array<i64: 2, 1>}, {pipeline_mode = #tpu.pipeline_mode<synchronous>, transform_indices = @transform_17, window_bounds = array<i64: 1, 1>}]} {
    %c0_i32 = arith.constant 0 : i32
    %0 = arith.cmpi eq, %arg0, %c0_i32 : i32
    %1 = arith.extui %0 : i1 to i32
    %c0_i32_0 = arith.constant 0 : i32
    %2 = arith.cmpi ne, %1, %c0_i32_0 : i32
    scf.if %2 {
      %c0_59 = arith.constant 0 : index
      %c0_60 = arith.constant 0 : index
      %147 = vector.load %arg1[%c0_59, %c0_60] : memref<128x256xf32, #tpu.memory_space<vmem>>, vector<128x256xf32>
      %c0_61 = arith.constant 0 : index
      %c0_62 = arith.constant 0 : index
      %148 = vector.load %arg19[%c0_61, %c0_62] : memref<128x256xf32, #tpu.memory_space<vmem>>, vector<128x256xf32>
      tpu.vector_store %arg19[%c0_61, %c0_62], %147 {strides = array<i32>} : memref<128x256xf32, #tpu.memory_space<vmem>>, vector<128x256xf32>,
    } else {
    }
    %c0 = arith.constant 0 : index
    %c0_1 = arith.constant 0 : index
    %3 = vector.load %arg19[%c0, %c0_1] : memref<128x256xf32, #tpu.memory_space<vmem>>, vector<128x256xf32>
    %c0_2 = arith.constant 0 : index
    %c0_3 = arith.constant 0 : index
    %c0_4 = arith.constant 0 : index
    %4 = vector.load %arg11[%c0_2, %c0_3, %c0_4] : memref<1x4x256xf32, #tpu.memory_space<vmem>>, vector<1x4x256xf32>
    %5 = vector.shape_cast %4 : vector<1x4x256xf32> to vector<4x256xf32>
    %c0_5 = arith.constant 0 : index
    %c0_6 = arith.constant 0 : index
    %6 = vector.load %arg2[%c0_5, %c0_6] : memref<128x128xf32, #tpu.memory_space<vmem>>, vector<128x128xf32>
    %7 = arith.truncf %3 : vector<128x256xf32> to vector<128x256xbf16>
    %c0_7 = arith.constant 0 : index
    %c0_8 = arith.constant 0 : index
    %c0_9 = arith.constant 0 : index
    %8 = vector.load %arg3[%c0_7, %c0_8, %c0_9] : memref<1x256x768xbf16, #tpu.memory_space<vmem>>, vector<1x256x768xbf16>
    %9 = vector.shape_cast %8 : vector<1x256x768xbf16> to vector<256x768xbf16>
    %cst = arith.constant dense<0.000000e+00> : vector<128x768xf32>
    %10 = tpu.matmul %7, %9, %cst {dimension_numbers = #tpu.dot_dimension_numbers<[1], [0], [0], [1], [0, 0, 1, 1], [], []>} : vector<128x256xbf16>, vector<256x768xbf16>, vector<128x768xf32> -> vector<128x768xf32>
    %c0_10 = arith.constant 0 : index
    %c0_11 = arith.constant 0 : index
    %c0_12 = arith.constant 0 : index
    %11 = vector.load %arg4[%c0_10, %c0_11, %c0_12] : memref<1x1x768xf32, #tpu.memory_space<vmem>>, vector<1x1x768xf32>
    %12 = vector.shape_cast %11 : vector<1x1x768xf32> to vector<1x768xf32>
    %13 = vector.broadcast %12 : vector<1x768xf32> to vector<128x768xf32>
    %14 = arith.addf %10, %13 : vector<128x768xf32>
    %15 = vector.extract_strided_slice %14 {offsets = [0, 0], sizes = [128, 256], strides = [1, 1]} : vector<128x768xf32> to vector<128x256xf32>
    %16 = arith.truncf %15 : vector<128x256xf32> to vector<128x256xbf16>
    %17 = vector.extract_strided_slice %14 {offsets = [0, 256], sizes = [128, 256], strides = [1, 1]} : vector<128x768xf32> to vector<128x256xf32>
    %18 = arith.truncf %17 : vector<128x256xf32> to vector<128x256xbf16>
    %19 = vector.extract_strided_slice %14 {offsets = [0, 512], sizes = [128, 256], strides = [1, 1]} : vector<128x768xf32> to vector<128x256xf32>
    %20 = arith.truncf %19 : vector<128x256xf32> to vector<128x256xbf16>
    %21 = vector.extract_strided_slice %16 {offsets = [0, 0], sizes = [128, 128], strides = [1, 1]} : vector<128x256xbf16> to vector<128x128xbf16>
    %22 = vector.extract_strided_slice %18 {offsets = [0, 0], sizes = [128, 128], strides = [1, 1]} : vector<128x256xbf16> to vector<128x128xbf16>
    "tpu.trace_start"() <{level = 10 : i32, message = "qd,kd->qk"}> : () -> ()
    %cst_13 = arith.constant dense<0.000000e+00> : vector<128x128xf32>
    %23 = tpu.matmul %21, %22, %cst_13 {dimension_numbers = #tpu.dot_dimension_numbers<[1], [1], [0], [0], [0, 0, 1, 0], [], []>} : vector<128x128xbf16>, vector<128x128xbf16>, vector<128x128xf32> -> vector<128x128xf32>
    "tpu.trace_stop"() : () -> ()
    %24 = arith.addf %23, %6 : vector<128x128xf32>
    %cst_14 = arith.constant dense<0xFF800000> : vector<128xf32>
    %25 = vector.multi_reduction <maximumf>, %24, %cst_14 [1] : vector<128x128xf32> to vector<128xf32>
    %26 = vector.shape_cast %25 : vector<128xf32> to vector<128x1xf32>
    %27 = vector.broadcast %26 : vector<128x1xf32> to vector<128x128xf32>
    %28 = arith.subf %24, %27 : vector<128x128xf32>
    %29 = math.exp %28 : vector<128x128xf32>
    %cst_15 = arith.constant dense<0.000000e+00> : vector<128xf32>
    %30 = vector.multi_reduction <add>, %29, %cst_15 [1] : vector<128x128xf32> to vector<128xf32>
    %31 = vector.shape_cast %30 : vector<128xf32> to vector<128x1xf32>
    %32 = tpu.reciprocal %31 {approx = true} : vector<128x1xf32> -> vector<128x1xf32>
    %33 = vector.broadcast %32 : vector<128x1xf32> to vector<128x128xf32>
    %34 = arith.mulf %29, %33 : vector<128x128xf32>
    %35 = arith.truncf %34 : vector<128x128xf32> to vector<128x128xbf16>
    %36 = vector.extract_strided_slice %20 {offsets = [0, 0], sizes = [128, 128], strides = [1, 1]} : vector<128x256xbf16> to vector<128x128xbf16>
    %cst_16 = arith.constant dense<0.000000e+00> : vector<128x128xf32>
    %37 = tpu.matmul %35, %36, %cst_16 {dimension_numbers = #tpu.dot_dimension_numbers<[1], [0], [0], [1], [0, 0, 1, 1], [], []>} : vector<128x128xbf16>, vector<128x128xbf16>, vector<128x128xf32> -> vector<128x128xf32>
    %38 = vector.extract_strided_slice %16 {offsets = [0, 128], sizes = [128, 128], strides = [1, 1]} : vector<128x256xbf16> to vector<128x128xbf16>
    %39 = vector.extract_strided_slice %18 {offsets = [0, 128], sizes = [128, 128], strides = [1, 1]} : vector<128x256xbf16> to vector<128x128xbf16>
    "tpu.trace_start"() <{level = 10 : i32, message = "qd,kd->qk"}> : () -> ()
    %cst_17 = arith.constant dense<0.000000e+00> : vector<128x128xf32>
    %40 = tpu.matmul %38, %39, %cst_17 {dimension_numbers = #tpu.dot_dimension_numbers<[1], [1], [0], [0], [0, 0, 1, 0], [], []>} : vector<128x128xbf16>, vector<128x128xbf16>, vector<128x128xf32> -> vector<128x128xf32>
    "tpu.trace_stop"() : () -> ()
    %41 = arith.addf %40, %6 : vector<128x128xf32>
    %cst_18 = arith.constant dense<0xFF800000> : vector<128xf32>
    %42 = vector.multi_reduction <maximumf>, %41, %cst_18 [1] : vector<128x128xf32> to vector<128xf32>
    %43 = vector.shape_cast %42 : vector<128xf32> to vector<128x1xf32>
    %44 = vector.broadcast %43 : vector<128x1xf32> to vector<128x128xf32>
    %45 = arith.subf %41, %44 : vector<128x128xf32>
    %46 = math.exp %45 : vector<128x128xf32>
    %cst_19 = arith.constant dense<0.000000e+00> : vector<128xf32>
    %47 = vector.multi_reduction <add>, %46, %cst_19 [1] : vector<128x128xf32> to vector<128xf32>
    %48 = vector.shape_cast %47 : vector<128xf32> to vector<128x1xf32>
    %49 = tpu.reciprocal %48 {approx = true} : vector<128x1xf32> -> vector<128x1xf32>
    %50 = vector.broadcast %49 : vector<128x1xf32> to vector<128x128xf32>
    %51 = arith.mulf %46, %50 : vector<128x128xf32>
    %52 = arith.truncf %51 : vector<128x128xf32> to vector<128x128xbf16>
    %53 = vector.extract_strided_slice %20 {offsets = [0, 128], sizes = [128, 128], strides = [1, 1]} : vector<128x256xbf16> to vector<128x128xbf16>
    %cst_20 = arith.constant dense<0.000000e+00> : vector<128x128xf32>
    %54 = tpu.matmul %52, %53, %cst_20 {dimension_numbers = #tpu.dot_dimension_numbers<[1], [0], [0], [1], [0, 0, 1, 1], [], []>} : vector<128x128xbf16>, vector<128x128xbf16>, vector<128x128xf32> -> vector<128x128xf32>
    %55 = tpu.concatenate %37, %54 in 1 : vector<128x128xf32>, vector<128x128xf32> -> vector<128x256xf32>
    %56 = arith.truncf %55 : vector<128x256xf32> to vector<128x256xbf16>
    %c0_21 = arith.constant 0 : index
    %c0_22 = arith.constant 0 : index
    %c0_23 = arith.constant 0 : index
    %57 = vector.load %arg5[%c0_21, %c0_22, %c0_23] : memref<1x256x256xbf16, #tpu.memory_space<vmem>>, vector<1x256x256xbf16>
    %58 = vector.shape_cast %57 : vector<1x256x256xbf16> to vector<256x256xbf16>
    %cst_24 = arith.constant dense<0.000000e+00> : vector<128x256xf32>
    %59 = tpu.matmul %56, %58, %cst_24 {dimension_numbers = #tpu.dot_dimension_numbers<[1], [0], [0], [1], [0, 0, 1, 1], [], []>} : vector<128x256xbf16>, vector<256x256xbf16>, vector<128x256xf32> -> vector<128x256xf32>
    %c0_25 = arith.constant 0 : index
    %c0_26 = arith.constant 0 : index
    %c0_27 = arith.constant 0 : index
    %60 = vector.load %arg6[%c0_25, %c0_26, %c0_27] : memref<1x1x256xf32, #tpu.memory_space<vmem>>, vector<1x1x256xf32>
    %61 = vector.shape_cast %60 : vector<1x1x256xf32> to vector<1x256xf32>
    %62 = vector.broadcast %61 : vector<1x256xf32> to vector<128x256xf32>
    %63 = arith.addf %59, %62 : vector<128x256xf32>
    %64 = arith.addf %3, %63 : vector<128x256xf32>
    %65 = vector.extract_strided_slice %5 {offsets = [0, 0], sizes = [1, 256], strides = [1, 1]} : vector<4x256xf32> to vector<1x256xf32>
    %66 = vector.extract_strided_slice %5 {offsets = [1, 0], sizes = [1, 256], strides = [1, 1]} : vector<4x256xf32> to vector<1x256xf32>
    %cst_28 = arith.constant dense<0.000000e+00> : vector<128xf32>
    %67 = vector.multi_reduction <add>, %64, %cst_28 [1] : vector<128x256xf32> to vector<128xf32>
    %68 = vector.shape_cast %67 : vector<128xf32> to vector<128x1xf32>
    %cst_29 = arith.constant 2.560000e+02 : f32
    %69 = vector.broadcast %cst_29 : f32 to vector<128x1xf32>
    %70 = arith.divf %68, %69 : vector<128x1xf32>
    %71 = vector.broadcast %70 : vector<128x1xf32> to vector<128x256xf32>
    %72 = arith.subf %64, %71 : vector<128x256xf32>
    %73 = arith.mulf %72, %72 : vector<128x256xf32>
    %cst_30 = arith.constant dense<0.000000e+00> : vector<128xf32>
    %74 = vector.multi_reduction <add>, %73, %cst_30 [1] : vector<128x256xf32> to vector<128xf32>
    %75 = vector.shape_cast %74 : vector<128xf32> to vector<128x1xf32>
    %cst_31 = arith.constant 2.560000e+02 : f32
    %76 = vector.broadcast %cst_31 : f32 to vector<128x1xf32>
    %77 = arith.divf %75, %76 : vector<128x1xf32>
    %78 = vector.broadcast %70 : vector<128x1xf32> to vector<128x256xf32>
    %79 = arith.subf %64, %78 : vector<128x256xf32>
    %cst_32 = arith.constant 9.99999996E-13 : f32
    %80 = vector.broadcast %cst_32 : f32 to vector<128x1xf32>
    %81 = arith.addf %77, %80 : vector<128x1xf32>
    %82 = math.rsqrt %81 : vector<128x1xf32>
    %83 = vector.broadcast %82 : vector<128x1xf32> to vector<128x256xf32>
    %84 = arith.mulf %79, %83 : vector<128x256xf32>
    %85 = vector.broadcast %65 : vector<1x256xf32> to vector<128x256xf32>
    %86 = arith.mulf %84, %85 : vector<128x256xf32>
    %87 = vector.broadcast %66 : vector<1x256xf32> to vector<128x256xf32>
    %88 = arith.addf %86, %87 : vector<128x256xf32>
    %89 = arith.truncf %88 : vector<128x256xf32> to vector<128x256xbf16>
    %c0_33 = arith.constant 0 : index
    %c0_34 = arith.constant 0 : index
    %c0_35 = arith.constant 0 : index
    %90 = vector.load %arg7[%c0_33, %c0_34, %c0_35] : memref<1x256x512xbf16, #tpu.memory_space<vmem>>, vector<1x256x512xbf16>
    %91 = vector.shape_cast %90 : vector<1x256x512xbf16> to vector<256x512xbf16>
    %cst_36 = arith.constant dense<0.000000e+00> : vector<128x512xf32>
    %92 = tpu.matmul %89, %91, %cst_36 {dimension_numbers = #tpu.dot_dimension_numbers<[1], [0], [0], [1], [0, 0, 1, 1], [], []>} : vector<128x256xbf16>, vector<256x512xbf16>, vector<128x512xf32> -> vector<128x512xf32>
    %c0_37 = arith.constant 0 : index
    %c0_38 = arith.constant 0 : index
    %c0_39 = arith.constant 0 : index
    %93 = vector.load %arg8[%c0_37, %c0_38, %c0_39] : memref<1x1x512xf32, #tpu.memory_space<vmem>>, vector<1x1x512xf32>
    %94 = vector.shape_cast %93 : vector<1x1x512xf32> to vector<1x512xf32>
    %95 = vector.broadcast %94 : vector<1x512xf32> to vector<128x512xf32>
    %96 = arith.addf %92, %95 : vector<128x512xf32>
    %cst_40 = arith.constant 5.000000e-01 : f32
    %97 = vector.broadcast %cst_40 : f32 to vector<128x512xf32>
    %98 = arith.mulf %97, %96 : vector<128x512xf32>
    %99 = arith.mulf %96, %96 : vector<128x512xf32>
    %100 = arith.mulf %96, %99 : vector<128x512xf32>
    %cst_41 = arith.constant 4.471500e-02 : f32
    %101 = vector.broadcast %cst_41 : f32 to vector<128x512xf32>
    %102 = arith.mulf %101, %100 : vector<128x512xf32>
    %103 = arith.addf %96, %102 : vector<128x512xf32>
    %cst_42 = arith.constant 0.797884583 : f32
    %104 = vector.broadcast %cst_42 : f32 to vector<128x512xf32>
    %105 = arith.mulf %104, %103 : vector<128x512xf32>
    %106 = math.tanh %105 : vector<128x512xf32>
    %cst_43 = arith.constant 1.000000e+00 : f32
    %107 = vector.broadcast %cst_43 : f32 to vector<128x512xf32>
    %108 = arith.addf %107, %106 : vector<128x512xf32>
    %109 = arith.mulf %98, %108 : vector<128x512xf32>
    %110 = arith.truncf %109 : vector<128x512xf32> to vector<128x512xbf16>
    %c0_44 = arith.constant 0 : index
    %c0_45 = arith.constant 0 : index
    %c0_46 = arith.constant 0 : index
    %111 = vector.load %arg9[%c0_44, %c0_45, %c0_46] : memref<1x512x256xbf16, #tpu.memory_space<vmem>>, vector<1x512x256xbf16>
    %112 = vector.shape_cast %111 : vector<1x512x256xbf16> to vector<512x256xbf16>
    %cst_47 = arith.constant dense<0.000000e+00> : vector<128x256xf32>
    %113 = tpu.matmul %110, %112, %cst_47 {dimension_numbers = #tpu.dot_dimension_numbers<[1], [0], [0], [1], [0, 0, 1, 1], [], []>} : vector<128x512xbf16>, vector<512x256xbf16>, vector<128x256xf32> -> vector<128x256xf32>
    %114 = arith.addf %88, %113 : vector<128x256xf32>
    %c0_48 = arith.constant 0 : index
    %c0_49 = arith.constant 0 : index
    %c0_50 = arith.constant 0 : index
    %115 = vector.load %arg10[%c0_48, %c0_49, %c0_50] : memref<1x1x256xf32, #tpu.memory_space<vmem>>, vector<1x1x256xf32>
    %116 = vector.shape_cast %115 : vector<1x1x256xf32> to vector<1x256xf32>
    %117 = vector.broadcast %116 : vector<1x256xf32> to vector<128x256xf32>
    %118 = arith.addf %114, %117 : vector<128x256xf32>
    %119 = vector.extract_strided_slice %5 {offsets = [2, 0], sizes = [1, 256], strides = [1, 1]} : vector<4x256xf32> to vector<1x256xf32>
    %120 = vector.extract_strided_slice %5 {offsets = [3, 0], sizes = [1, 256], strides = [1, 1]} : vector<4x256xf32> to vector<1x256xf32>
    %cst_51 = arith.constant dense<0.000000e+00> : vector<128xf32>
    %121 = vector.multi_reduction <add>, %118, %cst_51 [1] : vector<128x256xf32> to vector<128xf32>
    %122 = vector.shape_cast %121 : vector<128xf32> to vector<128x1xf32>
    %cst_52 = arith.constant 2.560000e+02 : f32
    %123 = vector.broadcast %cst_52 : f32 to vector<128x1xf32>
    %124 = arith.divf %122, %123 : vector<128x1xf32>
    %125 = vector.broadcast %124 : vector<128x1xf32> to vector<128x256xf32>
    %126 = arith.subf %118, %125 : vector<128x256xf32>
    %127 = arith.mulf %126, %126 : vector<128x256xf32>
    %cst_53 = arith.constant dense<0.000000e+00> : vector<128xf32>
    %128 = vector.multi_reduction <add>, %127, %cst_53 [1] : vector<128x256xf32> to vector<128xf32>
    %129 = vector.shape_cast %128 : vector<128xf32> to vector<128x1xf32>
    %cst_54 = arith.constant 2.560000e+02 : f32
    %130 = vector.broadcast %cst_54 : f32 to vector<128x1xf32>
    %131 = arith.divf %129, %130 : vector<128x1xf32>
    %132 = vector.broadcast %124 : vector<128x1xf32> to vector<128x256xf32>
    %133 = arith.subf %118, %132 : vector<128x256xf32>
    %cst_55 = arith.constant 9.99999996E-13 : f32
    %134 = vector.broadcast %cst_55 : f32 to vector<128x1xf32>
    %135 = arith.addf %131, %134 : vector<128x1xf32>
    %136 = math.rsqrt %135 : vector<128x1xf32>
    %137 = vector.broadcast %136 : vector<128x1xf32> to vector<128x256xf32>
    %138 = arith.mulf %133, %137 : vector<128x256xf32>
    %139 = vector.broadcast %119 : vector<1x256xf32> to vector<128x256xf32>
    %140 = arith.mulf %138, %139 : vector<128x256xf32>
    %141 = vector.broadcast %120 : vector<1x256xf32> to vector<128x256xf32>
    %142 = arith.addf %140, %141 : vector<128x256xf32>
    %c0_56 = arith.constant 0 : index
    %c0_57 = arith.constant 0 : index
    %143 = vector.load %arg19[%c0_56, %c0_57] : memref<128x256xf32, #tpu.memory_space<vmem>>, vector<128x256xf32>
    tpu.vector_store %arg19[%c0_56, %c0_57], %142 {strides = array<i32>} : memref<128x256xf32, #tpu.memory_space<vmem>>, vector<128x256xf32>,
    %c1_i32 = arith.constant 1 : i32
    %144 = arith.cmpi eq, %arg0, %c1_i32 : i32
    %145 = arith.extui %144 : i1 to i32
    %c0_i32_58 = arith.constant 0 : i32
    %146 = arith.cmpi ne, %145, %c0_i32_58 : i32
    scf.if %146 {
      %147 = vector.extract_strided_slice %142 {offsets = [0, 0], sizes = [1, 256], strides = [1, 1]} : vector<128x256xf32> to vector<1x256xf32>
      %148 = vector.extract_strided_slice %142 {offsets = [64, 0], sizes = [1, 256], strides = [1, 1]} : vector<128x256xf32> to vector<1x256xf32>
      %149 = tpu.concatenate %147, %148 in 0 : vector<1x256xf32>, vector<1x256xf32> -> vector<2x256xf32>
      %c0_59 = arith.constant 0 : index
      %c0_60 = arith.constant 0 : index
      %150 = vector.load %arg12[%c0_59, %c0_60] : memref<256x256xf32, #tpu.memory_space<vmem>>, vector<256x256xf32>
      %cst_61 = arith.constant dense<0.000000e+00> : vector<2x256xf32>
      %151 = tpu.matmul %149, %150, %cst_61 {dimension_numbers = #tpu.dot_dimension_numbers<[1], [0], [0], [1], [0, 0, 1, 1], [], []>} : vector<2x256xf32>, vector<256x256xf32>, vector<2x256xf32> -> vector<2x256xf32>
      %c0_62 = arith.constant 0 : index
      %c0_63 = arith.constant 0 : index
      %152 = vector.load %arg13[%c0_62, %c0_63] : memref<1x256xf32, #tpu.memory_space<vmem>>, vector<1x256xf32>
      %153 = vector.broadcast %152 : vector<1x256xf32> to vector<2x256xf32>
      %154 = arith.addf %151, %153 : vector<2x256xf32>
      %155 = math.tanh %154 : vector<2x256xf32>
      %c0_64 = arith.constant 0 : index
      %c0_65 = arith.constant 0 : index
      %156 = vector.load %arg14[%c0_64, %c0_65] : memref<1x256xf32, #tpu.memory_space<vmem>>, vector<1x256xf32>
      %157 = vector.broadcast %156 : vector<1x256xf32> to vector<2x256xf32>
      %158 = arith.mulf %155, %157 : vector<2x256xf32>
      %cst_66 = arith.constant dense<0.000000e+00> : vector<2xf32>
      %159 = vector.multi_reduction <add>, %158, %cst_66 [1] : vector<2x256xf32> to vector<2xf32>
      %160 = vector.shape_cast %159 : vector<2xf32> to vector<2x1xf32>
      %c0_67 = arith.constant 0 : index
      %c0_68 = arith.constant 0 : index
      %161 = vector.load %arg15[%c0_67, %c0_68] : memref<1x1xf32, #tpu.memory_space<vmem>>, vector<1x1xf32>
      %162 = vector.broadcast %161 : vector<1x1xf32> to vector<2x1xf32>
      %163 = arith.addf %160, %162 : vector<2x1xf32>
      %c0_69 = arith.constant 0 : index
      %c0_70 = arith.constant 0 : index
      %164 = vector.load %arg17[%c0_69, %c0_70] : memref<2x1xf32, #tpu.memory_space<vmem>>, vector<2x1xf32>
      tpu.vector_store %arg17[%c0_69, %c0_70], %163 {strides = array<i32>} : memref<2x1xf32, #tpu.memory_space<vmem>>, vector<2x1xf32>,
      %c0_71 = arith.constant 0 : index
      %c0_72 = arith.constant 0 : index
      %165 = vector.load %arg16[%c0_71, %c0_72] : memref<2x1xf32, #tpu.memory_space<vmem>>, vector<2x1xf32>
      %cst_73 = arith.constant 0.000000e+00 : f32
      %166 = vector.broadcast %cst_73 : f32 to vector<2x1xf32>
      %167 = arith.maximumf %163, %166 : vector<2x1xf32>
      %168 = arith.mulf %163, %165 : vector<2x1xf32>
      %169 = arith.subf %167, %168 : vector<2x1xf32>
      %170 = math.absf %163 : vector<2x1xf32>
      %cst_74 = arith.constant 0.000000e+00 : f32
      %171 = vector.broadcast %cst_74 : f32 to vector<2x1xf32>
      %172 = arith.subf %171, %170 : vector<2x1xf32>
      %173 = math.exp %172 : vector<2x1xf32>
      %cst_75 = arith.constant 1.000000e+00 : f32
      %174 = vector.broadcast %cst_75 : f32 to vector<2x1xf32>
      %175 = arith.addf %174, %173 : vector<2x1xf32>
      %176 = math.log %175 : vector<2x1xf32>
      %177 = arith.addf %169, %176 : vector<2x1xf32>
      %178 = vector.shape_cast %177 : vector<2x1xf32> to vector<1x2x1xf32>
      %cst_76 = arith.constant dense<0.000000e+00> : vector<1xf32>
      %179 = vector.multi_reduction <add>, %178, %cst_76 [1, 2] : vector<1x2x1xf32> to vector<1xf32>
      %180 = vector.shape_cast %179 : vector<1xf32> to vector<1x1x1xf32>
      %181 = vector.extract %180[0, 0, 0] : f32 from vector<1x1x1xf32>
      %182 = vector.broadcast %181 : f32 to vector<1x1xf32>
      %cst_77 = arith.constant 2.000000e+00 : f32
      %183 = vector.broadcast %cst_77 : f32 to vector<1x1xf32>
      %184 = arith.divf %182, %183 : vector<1x1xf32>
      %c0_78 = arith.constant 0 : index
      %c0_79 = arith.constant 0 : index
      %185 = vector.load %arg18[%c0_78, %c0_79] : memref<1x1xf32, #tpu.memory_space<vmem>>, vector<1x1xf32>
      tpu.vector_store %arg18[%c0_78, %c0_79], %184 {strides = array<i32>} : memref<1x1xf32, #tpu.memory_space<vmem>>, vector<1x1xf32>,
    } else {
    }
    return
  }
  func.func @transform_0(%arg0: i32) -> (i32, i32) {
    %c0_i32 = arith.constant 0 : i32
    %c0_i32_0 = arith.constant 0 : i32
    %c0_i32_1 = arith.constant 0 : i32
    return %c0_i32, %c0_i32_0 : i32, i32
  }
  func.func @transform_1(%arg0: i32) -> (i32, i32) {
    %c0_i32 = arith.constant 0 : i32
    %c0_i32_0 = arith.constant 0 : i32
    %c0_i32_1 = arith.constant 0 : i32
    return %c0_i32, %c0_i32_0 : i32, i32
  }
  func.func @transform_2(%arg0: i32) -> (i32, i32, i32) {
    %c0_i32 = arith.constant 0 : i32
    %c0_i32_0 = arith.constant 0 : i32
    %c0_i32_1 = arith.constant 0 : i32
    return %arg0, %c0_i32, %c0_i32_0 : i32, i32, i32
  }
  func.func @transform_3(%arg0: i32) -> (i32, i32, i32) {
    %c0_i32 = arith.constant 0 : i32
    %c0_i32_0 = arith.constant 0 : i32
    %c0_i32_1 = arith.constant 0 : i32
    return %arg0, %c0_i32, %c0_i32_0 : i32, i32, i32
  }
  func.func @transform_4(%arg0: i32) -> (i32, i32, i32) {
    %c0_i32 = arith.constant 0 : i32
    %c0_i32_0 = arith.constant 0 : i32
    %c0_i32_1 = arith.constant 0 : i32
    return %arg0, %c0_i32, %c0_i32_0 : i32, i32, i32
  }
  func.func @transform_5(%arg0: i32) -> (i32, i32, i32) {
    %c0_i32 = arith.constant 0 : i32
    %c0_i32_0 = arith.constant 0 : i32
    %c0_i32_1 = arith.constant 0 : i32
    return %arg0, %c0_i32, %c0_i32_0 : i32, i32, i32
  }
  func.func @transform_6(%arg0: i32) -> (i32, i32, i32) {
    %c0_i32 = arith.constant 0 : i32
    %c0_i32_0 = arith.constant 0 : i32
    %c0_i32_1 = arith.constant 0 : i32
    return %arg0, %c0_i32, %c0_i32_0 : i32, i32, i32
  }
  func.func @transform_7(%arg0: i32) -> (i32, i32, i32) {
    %c0_i32 = arith.constant 0 : i32
    %c0_i32_0 = arith.constant 0 : i32
    %c0_i32_1 = arith.constant 0 : i32
    return %arg0, %c0_i32, %c0_i32_0 : i32, i32, i32
  }
  func.func @transform_8(%arg0: i32) -> (i32, i32, i32) {
    %c0_i32 = arith.constant 0 : i32
    %c0_i32_0 = arith.constant 0 : i32
    %c0_i32_1 = arith.constant 0 : i32
    return %arg0, %c0_i32, %c0_i32_0 : i32, i32, i32
  }
  func.func @transform_9(%arg0: i32) -> (i32, i32, i32) {
    %c0_i32 = arith.constant 0 : i32
    %c0_i32_0 = arith.constant 0 : i32
    %c0_i32_1 = arith.constant 0 : i32
    return %arg0, %c0_i32, %c0_i32_0 : i32, i32, i32
  }
  func.func @transform_10(%arg0: i32) -> (i32, i32, i32) {
    %c0_i32 = arith.constant 0 : i32
    %c0_i32_0 = arith.constant 0 : i32
    %c0_i32_1 = arith.constant 0 : i32
    return %arg0, %c0_i32, %c0_i32_0 : i32, i32, i32
  }
  func.func @transform_11(%arg0: i32) -> (i32, i32) {
    %c0_i32 = arith.constant 0 : i32
    %c0_i32_0 = arith.constant 0 : i32
    %c0_i32_1 = arith.constant 0 : i32
    return %c0_i32, %c0_i32_0 : i32, i32
  }
  func.func @transform_12(%arg0: i32) -> (i32, i32) {
    %c0_i32 = arith.constant 0 : i32
    %c0_i32_0 = arith.constant 0 : i32
    %c0_i32_1 = arith.constant 0 : i32
    return %c0_i32, %c0_i32_0 : i32, i32
  }
  func.func @transform_13(%arg0: i32) -> (i32, i32) {
    %c0_i32 = arith.constant 0 : i32
    %c0_i32_0 = arith.constant 0 : i32
    %c0_i32_1 = arith.constant 0 : i32
    return %c0_i32, %c0_i32_0 : i32, i32
  }
  func.func @transform_14(%arg0: i32) -> (i32, i32) {
    %c0_i32 = arith.constant 0 : i32
    %c0_i32_0 = arith.constant 0 : i32
    %c0_i32_1 = arith.constant 0 : i32
    return %c0_i32, %c0_i32_0 : i32, i32
  }
  func.func @transform_15(%arg0: i32) -> (i32, i32) {
    %c0_i32 = arith.constant 0 : i32
    %c0_i32_0 = arith.constant 0 : i32
    %c0_i32_1 = arith.constant 0 : i32
    return %c0_i32, %c0_i32_0 : i32, i32
  }
  func.func @transform_16(%arg0: i32) -> (i32, i32) {
    %c0_i32 = arith.constant 0 : i32
    %c0_i32_0 = arith.constant 0 : i32
    %c0_i32_1 = arith.constant 0 : i32
    return %c0_i32, %c0_i32_0 : i32, i32
  }
  func.func @transform_17(%arg0: i32) -> (i32, i32) {
    %c0_i32 = arith.constant 0 : i32
    %c0_i32_0 = arith.constant 0 : i32
    %c0_i32_1 = arith.constant 0 : i32
    return %c0_i32, %c0_i32_0 : i32, i32
  }
}

</mosaic_0001>

<llo_original>
// kernel: forward.1
$region0: #{forward.1}
  #allocation0 [shape = 'u32[]', space=smem, size = 0x4, offset = 0x4, fixed_abs, tag = 'smem constant byte address 0x4 - core index']
  #allocation1 [shape = 'u32[144,128]{1,0:T(1,128)}', space=vmem, size = 0x12000, scoped, tag = 'internal scratch']
  #allocation2 [shape = 'f32[128,256]{1,0:T(8,128)}', space=vmem, size = 0x20000, scoped, tag = 'scratch operand']
  #allocation3 [shape = 'f32[1,1]{1,0:T(1,128)S(1)}', space=vmem, size = 0x200, scoped, tag = 'scoped memory for forward.1']
  %s0 = inlined_call_operand.vmem [shape: f32[128,256], index: 0, kind: input, shape index: {}]
  %s1 = inlined_call_operand.vmem [shape: f32[128,128], index: 1, kind: input, shape index: {}]
  %s2 = inlined_call_operand.vmem [shape: bf16[2,256,768], index: 2, kind: input, shape index: {}]
  %s3 = inlined_call_operand.vmem [shape: f32[2,1,768], index: 3, kind: input, shape index: {}]
  %s4 = inlined_call_operand.vmem [shape: bf16[2,256,256], index: 4, kind: input, shape index: {}]
  %s5 = inlined_call_operand.vmem [shape: f32[2,1,256], index: 5, kind: input, shape index: {}]
  %s6 = inlined_call_operand.vmem [shape: bf16[2,256,512], index: 6, kind: input, shape index: {}]
  %s7 = inlined_call_operand.vmem [shape: f32[2,1,512], index: 7, kind: input, shape index: {}]
  %s8 = inlined_call_operand.vmem [shape: bf16[2,512,256], index: 8, kind: input, shape index: {}]
  %s9 = inlined_call_operand.vmem [shape: f32[2,1,256], index: 9, kind: input, shape index: {}]
  %s10 = inlined_call_operand.vmem [shape: f32[2,4,256], index: 10, kind: input, shape index: {}]
  %s11 = inlined_call_operand.vmem [shape: f32[256,256], index: 11, kind: input, shape index: {}]
  %s12 = inlined_call_operand.vmem [shape: f32[1,256], index: 12, kind: input, shape index: {}]
  %s13 = inlined_call_operand.vmem [shape: f32[1,256], index: 13, kind: input, shape index: {}]
  %s14 = inlined_call_operand.<no memory space> [shape: f32[1,1], index: 14, kind: input, shape index: {}]
  %s15 = inlined_call_operand.vmem [shape: f32[2,1], index: 15, kind: input, shape index: {}]
  %s16 = inlined_call_operand.vmem [shape: f32[2,1], index: 16, kind: output, shape index: {0}]
  %s17 = inlined_call_operand.hbm [shape: f32[1,1], index: 17, kind: output, shape index: {1}]
  %18 = xla_tuple %s16, %s17
  %s19 = sld [smem:[#allocation0]]
  $region113: #{forward.1} parent=0
    _
  %s21 = ssub.s32 1, %s19
  %s22 = scalar_select 0, %s21, %s19
  %v23 = vstv %s14
  %24 = vst [vmem:[#allocation3] sm:$0x1] %v23
  $region1: #{forward.1} parent=0
    #allocation4 [shape = 'u8[512]{0}', space=vmem, size = 0x400, scoped, tag = 'output window, operand 1, single buffered']
    #allocation5 [shape = 's32[2]{0}', space=sflag, size = 0x8, scoped, tag = 'scoped memory for forward.1']
    %25 = vsyncpa [#allocation5], 0
    loop: start=0, step=1, limit=4
    $region2: #{forward.1} parent=1 // loop_pre_header
      _
    $region3: #{forward.1} parent=1 // loop_header
      %s27 = sphi 0, %s31
      %p28 = scmp.ge.s32.totalorder %s27, 4
      %s35 = sphi 0, %s35
      %s37 = sphi 0, %s35
      %s38 = sphi 0, %s37
      %s52 = sphi 0, %s38
      %s56 = sphi 0, %s56
      %s58 = sphi 0, %s56
      %s59 = sphi 0, %s58
      %s73 = sphi 0, %s59
      %s79 = sphi 0, %s81
      %s82 = sphi 0, %s79
      %s83 = sphi 0, %s82
      %s99 = sphi 0, %s83
      %s105 = sphi 0, %s107
      %s108 = sphi 0, %s105
      %s109 = sphi 0, %s108
      %s125 = sphi 0, %s109
      %s131 = sphi 0, %s133
      %s134 = sphi 0, %s131
      %s135 = sphi 0, %s134
      %s151 = sphi 0, %s135
      %s157 = sphi 0, %s159
      %s160 = sphi 0, %s157
      %s161 = sphi 0, %s160
      %s177 = sphi 0, %s161
      %s183 = sphi 0, %s185
      %s186 = sphi 0, %s183
      %s187 = sphi 0, %s186
      %s203 = sphi 0, %s187
      %s209 = sphi 0, %s211
      %s212 = sphi 0, %s209
      %s213 = sphi 0, %s212
      %s229 = sphi 0, %s213
      %s235 = sphi 0, %s237
      %s238 = sphi 0, %s235
      %s239 = sphi 0, %s238
      %s255 = sphi 0, %s239
      %s261 = sphi 0, %s263
      %s264 = sphi 0, %s261
      %s265 = sphi 0, %s264
      %s281 = sphi 0, %s265
      %s287 = sphi 0, %s289
      %s290 = sphi 0, %s287
      %s291 = sphi 0, %s290
      %s307 = sphi 0, %s291
      %s311 = sphi 0, %s311
      %s313 = sphi 0, %s311
      %s314 = sphi 0, %s313
      %s328 = sphi 0, %s314
      %s332 = sphi 0, %s332
      %s334 = sphi 0, %s332
      %s335 = sphi 0, %s334
      %s349 = sphi 0, %s335
      %s353 = sphi 0, %s353
      %s355 = sphi 0, %s353
      %s356 = sphi 0, %s355
      %s370 = sphi 0, %s356
      %s374 = sphi 0, %s374
      %s376 = sphi 0, %s374
      %s377 = sphi 0, %s376
      %s391 = sphi 0, %s377
      %s395 = sphi 0, %s395
      %s397 = sphi 0, %s395
      %s398 = sphi 0, %s397
      %s412 = sphi 0, %s398
      %s416 = sphi 0, %s416
      %s418 = sphi 0, %s416
      %s419 = sphi 0, %s418
      %s433 = sphi 0, %s419
      %s437 = sphi 0, %s437
      %s439 = sphi 0, %s437
      %s440 = sphi 0, %s439
      %s454 = sphi 0, %s440
    $region4: #{forward.1} parent=1 // loop_header_branch
      %30 = sbr.rel (%p28) target = $region8
    $region5: #{forward.1} parent=1 // loop_body
      %s32 = ssub.s32 %s27, 1
      %s33 = ssub.s32 %s27, 2
      %s34 = sadd.s32 %s27, 1
      %s36 = sadd.s32 %s35, 1
      %p39 = scmp.eq.s32.totalorder %s27, 1
      %p40 = scmp.ne.s32.totalorder %s35, %s37
      %p41 = scmp.eq.s32.totalorder %s27, 0
      %p42 = por %p40, %p41
      %p43 = scmp.ne.s32.totalorder %s35, %s37
      %p44 = scmp.eq.s32.totalorder %s32, 1
      %p45 = por %p43, %p44
      %p46 = scmp.ne.s32.totalorder %s37, %s38
      %p47 = scmp.eq.s32.totalorder %s32, 0
      %p48 = por %p46, %p47
      %p49 = scmp.ne.s32.totalorder %s37, %s38
      %p50 = scmp.eq.s32.totalorder %s33, 1
      %p51 = por %p49, %p50
      %p53 = scmp.ne.s32.totalorder %s38, %s52
      %p54 = scmp.eq.s32.totalorder %s33, 0
      %p55 = por %p53, %p54
      %s57 = sadd.s32 %s56, 1
      %p60 = scmp.eq.s32.totalorder %s27, 1
      %p61 = scmp.ne.s32.totalorder %s56, %s58
      %p62 = scmp.eq.s32.totalorder %s27, 0
      %p63 = por %p61, %p62
      %p64 = scmp.ne.s32.totalorder %s56, %s58
      %p65 = scmp.eq.s32.totalorder %s32, 1
      %p66 = por %p64, %p65
      %p67 = scmp.ne.s32.totalorder %s58, %s59
      %p68 = scmp.eq.s32.totalorder %s32, 0
      %p69 = por %p67, %p68
      %p70 = scmp.ne.s32.totalorder %s58, %s59
      %p71 = scmp.eq.s32.totalorder %s33, 1
      %p72 = por %p70, %p71
      %p74 = scmp.ne.s32.totalorder %s59, %s73
      %p75 = scmp.eq.s32.totalorder %s33, 0
      %p76 = por %p74, %p75
      %s77 = ssub.s32 %s27, %s34
      %p78 = scmp.eq.s32.totalorder %s77, 0
      %s80 = sadd.s32 %s79, 1
      %s81 = scalar_select %p78, %s79, %s80
      %p84 = pneg %p78
      %p85 = scmp.eq.s32.totalorder %s27, 1
      %p86 = por %p84, %p85
      %p87 = scmp.ne.s32.totalorder %s79, %s82
      %p88 = scmp.eq.s32.totalorder %s27, 0
      %p89 = por %p87, %p88
      %p90 = scmp.ne.s32.totalorder %s79, %s82
      %p91 = scmp.eq.s32.totalorder %s32, 1
      %p92 = por %p90, %p91
      %p93 = scmp.ne.s32.totalorder %s82, %s83
      %p94 = scmp.eq.s32.totalorder %s32, 0
      %p95 = por %p93, %p94
      %p96 = scmp.ne.s32.totalorder %s82, %s83
      %p97 = scmp.eq.s32.totalorder %s33, 1
      %p98 = por %p96, %p97
      %p100 = scmp.ne.s32.totalorder %s83, %s99
      %p101 = scmp.eq.s32.totalorder %s33, 0
      %p102 = por %p100, %p101
      %s103 = ssub.s32 %s27, %s34
      %p104 = scmp.eq.s32.totalorder %s103, 0
      %s106 = sadd.s32 %s105, 1
      %s107 = scalar_select %p104, %s105, %s106
      %p110 = pneg %p104
      %p111 = scmp.eq.s32.totalorder %s27, 1
      %p112 = por %p110, %p111
      %p113 = scmp.ne.s32.totalorder %s105, %s108
      %p114 = scmp.eq.s32.totalorder %s27, 0
      %p115 = por %p113, %p114
      %p116 = scmp.ne.s32.totalorder %s105, %s108
      %p117 = scmp.eq.s32.totalorder %s32, 1
      %p118 = por %p116, %p117
      %p119 = scmp.ne.s32.totalorder %s108, %s109
      %p120 = scmp.eq.s32.totalorder %s32, 0
      %p121 = por %p119, %p120
      %p122 = scmp.ne.s32.totalorder %s108, %s109
      %p123 = scmp.eq.s32.totalorder %s33, 1
      %p124 = por %p122, %p123
      %p126 = scmp.ne.s32.totalorder %s109, %s125
      %p127 = scmp.eq.s32.totalorder %s33, 0
      %p128 = por %p126, %p127
      %s129 = ssub.s32 %s27, %s34
      %p130 = scmp.eq.s32.totalorder %s129, 0
      %s132 = sadd.s32 %s131, 1
      %s133 = scalar_select %p130, %s131, %s132
      %p136 = pneg %p130
      %p137 = scmp.eq.s32.totalorder %s27, 1
      %p138 = por %p136, %p137
      %p139 = scmp.ne.s32.totalorder %s131, %s134
      %p140 = scmp.eq.s32.totalorder %s27, 0
      %p141 = por %p139, %p140
      %p142 = scmp.ne.s32.totalorder %s131, %s134
      %p143 = scmp.eq.s32.totalorder %s32, 1
      %p144 = por %p142, %p143
      %p145 = scmp.ne.s32.totalorder %s134, %s135
      %p146 = scmp.eq.s32.totalorder %s32, 0
      %p147 = por %p145, %p146
      %p148 = scmp.ne.s32.totalorder %s134, %s135
      %p149 = scmp.eq.s32.totalorder %s33, 1
      %p150 = por %p148, %p149
      %p152 = scmp.ne.s32.totalorder %s135, %s151
      %p153 = scmp.eq.s32.totalorder %s33, 0
      %p154 = por %p152, %p153
      %s155 = ssub.s32 %s27, %s34
      %p156 = scmp.eq.s32.totalorder %s155, 0
      %s158 = sadd.s32 %s157, 1
      %s159 = scalar_select %p156, %s157, %s158
      %p162 = pneg %p156
      %p163 = scmp.eq.s32.totalorder %s27, 1
      %p164 = por %p162, %p163
      %p165 = scmp.ne.s32.totalorder %s157, %s160
      %p166 = scmp.eq.s32.totalorder %s27, 0
      %p167 = por %p165, %p166
      %p168 = scmp.ne.s32.totalorder %s157, %s160
      %p169 = scmp.eq.s32.totalorder %s32, 1
      %p170 = por %p168, %p169
      %p171 = scmp.ne.s32.totalorder %s160, %s161
      %p172 = scmp.eq.s32.totalorder %s32, 0
      %p173 = por %p171, %p172
      %p174 = scmp.ne.s32.totalorder %s160, %s161
      %p175 = scmp.eq.s32.totalorder %s33, 1
      %p176 = por %p174, %p175
      %p178 = scmp.ne.s32.totalorder %s161, %s177
      %p179 = scmp.eq.s32.totalorder %s33, 0
      %p180 = por %p178, %p179
      %s181 = ssub.s32 %s27, %s34
      %p182 = scmp.eq.s32.totalorder %s181, 0
      %s184 = sadd.s32 %s183, 1
      %s185 = scalar_select %p182, %s183, %s184
      %p188 = pneg %p182
      %p189 = scmp.eq.s32.totalorder %s27, 1
      %p190 = por %p188, %p189
      %p191 = scmp.ne.s32.totalorder %s183, %s186
      %p192 = scmp.eq.s32.totalorder %s27, 0
      %p193 = por %p191, %p192
      %p194 = scmp.ne.s32.totalorder %s183, %s186
      %p195 = scmp.eq.s32.totalorder %s32, 1
      %p196 = por %p194, %p195
      %p197 = scmp.ne.s32.totalorder %s186, %s187
      %p198 = scmp.eq.s32.totalorder %s32, 0
      %p199 = por %p197, %p198
      %p200 = scmp.ne.s32.totalorder %s186, %s187
      %p201 = scmp.eq.s32.totalorder %s33, 1
      %p202 = por %p200, %p201
      %p204 = scmp.ne.s32.totalorder %s187, %s203
      %p205 = scmp.eq.s32.totalorder %s33, 0
      %p206 = por %p204, %p205
      %s207 = ssub.s32 %s27, %s34
      %p208 = scmp.eq.s32.totalorder %s207, 0
      %s210 = sadd.s32 %s209, 1
      %s211 = scalar_select %p208, %s209, %s210
      %p214 = pneg %p208
      %p215 = scmp.eq.s32.totalorder %s27, 1
      %p216 = por %p214, %p215
      %p217 = scmp.ne.s32.totalorder %s209, %s212
      %p218 = scmp.eq.s32.totalorder %s27, 0
      %p219 = por %p217, %p218
      %p220 = scmp.ne.s32.totalorder %s209, %s212
      %p221 = scmp.eq.s32.totalorder %s32, 1
      %p222 = por %p220, %p221
      %p223 = scmp.ne.s32.totalorder %s212, %s213
      %p224 = scmp.eq.s32.totalorder %s32, 0
      %p225 = por %p223, %p224
      %p226 = scmp.ne.s32.totalorder %s212, %s213
      %p227 = scmp.eq.s32.totalorder %s33, 1
      %p228 = por %p226, %p227
      %p230 = scmp.ne.s32.totalorder %s213, %s229
      %p231 = scmp.eq.s32.totalorder %s33, 0
      %p232 = por %p230, %p231
      %s233 = ssub.s32 %s27, %s34
      %p234 = scmp.eq.s32.totalorder %s233, 0
      %s236 = sadd.s32 %s235, 1
      %s237 = scalar_select %p234, %s235, %s236
      %p240 = pneg %p234
      %p241 = scmp.eq.s32.totalorder %s27, 1
      %p242 = por %p240, %p241
      %p243 = scmp.ne.s32.totalorder %s235, %s238
      %p244 = scmp.eq.s32.totalorder %s27, 0
      %p245 = por %p243, %p244
      %p246 = scmp.ne.s32.totalorder %s235, %s238
      %p247 = scmp.eq.s32.totalorder %s32, 1
      %p248 = por %p246, %p247
      %p249 = scmp.ne.s32.totalorder %s238, %s239
      %p250 = scmp.eq.s32.totalorder %s32, 0
      %p251 = por %p249, %p250
      %p252 = scmp.ne.s32.totalorder %s238, %s239
      %p253 = scmp.eq.s32.totalorder %s33, 1
      %p254 = por %p252, %p253
      %p256 = scmp.ne.s32.totalorder %s239, %s255
      %p257 = scmp.eq.s32.totalorder %s33, 0
      %p258 = por %p256, %p257
      %s259 = ssub.s32 %s27, %s34
      %p260 = scmp.eq.s32.totalorder %s259, 0
      %s262 = sadd.s32 %s261, 1
      %s263 = scalar_select %p260, %s261, %s262
      %p266 = pneg %p260
      %p267 = scmp.eq.s32.totalorder %s27, 1
      %p268 = por %p266, %p267
      %p269 = scmp.ne.s32.totalorder %s261, %s264
      %p270 = scmp.eq.s32.totalorder %s27, 0
      %p271 = por %p269, %p270
      %p272 = scmp.ne.s32.totalorder %s261, %s264
      %p273 = scmp.eq.s32.totalorder %s32, 1
      %p274 = por %p272, %p273
      %p275 = scmp.ne.s32.totalorder %s264, %s265
      %p276 = scmp.eq.s32.totalorder %s32, 0
      %p277 = por %p275, %p276
      %p278 = scmp.ne.s32.totalorder %s264, %s265
      %p279 = scmp.eq.s32.totalorder %s33, 1
      %p280 = por %p278, %p279
      %p282 = scmp.ne.s32.totalorder %s265, %s281
      %p283 = scmp.eq.s32.totalorder %s33, 0
      %p284 = por %p282, %p283
      %s285 = ssub.s32 %s27, %s34
      %p286 = scmp.eq.s32.totalorder %s285, 0
      %s288 = sadd.s32 %s287, 1
      %s289 = scalar_select %p286, %s287, %s288
      %p292 = pneg %p286
      %p293 = scmp.eq.s32.totalorder %s27, 1
      %p294 = por %p292, %p293
      %p295 = scmp.ne.s32.totalorder %s287, %s290
      %p296 = scmp.eq.s32.totalorder %s27, 0
      %p297 = por %p295, %p296
      %p298 = scmp.ne.s32.totalorder %s287, %s290
      %p299 = scmp.eq.s32.totalorder %s32, 1
      %p300 = por %p298, %p299
      %p301 = scmp.ne.s32.totalorder %s290, %s291
      %p302 = scmp.eq.s32.totalorder %s32, 0
      %p303 = por %p301, %p302
      %p304 = scmp.ne.s32.totalorder %s290, %s291
      %p305 = scmp.eq.s32.totalorder %s33, 1
      %p306 = por %p304, %p305
      %p308 = scmp.ne.s32.totalorder %s291, %s307
      %p309 = scmp.eq.s32.totalorder %s33, 0
      %p310 = por %p308, %p309
      %s312 = sadd.s32 %s311, 1
      %p315 = scmp.eq.s32.totalorder %s27, 1
      %p316 = scmp.ne.s32.totalorder %s311, %s313
      %p317 = scmp.eq.s32.totalorder %s27, 0
      %p318 = por %p316, %p317
      %p319 = scmp.ne.s32.totalorder %s311, %s313
      %p320 = scmp.eq.s32.totalorder %s32, 1
      %p321 = por %p319, %p320
      %p322 = scmp.ne.s32.totalorder %s313, %s314
      %p323 = scmp.eq.s32.totalorder %s32, 0
      %p324 = por %p322, %p323
      %p325 = scmp.ne.s32.totalorder %s313, %s314
      %p326 = scmp.eq.s32.totalorder %s33, 1
      %p327 = por %p325, %p326
      %p329 = scmp.ne.s32.totalorder %s314, %s328
      %p330 = scmp.eq.s32.totalorder %s33, 0
      %p331 = por %p329, %p330
      %s333 = sadd.s32 %s332, 1
      %p336 = scmp.eq.s32.totalorder %s27, 1
      %p337 = scmp.ne.s32.totalorder %s332, %s334
      %p338 = scmp.eq.s32.totalorder %s27, 0
      %p339 = por %p337, %p338
      %p340 = scmp.ne.s32.totalorder %s332, %s334
      %p341 = scmp.eq.s32.totalorder %s32, 1
      %p342 = por %p340, %p341
      %p343 = scmp.ne.s32.totalorder %s334, %s335
      %p344 = scmp.eq.s32.totalorder %s32, 0
      %p345 = por %p343, %p344
      %p346 = scmp.ne.s32.totalorder %s334, %s335
      %p347 = scmp.eq.s32.totalorder %s33, 1
      %p348 = por %p346, %p347
      %p350 = scmp.ne.s32.totalorder %s335, %s349
      %p351 = scmp.eq.s32.totalorder %s33, 0
      %p352 = por %p350, %p351
      %s354 = sadd.s32 %s353, 1
      %p357 = scmp.eq.s32.totalorder %s27, 1
      %p358 = scmp.ne.s32.totalorder %s353, %s355
      %p359 = scmp.eq.s32.totalorder %s27, 0
      %p360 = por %p358, %p359
      %p361 = scmp.ne.s32.totalorder %s353, %s355
      %p362 = scmp.eq.s32.totalorder %s32, 1
      %p363 = por %p361, %p362
      %p364 = scmp.ne.s32.totalorder %s355, %s356
      %p365 = scmp.eq.s32.totalorder %s32, 0
      %p366 = por %p364, %p365
      %p367 = scmp.ne.s32.totalorder %s355, %s356
      %p368 = scmp.eq.s32.totalorder %s33, 1
      %p369 = por %p367, %p368
      %p371 = scmp.ne.s32.totalorder %s356, %s370
      %p372 = scmp.eq.s32.totalorder %s33, 0
      %p373 = por %p371, %p372
      %s375 = sadd.s32 %s374, 1
      %p378 = scmp.eq.s32.totalorder %s27, 1
      %p379 = scmp.ne.s32.totalorder %s374, %s376
      %p380 = scmp.eq.s32.totalorder %s27, 0
      %p381 = por %p379, %p380
      %p382 = scmp.ne.s32.totalorder %s374, %s376
      %p383 = scmp.eq.s32.totalorder %s32, 1
      %p384 = por %p382, %p383
      %p385 = scmp.ne.s32.totalorder %s376, %s377
      %p386 = scmp.eq.s32.totalorder %s32, 0
      %p387 = por %p385, %p386
      %p388 = scmp.ne.s32.totalorder %s376, %s377
      %p389 = scmp.eq.s32.totalorder %s33, 1
      %p390 = por %p388, %p389
      %p392 = scmp.ne.s32.totalorder %s377, %s391
      %p393 = scmp.eq.s32.totalorder %s33, 0
      %p394 = por %p392, %p393
      %s396 = sadd.s32 %s395, 1
      %p399 = scmp.eq.s32.totalorder %s27, 1
      %p400 = scmp.ne.s32.totalorder %s395, %s397
      %p401 = scmp.eq.s32.totalorder %s27, 0
      %p402 = por %p400, %p401
      %p403 = scmp.ne.s32.totalorder %s395, %s397
      %p404 = scmp.eq.s32.totalorder %s32, 1
      %p405 = por %p403, %p404
      %p406 = scmp.ne.s32.totalorder %s397, %s398
      %p407 = scmp.eq.s32.totalorder %s32, 0
      %p408 = por %p406, %p407
      %p409 = scmp.ne.s32.totalorder %s397, %s398
      %p410 = scmp.eq.s32.totalorder %s33, 1
      %p411 = por %p409, %p410
      %p413 = scmp.ne.s32.totalorder %s398, %s412
      %p414 = scmp.eq.s32.totalorder %s33, 0
      %p415 = por %p413, %p414
      %s417 = sadd.s32 %s416, 1
      %p420 = scmp.eq.s32.totalorder %s27, 1
      %p421 = scmp.ne.s32.totalorder %s416, %s418
      %p422 = scmp.eq.s32.totalorder %s27, 0
      %p423 = por %p421, %p422
      %p424 = scmp.ne.s32.totalorder %s416, %s418
      %p425 = scmp.eq.s32.totalorder %s32, 1
      %p426 = por %p424, %p425
      %p427 = scmp.ne.s32.totalorder %s418, %s419
      %p428 = scmp.eq.s32.totalorder %s32, 0
      %p429 = por %p427, %p428
      %p430 = scmp.ne.s32.totalorder %s418, %s419
      %p431 = scmp.eq.s32.totalorder %s33, 1
      %p432 = por %p430, %p431
      %p434 = scmp.ne.s32.totalorder %s419, %s433
      %p435 = scmp.eq.s32.totalorder %s33, 0
      %p436 = por %p434, %p435
      %s438 = sadd.s32 %s437, 1
      %p441 = scmp.eq.s32.totalorder %s27, 1
      %p442 = scmp.ne.s32.totalorder %s437, %s439
      %p443 = scmp.eq.s32.totalorder %s27, 0
      %p444 = por %p442, %p443
      %p445 = scmp.ne.s32.totalorder %s437, %s439
      %p446 = scmp.eq.s32.totalorder %s32, 1
      %p447 = por %p445, %p446
      %p448 = scmp.ne.s32.totalorder %s439, %s440
      %p449 = scmp.eq.s32.totalorder %s32, 0
      %p450 = por %p448, %p449
      %p451 = scmp.ne.s32.totalorder %s439, %s440
      %p452 = scmp.eq.s32.totalorder %s33, 1
      %p453 = por %p451, %p452
      %p455 = scmp.ne.s32.totalorder %s440, %s454
      %p456 = scmp.eq.s32.totalorder %s33, 0
      %p457 = por %p455, %p456
      %p458 = scmp.le.s32.totalorder 1, %s27
      %p459 = scmp.lt.s32.totalorder %s27, 3
      %p460 = pnand %p458, %p459
      %p461 = pneg %p460
      // Predicated region
      $region9: #{forward.1} parent=5 // pred_check
        _
      $region10: #{forward.1} parent=5 // pred_check_branch
        %463 = sbr.rel (%p460) target = $region12
      $region11: #{forward.1} parent=5 // pred_region
        %s464 = ssub.s32 %s27, 1
        // Predicated region
        $region13: #{forward.1} parent=11 // pred_check
          %p465 = pneg %p48
        $region14: #{forward.1} parent=11 // pred_check_branch
          %467 = sbr.rel (%p465) target = $region16
        $region15: #{forward.1} parent=11 // pred_region
          _
        $region16: #{forward.1} parent=11 // pred_fallthru
          _
        // Predicated region
        $region17: #{forward.1} parent=11 // pred_check
          %p468 = pneg %p69
        $region18: #{forward.1} parent=11 // pred_check_branch
          %470 = sbr.rel (%p468) target = $region20
        $region19: #{forward.1} parent=11 // pred_region
          _
        $region20: #{forward.1} parent=11 // pred_fallthru
          _
        // Predicated region
        $region21: #{forward.1} parent=11 // pred_check
          %p471 = pneg %p324
        $region22: #{forward.1} parent=11 // pred_check_branch
          %473 = sbr.rel (%p471) target = $region24
        $region23: #{forward.1} parent=11 // pred_region
          _
        $region24: #{forward.1} parent=11 // pred_fallthru
          _
        // Predicated region
        $region25: #{forward.1} parent=11 // pred_check
          %p474 = pneg %p345
        $region26: #{forward.1} parent=11 // pred_check_branch
          %476 = sbr.rel (%p474) target = $region28
        $region27: #{forward.1} parent=11 // pred_region
          _
        $region28: #{forward.1} parent=11 // pred_fallthru
          _
        // Predicated region
        $region29: #{forward.1} parent=11 // pred_check
          %p477 = pneg %p366
        $region30: #{forward.1} parent=11 // pred_check_branch
          %479 = sbr.rel (%p477) target = $region32
        $region31: #{forward.1} parent=11 // pred_region
          _
        $region32: #{forward.1} parent=11 // pred_fallthru
          _
        // Predicated region
        $region33: #{forward.1} parent=11 // pred_check
          %p480 = pneg %p387
        $region34: #{forward.1} parent=11 // pred_check_branch
          %482 = sbr.rel (%p480) target = $region36
        $region35: #{forward.1} parent=11 // pred_region
          _
        $region36: #{forward.1} parent=11 // pred_fallthru
          _
        // Predicated region
        $region37: #{forward.1} parent=11 // pred_check
          %p483 = pneg %p408
        $region38: #{forward.1} parent=11 // pred_check_branch
          %485 = sbr.rel (%p483) target = $region40
        $region39: #{forward.1} parent=11 // pred_region
          _
        $region40: #{forward.1} parent=11 // pred_fallthru
          _
      $region12: #{forward.1} parent=5 // pred_fallthru
        _
      %p486 = scmp.lt.s32.totalorder %s27, 2
      // Predicated region
      $region41: #{forward.1} parent=5 // pred_check
        %p487 = pneg %p486
      $region42: #{forward.1} parent=5 // pred_check_branch
        %489 = sbr.rel (%p487) target = $region44
      $region43: #{forward.1} parent=5 // pred_region
        // Predicated region
        $region45: #{forward.1} parent=43 // pred_check
          %p490 = pneg %p89
        $region46: #{forward.1} parent=43 // pred_check_branch
          %492 = sbr.rel (%p490) target = $region48
        $region47: #{forward.1} parent=43 // pred_region
          %p493 = scmp.lt.s32.totalorder %s27, 1
          %s494 = scalar_select %p493, %s27, 1
          %s495 = smul.addr %s494, 192
          %s496 = smul.addr %s495, 4
          %s497 = scalar_lea.vmem %s2, %s496
        $region48: #{forward.1} parent=43 // pred_fallthru
          _
        // Predicated region
        $region49: #{forward.1} parent=43 // pred_check
          %p498 = pneg %p115
        $region50: #{forward.1} parent=43 // pred_check_branch
          %500 = sbr.rel (%p498) target = $region52
        $region51: #{forward.1} parent=43 // pred_region
          %p501 = scmp.lt.s32.totalorder %s27, 1
          %s502 = scalar_select %p501, %s27, 1
          %s503 = smul.addr %s502, 6
          %s504 = scalar_lea.vmem %s3, %s503
        $region52: #{forward.1} parent=43 // pred_fallthru
          _
        // Predicated region
        $region53: #{forward.1} parent=43 // pred_check
          %p505 = pneg %p141
        $region54: #{forward.1} parent=43 // pred_check_branch
          %507 = sbr.rel (%p505) target = $region56
        $region55: #{forward.1} parent=43 // pred_region
          %p508 = scmp.lt.s32.totalorder %s27, 1
          %s509 = scalar_select %p508, %s27, 1
          %s510 = smul.addr %s509, 64
          %s511 = smul.addr %s510, 4
          %s512 = scalar_lea.vmem %s4, %s511
        $region56: #{forward.1} parent=43 // pred_fallthru
          _
        // Predicated region
        $region57: #{forward.1} parent=43 // pred_check
          %p513 = pneg %p167
        $region58: #{forward.1} parent=43 // pred_check_branch
          %515 = sbr.rel (%p513) target = $region60
        $region59: #{forward.1} parent=43 // pred_region
          %p516 = scmp.lt.s32.totalorder %s27, 1
          %s517 = scalar_select %p516, %s27, 1
          %s518 = smul.addr %s517, 2
          %s519 = scalar_lea.vmem %s5, %s518
        $region60: #{forward.1} parent=43 // pred_fallthru
          _
        // Predicated region
        $region61: #{forward.1} parent=43 // pred_check
          %p520 = pneg %p193
        $region62: #{forward.1} parent=43 // pred_check_branch
          %522 = sbr.rel (%p520) target = $region64
        $region63: #{forward.1} parent=43 // pred_region
          %p523 = scmp.lt.s32.totalorder %s27, 1
          %s524 = scalar_select %p523, %s27, 1
          %s525 = smul.addr %s524, 128
          %s526 = smul.addr %s525, 4
          %s527 = scalar_lea.vmem %s6, %s526
        $region64: #{forward.1} parent=43 // pred_fallthru
          _
        // Predicated region
        $region65: #{forward.1} parent=43 // pred_check
          %p528 = pneg %p219
        $region66: #{forward.1} parent=43 // pred_check_branch
          %530 = sbr.rel (%p528) target = $region68
        $region67: #{forward.1} parent=43 // pred_region
          %p531 = scmp.lt.s32.totalorder %s27, 1
          %s532 = scalar_select %p531, %s27, 1
          %s533 = smul.addr %s532, 4
          %s534 = scalar_lea.vmem %s7, %s533
        $region68: #{forward.1} parent=43 // pred_fallthru
          _
        // Predicated region
        $region69: #{forward.1} parent=43 // pred_check
          %p535 = pneg %p245
        $region70: #{forward.1} parent=43 // pred_check_branch
          %537 = sbr.rel (%p535) target = $region72
        $region71: #{forward.1} parent=43 // pred_region
          %p538 = scmp.lt.s32.totalorder %s27, 1
          %s539 = scalar_select %p538, %s27, 1
          %s540 = smul.addr %s539, 128
          %s541 = smul.addr %s540, 4
          %s542 = scalar_lea.vmem %s8, %s541
        $region72: #{forward.1} parent=43 // pred_fallthru
          _
        // Predicated region
        $region73: #{forward.1} parent=43 // pred_check
          %p543 = pneg %p271
        $region74: #{forward.1} parent=43 // pred_check_branch
          %545 = sbr.rel (%p543) target = $region76
        $region75: #{forward.1} parent=43 // pred_region
          %p546 = scmp.lt.s32.totalorder %s27, 1
          %s547 = scalar_select %p546, %s27, 1
          %s548 = smul.addr %s547, 2
          %s549 = scalar_lea.vmem %s9, %s548
        $region76: #{forward.1} parent=43 // pred_fallthru
          _
        // Predicated region
        $region77: #{forward.1} parent=43 // pred_check
          %p550 = pneg %p297
        $region78: #{forward.1} parent=43 // pred_check_branch
          %552 = sbr.rel (%p550) target = $region80
        $region79: #{forward.1} parent=43 // pred_region
          %p553 = scmp.lt.s32.totalorder %s27, 1
          %s554 = scalar_select %p553, %s27, 1
          %s555 = smul.addr %s554, 2
          %s556 = smul.addr %s555, 4
          %s557 = scalar_lea.vmem %s10, %s556
        $region80: #{forward.1} parent=43 // pred_fallthru
          _
      $region44: #{forward.1} parent=5 // pred_fallthru
        _
      %p558 = scmp.le.s32.totalorder 1, %s27
      %p559 = scmp.lt.s32.totalorder %s27, 3
      %p560 = pnand %p558, %p559
      %p561 = pneg %p560
      // Predicated region
      $region81: #{forward.1} parent=5 // pred_check
        _
      $region82: #{forward.1} parent=5 // pred_check_branch
        %563 = sbr.rel (%p560) target = $region84
      $region83: #{forward.1} parent=5 // pred_region
        %s564 = ssub.s32 %s27, 1
        %p565 = pneg %p48
        %p566 = pneg %p45
        %p567 = pneg %p69
        %p568 = pneg %p66
        %p569 = scmp.lt.s32.totalorder %s32, 1
        %s570 = scalar_select %p569, %s32, 1
        %s571 = smul.addr %s570, 192
        %s572 = smul.addr %s571, 4
        %s573 = scalar_lea.vmem %s2, %s572
        %p574 = pneg %p95
        %p575 = pneg %p92
        %p576 = scmp.lt.s32.totalorder %s32, 1
        %s577 = scalar_select %p576, %s32, 1
        %s578 = smul.addr %s577, 6
        %s579 = scalar_lea.vmem %s3, %s578
        %p580 = pneg %p121
        %p581 = pneg %p118
        %p582 = scmp.lt.s32.totalorder %s32, 1
        %s583 = scalar_select %p582, %s32, 1
        %s584 = smul.addr %s583, 64
        %s585 = smul.addr %s584, 4
        %s586 = scalar_lea.vmem %s4, %s585
        %p587 = pneg %p147
        %p588 = pneg %p144
        %p589 = scmp.lt.s32.totalorder %s32, 1
        %s590 = scalar_select %p589, %s32, 1
        %s591 = smul.addr %s590, 2
        %s592 = scalar_lea.vmem %s5, %s591
        %p593 = pneg %p173
        %p594 = pneg %p170
        %p595 = scmp.lt.s32.totalorder %s32, 1
        %s596 = scalar_select %p595, %s32, 1
        %s597 = smul.addr %s596, 128
        %s598 = smul.addr %s597, 4
        %s599 = scalar_lea.vmem %s6, %s598
        %p600 = pneg %p199
        %p601 = pneg %p196
        %p602 = scmp.lt.s32.totalorder %s32, 1
        %s603 = scalar_select %p602, %s32, 1
        %s604 = smul.addr %s603, 4
        %s605 = scalar_lea.vmem %s7, %s604
        %p606 = pneg %p225
        %p607 = pneg %p222
        %p608 = scmp.lt.s32.totalorder %s32, 1
        %s609 = scalar_select %p608, %s32, 1
        %s610 = smul.addr %s609, 128
        %s611 = smul.addr %s610, 4
        %s612 = scalar_lea.vmem %s8, %s611
        %p613 = pneg %p251
        %p614 = pneg %p248
        %p615 = scmp.lt.s32.totalorder %s32, 1
        %s616 = scalar_select %p615, %s32, 1
        %s617 = smul.addr %s616, 2
        %s618 = scalar_lea.vmem %s9, %s617
        %p619 = pneg %p277
        %p620 = pneg %p274
        %p621 = scmp.lt.s32.totalorder %s32, 1
        %s622 = scalar_select %p621, %s32, 1
        %s623 = smul.addr %s622, 2
        %s624 = smul.addr %s623, 4
        %s625 = scalar_lea.vmem %s10, %s624
        %p626 = pneg %p303
        %p627 = pneg %p300
        %p628 = pneg %p324
        %p629 = pneg %p321
        %p630 = pneg %p345
        %p631 = pneg %p342
        %p632 = pneg %p366
        %p633 = pneg %p363
        %p634 = pneg %p387
        %p635 = pneg %p384
        %p636 = pneg %p408
        %p637 = pneg %p405
        %p638 = pneg %p429
        %p639 = pneg %p426
        %p640 = pneg %p450
        %p641 = pneg %p447
        %p642 = scmp.lt.s32.totalorder %s32, 1
        %s643 = scalar_select %p642, %s32, 1
        %s644 = smul.addr %s643, 192
        %s645 = smul.addr %s644, 4
        %s646 = scalar_lea.vmem %s2, %s645
        %p647 = scmp.lt.s32.totalorder %s32, 1
        %s648 = scalar_select %p647, %s32, 1
        %s649 = smul.addr %s648, 6
        %s650 = scalar_lea.vmem %s3, %s649
        %p651 = scmp.lt.s32.totalorder %s32, 1
        %s652 = scalar_select %p651, %s32, 1
        %s653 = smul.addr %s652, 64
        %s654 = smul.addr %s653, 4
        %s655 = scalar_lea.vmem %s4, %s654
        %p656 = scmp.lt.s32.totalorder %s32, 1
        %s657 = scalar_select %p656, %s32, 1
        %s658 = smul.addr %s657, 2
        %s659 = scalar_lea.vmem %s5, %s658
        %p660 = scmp.lt.s32.totalorder %s32, 1
        %s661 = scalar_select %p660, %s32, 1
        %s662 = smul.addr %s661, 128
        %s663 = smul.addr %s662, 4
        %s664 = scalar_lea.vmem %s6, %s663
        %p665 = scmp.lt.s32.totalorder %s32, 1
        %s666 = scalar_select %p665, %s32, 1
        %s667 = smul.addr %s666, 4
        %s668 = scalar_lea.vmem %s7, %s667
        %p669 = scmp.lt.s32.totalorder %s32, 1
        %s670 = scalar_select %p669, %s32, 1
        %s671 = smul.addr %s670, 128
        %s672 = smul.addr %s671, 4
        %s673 = scalar_lea.vmem %s8, %s672
        %p674 = scmp.lt.s32.totalorder %s32, 1
        %s675 = scalar_select %p674, %s32, 1
        %s676 = smul.addr %s675, 2
        %s677 = scalar_lea.vmem %s9, %s676
        %p678 = scmp.lt.s32.totalorder %s32, 1
        %s679 = scalar_select %p678, %s32, 1
        %s680 = smul.addr %s679, 2
        %s681 = smul.addr %s680, 4
        %s682 = scalar_lea.vmem %s10, %s681
        %p684 = scmp.eq.s32.totalorder %s32, 0
        // Predicated region
        $region85: #{forward.1} parent=83 // pred_check
          %p685 = pneg %p684
        $region86: #{forward.1} parent=83 // pred_check_branch
          %687 = sbr.rel (%p685) target = $region88
        $region87: #{forward.1} parent=83 // pred_region
          %v688 = vld [vmem:[%s0] sm:$0xff]
          %v689 = vld [vmem:[%s0 + $0x8] sm:$0xff]
          %v690 = vld [vmem:[%s0 + $0x10] sm:$0xff]
          %v691 = vld [vmem:[%s0 + $0x18] sm:$0xff]
          %v692 = vld [vmem:[%s0 + $0x20] sm:$0xff]
          %v693 = vld [vmem:[%s0 + $0x28] sm:$0xff]
          %v694 = vld [vmem:[%s0 + $0x30] sm:$0xff]
          %v695 = vld [vmem:[%s0 + $0x38] sm:$0xff]
          %v696 = vld [vmem:[%s0 + $0x40] sm:$0xff]
          %v697 = vld [vmem:[%s0 + $0x48] sm:$0xff]
          %v698 = vld [vmem:[%s0 + $0x50] sm:$0xff]
          %v699 = vld [vmem:[%s0 + $0x58] sm:$0xff]
          %v700 = vld [vmem:[%s0 + $0x60] sm:$0xff]
          %v701 = vld [vmem:[%s0 + $0x68] sm:$0xff]
          %v702 = vld [vmem:[%s0 + $0x70] sm:$0xff]
          %v703 = vld [vmem:[%s0 + $0x78] sm:$0xff]
          %v704 = vld [vmem:[%s0 + $0x80] sm:$0xff]
          %v705 = vld [vmem:[%s0 + $0x88] sm:$0xff]
          %v706 = vld [vmem:[%s0 + $0x90] sm:$0xff]
          %v707 = vld [vmem:[%s0 + $0x98] sm:$0xff]
          %v708 = vld [vmem:[%s0 + $0xa0] sm:$0xff]
          %v709 = vld [vmem:[%s0 + $0xa8] sm:$0xff]
          %v710 = vld [vmem:[%s0 + $0xb0] sm:$0xff]
          %v711 = vld [vmem:[%s0 + $0xb8] sm:$0xff]
          %v712 = vld [vmem:[%s0 + $0xc0] sm:$0xff]
          %v713 = vld [vmem:[%s0 + $0xc8] sm:$0xff]
          %v714 = vld [vmem:[%s0 + $0xd0] sm:$0xff]
          %v715 = vld [vmem:[%s0 + $0xd8] sm:$0xff]
          %v716 = vld [vmem:[%s0 + $0xe0] sm:$0xff]
          %v717 = vld [vmem:[%s0 + $0xe8] sm:$0xff]
          %v718 = vld [vmem:[%s0 + $0xf0] sm:$0xff]
          %v719 = vld [vmem:[%s0 + $0xf8] sm:$0xff]
          %720 = vst [vmem:[#allocation2] sm:$0xff] %v688
          %721 = vst [vmem:[#allocation2 + $0x8] sm:$0xff] %v689
          %722 = vst [vmem:[#allocation2 + $0x10] sm:$0xff] %v690
          %723 = vst [vmem:[#allocation2 + $0x18] sm:$0xff] %v691
          %724 = vst [vmem:[#allocation2 + $0x20] sm:$0xff] %v692
          %725 = vst [vmem:[#allocation2 + $0x28] sm:$0xff] %v693
          %726 = vst [vmem:[#allocation2 + $0x30] sm:$0xff] %v694
          %727 = vst [vmem:[#allocation2 + $0x38] sm:$0xff] %v695
          %728 = vst [vmem:[#allocation2 + $0x40] sm:$0xff] %v696
          %729 = vst [vmem:[#allocation2 + $0x48] sm:$0xff] %v697
          %730 = vst [vmem:[#allocation2 + $0x50] sm:$0xff] %v698
          %731 = vst [vmem:[#allocation2 + $0x58] sm:$0xff] %v699
          %732 = vst [vmem:[#allocation2 + $0x60] sm:$0xff] %v700
          %733 = vst [vmem:[#allocation2 + $0x68] sm:$0xff] %v701
          %734 = vst [vmem:[#allocation2 + $0x70] sm:$0xff] %v702
          %735 = vst [vmem:[#allocation2 + $0x78] sm:$0xff] %v703
          %736 = vst [vmem:[#allocation2 + $0x80] sm:$0xff] %v704
          %737 = vst [vmem:[#allocation2 + $0x88] sm:$0xff] %v705
          %738 = vst [vmem:[#allocation2 + $0x90] sm:$0xff] %v706
          %739 = vst [vmem:[#allocation2 + $0x98] sm:$0xff] %v707
          %740 = vst [vmem:[#allocation2 + $0xa0] sm:$0xff] %v708
          %741 = vst [vmem:[#allocation2 + $0xa8] sm:$0xff] %v709
          %742 = vst [vmem:[#allocation2 + $0xb0] sm:$0xff] %v710
          %743 = vst [vmem:[#allocation2 + $0xb8] sm:$0xff] %v711
          %744 = vst [vmem:[#allocation2 + $0xc0] sm:$0xff] %v712
          %745 = vst [vmem:[#allocation2 + $0xc8] sm:$0xff] %v713
          %746 = vst [vmem:[#allocation2 + $0xd0] sm:$0xff] %v714
          %747 = vst [vmem:[#allocation2 + $0xd8] sm:$0xff] %v715
          %748 = vst [vmem:[#allocation2 + $0xe0] sm:$0xff] %v716
          %749 = vst [vmem:[#allocation2 + $0xe8] sm:$0xff] %v717
          %750 = vst [vmem:[#allocation2 + $0xf0] sm:$0xff] %v718
          %751 = vst [vmem:[#allocation2 + $0xf8] sm:$0xff] %v719
        $region88: #{forward.1} parent=83 // pred_fallthru
          _
        %v752 = vld [vmem:[#allocation2] sm:$0xff]
        %v753 = vld [vmem:[#allocation2 + $0x8] sm:$0xff]
        %v754 = vld [vmem:[#allocation2 + $0x10] sm:$0xff]
        %v755 = vld [vmem:[#allocation2 + $0x18] sm:$0xff]
        %v756 = vld [vmem:[#allocation2 + $0x20] sm:$0xff]
        %v757 = vld [vmem:[#allocation2 + $0x28] sm:$0xff]
        %v758 = vld [vmem:[#allocation2 + $0x30] sm:$0xff]
        %v759 = vld [vmem:[#allocation2 + $0x38] sm:$0xff]
        %v760 = vld [vmem:[#allocation2 + $0x40] sm:$0xff]
        %v761 = vld [vmem:[#allocation2 + $0x48] sm:$0xff]
        %v762 = vld [vmem:[#allocation2 + $0x50] sm:$0xff]
        %v763 = vld [vmem:[#allocation2 + $0x58] sm:$0xff]
        %v764 = vld [vmem:[#allocation2 + $0x60] sm:$0xff]
        %v765 = vld [vmem:[#allocation2 + $0x68] sm:$0xff]
        %v766 = vld [vmem:[#allocation2 + $0x70] sm:$0xff]
        %v767 = vld [vmem:[#allocation2 + $0x78] sm:$0xff]
        %v768 = vld [vmem:[#allocation2 + $0x80] sm:$0xff]
        %v769 = vld [vmem:[#allocation2 + $0x88] sm:$0xff]
        %v770 = vld [vmem:[#allocation2 + $0x90] sm:$0xff]
        %v771 = vld [vmem:[#allocation2 + $0x98] sm:$0xff]
        %v772 = vld [vmem:[#allocation2 + $0xa0] sm:$0xff]
        %v773 = vld [vmem:[#allocation2 + $0xa8] sm:$0xff]
        %v774 = vld [vmem:[#allocation2 + $0xb0] sm:$0xff]
        %v775 = vld [vmem:[#allocation2 + $0xb8] sm:$0xff]
        %v776 = vld [vmem:[#allocation2 + $0xc0] sm:$0xff]
        %v777 = vld [vmem:[#allocation2 + $0xc8] sm:$0xff]
        %v778 = vld [vmem:[#allocation2 + $0xd0] sm:$0xff]
        %v779 = vld [vmem:[#allocation2 + $0xd8] sm:$0xff]
        %v780 = vld [vmem:[#allocation2 + $0xe0] sm:$0xff]
        %v781 = vld [vmem:[#allocation2 + $0xe8] sm:$0xff]
        %v782 = vld [vmem:[#allocation2 + $0xf0] sm:$0xff]
        %v783 = vld [vmem:[#allocation2 + $0xf8] sm:$0xff]
        %v784 = vld [vmem:[%s682] sm:$0xff]
        %v785 = vld [vmem:[%s1] sm:$0xff]
        %v786 = vld [vmem:[%s1 + $0x8] sm:$0xff]
        %v787 = vld [vmem:[%s1 + $0x10] sm:$0xff]
        %v788 = vld [vmem:[%s1 + $0x18] sm:$0xff]
        %v789 = vld [vmem:[%s1 + $0x20] sm:$0xff]
        %v790 = vld [vmem:[%s1 + $0x28] sm:$0xff]
        %v791 = vld [vmem:[%s1 + $0x30] sm:$0xff]
        %v792 = vld [vmem:[%s1 + $0x38] sm:$0xff]
        %v793 = vld [vmem:[%s1 + $0x40] sm:$0xff]
        %v794 = vld [vmem:[%s1 + $0x48] sm:$0xff]
        %v795 = vld [vmem:[%s1 + $0x50] sm:$0xff]
        %v796 = vld [vmem:[%s1 + $0x58] sm:$0xff]
        %v797 = vld [vmem:[%s1 + $0x60] sm:$0xff]
        %v798 = vld [vmem:[%s1 + $0x68] sm:$0xff]
        %v799 = vld [vmem:[%s1 + $0x70] sm:$0xff]
        %v800 = vld [vmem:[%s1 + $0x78] sm:$0xff]
        %v801 = vpack.c.bf16 %v754, %v752
        %v802 = vpack.c.bf16 %v755, %v753
        %v803 = vpack.c.bf16 %v758, %v756
        %v804 = vpack.c.bf16 %v759, %v757
        %v805 = vpack.c.bf16 %v762, %v760
        %v806 = vpack.c.bf16 %v763, %v761
        %v807 = vpack.c.bf16 %v766, %v764
        %v808 = vpack.c.bf16 %v767, %v765
        %v809 = vpack.c.bf16 %v770, %v768
        %v810 = vpack.c.bf16 %v771, %v769
        %v811 = vpack.c.bf16 %v774, %v772
        %v812 = vpack.c.bf16 %v775, %v773
        %v813 = vpack.c.bf16 %v778, %v776
        %v814 = vpack.c.bf16 %v779, %v777
        %v815 = vpack.c.bf16 %v782, %v780
        %v816 = vpack.c.bf16 %v783, %v781
        %v817 = vld [vmem:[%s646] sm:$0xff]
        %v818 = vld [vmem:[%s646 + $0x8] sm:$0xff]
        %v819 = vld [vmem:[%s646 + $0x10] sm:$0xff]
        %v820 = vld [vmem:[%s646 + $0x18] sm:$0xff]
        %v821 = vld [vmem:[%s646 + $0x20] sm:$0xff]
        %v822 = vld [vmem:[%s646 + $0x28] sm:$0xff]
        %v823 = vld [vmem:[%s646 + $0x30] sm:$0xff]
        %v824 = vld [vmem:[%s646 + $0x38] sm:$0xff]
        %v825 = vld [vmem:[%s646 + $0x40] sm:$0xff]
        %v826 = vld [vmem:[%s646 + $0x48] sm:$0xff]
        %v827 = vld [vmem:[%s646 + $0x50] sm:$0xff]
        %v828 = vld [vmem:[%s646 + $0x58] sm:$0xff]
        %v829 = vld [vmem:[%s646 + $0x60] sm:$0xff]
        %v830 = vld [vmem:[%s646 + $0x68] sm:$0xff]
        %v831 = vld [vmem:[%s646 + $0x70] sm:$0xff]
        %v832 = vld [vmem:[%s646 + $0x78] sm:$0xff]
        %v833 = vld [vmem:[%s646 + $0x80] sm:$0xff]
        %v834 = vld [vmem:[%s646 + $0x88] sm:$0xff]
        %v835 = vld [vmem:[%s646 + $0x90] sm:$0xff]
        %v836 = vld [vmem:[%s646 + $0x98] sm:$0xff]
        %v837 = vld [vmem:[%s646 + $0xa0] sm:$0xff]
        %v838 = vld [vmem:[%s646 + $0xa8] sm:$0xff]
        %v839 = vld [vmem:[%s646 + $0xb0] sm:$0xff]
        %v840 = vld [vmem:[%s646 + $0xb8] sm:$0xff]
        %v841 = vld [vmem:[%s646 + $0xc0] sm:$0xff]
        %v842 = vld [vmem:[%s646 + $0xc8] sm:$0xff]
        %v843 = vld [vmem:[%s646 + $0xd0] sm:$0xff]
        %v844 = vld [vmem:[%s646 + $0xd8] sm:$0xff]
        %v845 = vld [vmem:[%s646 + $0xe0] sm:$0xff]
        %v846 = vld [vmem:[%s646 + $0xe8] sm:$0xff]
        %v847 = vld [vmem:[%s646 + $0xf0] sm:$0xff]
        %v848 = vld [vmem:[%s646 + $0xf8] sm:$0xff]
        %v849 = vld [vmem:[%s646 + $0x100] sm:$0xff]
        %v850 = vld [vmem:[%s646 + $0x108] sm:$0xff]
        %v851 = vld [vmem:[%s646 + $0x110] sm:$0xff]
        %v852 = vld [vmem:[%s646 + $0x118] sm:$0xff]
        %v853 = vld [vmem:[%s646 + $0x120] sm:$0xff]
        %v854 = vld [vmem:[%s646 + $0x128] sm:$0xff]
        %v855 = vld [vmem:[%s646 + $0x130] sm:$0xff]
        %v856 = vld [vmem:[%s646 + $0x138] sm:$0xff]
        %v857 = vld [vmem:[%s646 + $0x140] sm:$0xff]
        %v858 = vld [vmem:[%s646 + $0x148] sm:$0xff]
        %v859 = vld [vmem:[%s646 + $0x150] sm:$0xff]
        %v860 = vld [vmem:[%s646 + $0x158] sm:$0xff]
        %v861 = vld [vmem:[%s646 + $0x160] sm:$0xff]
        %v862 = vld [vmem:[%s646 + $0x168] sm:$0xff]
        %v863 = vld [vmem:[%s646 + $0x170] sm:$0xff]
        %v864 = vld [vmem:[%s646 + $0x178] sm:$0xff]
        %v865 = vld [vmem:[%s646 + $0x180] sm:$0xff]
        %v866 = vld [vmem:[%s646 + $0x188] sm:$0xff]
        %v867 = vld [vmem:[%s646 + $0x190] sm:$0xff]
        %v868 = vld [vmem:[%s646 + $0x198] sm:$0xff]
        %v869 = vld [vmem:[%s646 + $0x1a0] sm:$0xff]
        %v870 = vld [vmem:[%s646 + $0x1a8] sm:$0xff]
        %v871 = vld [vmem:[%s646 + $0x1b0] sm:$0xff]
        %v872 = vld [vmem:[%s646 + $0x1b8] sm:$0xff]
        %v873 = vld [vmem:[%s646 + $0x1c0] sm:$0xff]
        %v874 = vld [vmem:[%s646 + $0x1c8] sm:$0xff]
        %v875 = vld [vmem:[%s646 + $0x1d0] sm:$0xff]
        %v876 = vld [vmem:[%s646 + $0x1d8] sm:$0xff]
        %v877 = vld [vmem:[%s646 + $0x1e0] sm:$0xff]
        %v878 = vld [vmem:[%s646 + $0x1e8] sm:$0xff]
        %v879 = vld [vmem:[%s646 + $0x1f0] sm:$0xff]
        %v880 = vld [vmem:[%s646 + $0x1f8] sm:$0xff]
        %v881 = vld [vmem:[%s646 + $0x200] sm:$0xff]
        %v882 = vld [vmem:[%s646 + $0x208] sm:$0xff]
        %v883 = vld [vmem:[%s646 + $0x210] sm:$0xff]
        %v884 = vld [vmem:[%s646 + $0x218] sm:$0xff]
        %v885 = vld [vmem:[%s646 + $0x220] sm:$0xff]
        %v886 = vld [vmem:[%s646 + $0x228] sm:$0xff]
        %v887 = vld [vmem:[%s646 + $0x230] sm:$0xff]
        %v888 = vld [vmem:[%s646 + $0x238] sm:$0xff]
        %v889 = vld [vmem:[%s646 + $0x240] sm:$0xff]
        %v890 = vld [vmem:[%s646 + $0x248] sm:$0xff]
        %v891 = vld [vmem:[%s646 + $0x250] sm:$0xff]
        %v892 = vld [vmem:[%s646 + $0x258] sm:$0xff]
        %v893 = vld [vmem:[%s646 + $0x260] sm:$0xff]
        %v894 = vld [vmem:[%s646 + $0x268] sm:$0xff]
        %v895 = vld [vmem:[%s646 + $0x270] sm:$0xff]
        %v896 = vld [vmem:[%s646 + $0x278] sm:$0xff]
        %v897 = vld [vmem:[%s646 + $0x280] sm:$0xff]
        %v898 = vld [vmem:[%s646 + $0x288] sm:$0xff]
        %v899 = vld [vmem:[%s646 + $0x290] sm:$0xff]
        %v900 = vld [vmem:[%s646 + $0x298] sm:$0xff]
        %v901 = vld [vmem:[%s646 + $0x2a0] sm:$0xff]
        %v902 = vld [vmem:[%s646 + $0x2a8] sm:$0xff]
        %v903 = vld [vmem:[%s646 + $0x2b0] sm:$0xff]
        %v904 = vld [vmem:[%s646 + $0x2b8] sm:$0xff]
        %v905 = vld [vmem:[%s646 + $0x2c0] sm:$0xff]
        %v906 = vld [vmem:[%s646 + $0x2c8] sm:$0xff]
        %v907 = vld [vmem:[%s646 + $0x2d0] sm:$0xff]
        %v908 = vld [vmem:[%s646 + $0x2d8] sm:$0xff]
        %v909 = vld [vmem:[%s646 + $0x2e0] sm:$0xff]
        %v910 = vld [vmem:[%s646 + $0x2e8] sm:$0xff]
        %v911 = vld [vmem:[%s646 + $0x2f0] sm:$0xff]
        %v912 = vld [vmem:[%s646 + $0x2f8] sm:$0xff]
        %v913 = vld [vmem:[%s650] sm:$0x3f]
        %v915 = vlaneseq
        %v916 = vshrl.u32 %v915, 7
        %v917 = vsub.s32 0, %v916
        %v918 = vrot.slane %v913, %v917
        %v919 = vlaneseq
        %v920 = vshrl.u32 %v919, 7
        %v921 = vsub.s32 1, %v920
        %v922 = vrot.slane %v913, %v921
        %v923 = vlaneseq
        %v924 = vshrl.u32 %v923, 7
        %v925 = vsub.s32 2, %v924
        %v926 = vrot.slane %v913, %v925
        %v927 = vlaneseq
        %v928 = vshrl.u32 %v927, 7
        %v929 = vsub.s32 3, %v928
        %v930 = vrot.slane %v913, %v929
        %v931 = vlaneseq
        %v932 = vshrl.u32 %v931, 7
        %v933 = vsub.s32 4, %v932
        %v934 = vrot.slane %v913, %v933
        %v935 = vlaneseq
        %v936 = vshrl.u32 %v935, 7
        %v937 = vsub.s32 5, %v936
        %v938 = vrot.slane %v913, %v937
        %v1041 = vunpack.c.l.b16 %v817
        %v1042 = vunpack.c.h.b16 %v817
        %v1043 = vunpack.c.l.b16 %v818
        %v1044 = vunpack.c.h.b16 %v818
        %v1045 = vunpack.c.l.b16 %v819
        %v1046 = vunpack.c.h.b16 %v819
        %v1047 = vunpack.c.l.b16 %v820
        %v1048 = vunpack.c.h.b16 %v820
        %v1049 = vunpack.c.l.b16 %v821
        %v1050 = vunpack.c.h.b16 %v821
        %v1051 = vunpack.c.l.b16 %v822
        %v1052 = vunpack.c.h.b16 %v822
        %v1053 = vunpack.c.l.b16 %v823
        %v1054 = vunpack.c.h.b16 %v823
        %v1055 = vunpack.c.l.b16 %v824
        %v1056 = vunpack.c.h.b16 %v824
        %v1057 = vunpack.c.l.b16 %v825
        %v1058 = vunpack.c.h.b16 %v825
        %v1059 = vunpack.c.l.b16 %v826
        %v1060 = vunpack.c.h.b16 %v826
        %v1061 = vunpack.c.l.b16 %v827
        %v1062 = vunpack.c.h.b16 %v827
        %v1063 = vunpack.c.l.b16 %v828
        %v1064 = vunpack.c.h.b16 %v828
        %v1065 = vunpack.c.l.b16 %v829
        %v1066 = vunpack.c.h.b16 %v829
        %v1067 = vunpack.c.l.b16 %v830
        %v1068 = vunpack.c.h.b16 %v830
        %v1069 = vunpack.c.l.b16 %v831
        %v1070 = vunpack.c.h.b16 %v831
        %v1071 = vunpack.c.l.b16 %v832
        %v1072 = vunpack.c.h.b16 %v832
        %v1073 = vunpack.c.l.b16 %v833
        %v1074 = vunpack.c.h.b16 %v833
        %v1075 = vunpack.c.l.b16 %v834
        %v1076 = vunpack.c.h.b16 %v834
        %v1077 = vunpack.c.l.b16 %v835
        %v1078 = vunpack.c.h.b16 %v835
        %v1079 = vunpack.c.l.b16 %v836
        %v1080 = vunpack.c.h.b16 %v836
        %v1081 = vunpack.c.l.b16 %v837
        %v1082 = vunpack.c.h.b16 %v837
        %v1083 = vunpack.c.l.b16 %v838
        %v1084 = vunpack.c.h.b16 %v838
        %v1085 = vunpack.c.l.b16 %v839
        %v1086 = vunpack.c.h.b16 %v839
        %v1087 = vunpack.c.l.b16 %v840
        %v1088 = vunpack.c.h.b16 %v840
        %v1089 = vunpack.c.l.b16 %v841
        %v1090 = vunpack.c.h.b16 %v841
        %v1091 = vunpack.c.l.b16 %v842
        %v1092 = vunpack.c.h.b16 %v842
        %v1093 = vunpack.c.l.b16 %v843
        %v1094 = vunpack.c.h.b16 %v843
        %v1095 = vunpack.c.l.b16 %v844
        %v1096 = vunpack.c.h.b16 %v844
        %v1097 = vunpack.c.l.b16 %v845
        %v1098 = vunpack.c.h.b16 %v845
        %v1099 = vunpack.c.l.b16 %v846
        %v1100 = vunpack.c.h.b16 %v846
        %v1101 = vunpack.c.l.b16 %v847
        %v1102 = vunpack.c.h.b16 %v847
        %v1103 = vunpack.c.l.b16 %v848
        %v1104 = vunpack.c.h.b16 %v848
        %v1105 = vunpack.c.l.b16 %v849
        %v1106 = vunpack.c.h.b16 %v849
        %v1107 = vunpack.c.l.b16 %v850
        %v1108 = vunpack.c.h.b16 %v850
        %v1109 = vunpack.c.l.b16 %v851
        %v1110 = vunpack.c.h.b16 %v851
        %v1111 = vunpack.c.l.b16 %v852
        %v1112 = vunpack.c.h.b16 %v852
        %v1113 = vunpack.c.l.b16 %v853
        %v1114 = vunpack.c.h.b16 %v853
        %v1115 = vunpack.c.l.b16 %v854
        %v1116 = vunpack.c.h.b16 %v854
        %v1117 = vunpack.c.l.b16 %v855
        %v1118 = vunpack.c.h.b16 %v855
        %v1119 = vunpack.c.l.b16 %v856
        %v1120 = vunpack.c.h.b16 %v856
        %v1121 = vunpack.c.l.b16 %v857
        %v1122 = vunpack.c.h.b16 %v857
        %v1123 = vunpack.c.l.b16 %v858
        %v1124 = vunpack.c.h.b16 %v858
        %v1125 = vunpack.c.l.b16 %v859
        %v1126 = vunpack.c.h.b16 %v859
        %v1127 = vunpack.c.l.b16 %v860
        %v1128 = vunpack.c.h.b16 %v860
        %v1129 = vunpack.c.l.b16 %v861
        %v1130 = vunpack.c.h.b16 %v861
        %v1131 = vunpack.c.l.b16 %v862
        %v1132 = vunpack.c.h.b16 %v862
        %v1133 = vunpack.c.l.b16 %v863
        %v1134 = vunpack.c.h.b16 %v863
        %v1135 = vunpack.c.l.b16 %v864
        %v1136 = vunpack.c.h.b16 %v864
        %v1137 = vunpack.c.l.b16 %v865
        %v1138 = vunpack.c.h.b16 %v865
        %v1139 = vunpack.c.l.b16 %v866
        %v1140 = vunpack.c.h.b16 %v866
        %v1141 = vunpack.c.l.b16 %v867
        %v1142 = vunpack.c.h.b16 %v867
        %v1143 = vunpack.c.l.b16 %v868
        %v1144 = vunpack.c.h.b16 %v868
        %v1145 = vunpack.c.l.b16 %v869
        %v1146 = vunpack.c.h.b16 %v869
        %v1147 = vunpack.c.l.b16 %v870
        %v1148 = vunpack.c.h.b16 %v870
        %v1149 = vunpack.c.l.b16 %v871
        %v1150 = vunpack.c.h.b16 %v871
        %v1151 = vunpack.c.l.b16 %v872
        %v1152 = vunpack.c.h.b16 %v872
        %v1153 = vunpack.c.l.b16 %v873
        %v1154 = vunpack.c.h.b16 %v873
        %v1155 = vunpack.c.l.b16 %v874
        %v1156 = vunpack.c.h.b16 %v874
        %v1157 = vunpack.c.l.b16 %v875
        %v1158 = vunpack.c.h.b16 %v875
        %v1159 = vunpack.c.l.b16 %v876
        %v1160 = vunpack.c.h.b16 %v876
        %v1161 = vunpack.c.l.b16 %v877
        %v1162 = vunpack.c.h.b16 %v877
        %v1163 = vunpack.c.l.b16 %v878
        %v1164 = vunpack.c.h.b16 %v878
        %v1165 = vunpack.c.l.b16 %v879
        %v1166 = vunpack.c.h.b16 %v879
        %v1167 = vunpack.c.l.b16 %v880
        %v1168 = vunpack.c.h.b16 %v880
        %v1169 = vunpack.c.l.b16 %v881
        %v1170 = vunpack.c.h.b16 %v881
        %v1171 = vunpack.c.l.b16 %v882
        %v1172 = vunpack.c.h.b16 %v882
        %v1173 = vunpack.c.l.b16 %v883
        %v1174 = vunpack.c.h.b16 %v883
        %v1175 = vunpack.c.l.b16 %v884
        %v1176 = vunpack.c.h.b16 %v884
        %v1177 = vunpack.c.l.b16 %v885
        %v1178 = vunpack.c.h.b16 %v885
        %v1179 = vunpack.c.l.b16 %v886
        %v1180 = vunpack.c.h.b16 %v886
        %v1181 = vunpack.c.l.b16 %v887
        %v1182 = vunpack.c.h.b16 %v887
        %v1183 = vunpack.c.l.b16 %v888
        %v1184 = vunpack.c.h.b16 %v888
        %v1185 = vunpack.c.l.b16 %v889
        %v1186 = vunpack.c.h.b16 %v889
        %v1187 = vunpack.c.l.b16 %v890
        %v1188 = vunpack.c.h.b16 %v890
        %v1189 = vunpack.c.l.b16 %v891
        %v1190 = vunpack.c.h.b16 %v891
        %v1191 = vunpack.c.l.b16 %v892
        %v1192 = vunpack.c.h.b16 %v892
        %v1193 = vunpack.c.l.b16 %v893
        %v1194 = vunpack.c.h.b16 %v893
        %v1195 = vunpack.c.l.b16 %v894
        %v1196 = vunpack.c.h.b16 %v894
        %v1197 = vunpack.c.l.b16 %v895
        %v1198 = vunpack.c.h.b16 %v895
        %v1199 = vunpack.c.l.b16 %v896
        %v1200 = vunpack.c.h.b16 %v896
        %v1201 = vunpack.c.l.b16 %v897
        %v1202 = vunpack.c.h.b16 %v897
        %v1203 = vunpack.c.l.b16 %v898
        %v1204 = vunpack.c.h.b16 %v898
        %v1205 = vunpack.c.l.b16 %v899
        %v1206 = vunpack.c.h.b16 %v899
        %v1207 = vunpack.c.l.b16 %v900
        %v1208 = vunpack.c.h.b16 %v900
        %v1209 = vunpack.c.l.b16 %v901
        %v1210 = vunpack.c.h.b16 %v901
        %v1211 = vunpack.c.l.b16 %v902
        %v1212 = vunpack.c.h.b16 %v902
        %v1213 = vunpack.c.l.b16 %v903
        %v1214 = vunpack.c.h.b16 %v903
        %v1215 = vunpack.c.l.b16 %v904
        %v1216 = vunpack.c.h.b16 %v904
        %v1217 = vunpack.c.l.b16 %v905
        %v1218 = vunpack.c.h.b16 %v905
        %v1219 = vunpack.c.l.b16 %v906
        %v1220 = vunpack.c.h.b16 %v906
        %v1221 = vunpack.c.l.b16 %v907
        %v1222 = vunpack.c.h.b16 %v907
        %v1223 = vunpack.c.l.b16 %v908
        %v1224 = vunpack.c.h.b16 %v908
        %v1225 = vunpack.c.l.b16 %v909
        %v1226 = vunpack.c.h.b16 %v909
        %v1227 = vunpack.c.l.b16 %v910
        %v1228 = vunpack.c.h.b16 %v910
        %v1229 = vunpack.c.l.b16 %v911
        %v1230 = vunpack.c.h.b16 %v911
        %v1231 = vunpack.c.l.b16 %v912
        %v1232 = vunpack.c.h.b16 %v912
        %v1233 = vpack.c.b16 %v1047, %v1041
        %v1234 = vpack.c.b16 %v1048, %v1042
        %v1235 = vpack.c.b16 %v1049, %v1043
        %v1236 = vpack.c.b16 %v1050, %v1044
        %v1237 = vpack.c.b16 %v1051, %v1045
        %v1238 = vpack.c.b16 %v1052, %v1046
        %v1239 = vpack.c.b16 %v1059, %v1053
        %v1240 = vpack.c.b16 %v1060, %v1054
        %v1241 = vpack.c.b16 %v1061, %v1055
        %v1242 = vpack.c.b16 %v1062, %v1056
        %v1243 = vpack.c.b16 %v1063, %v1057
        %v1244 = vpack.c.b16 %v1064, %v1058
        %v1245 = vpack.c.b16 %v1071, %v1065
        %v1246 = vpack.c.b16 %v1072, %v1066
        %v1247 = vpack.c.b16 %v1073, %v1067
        %v1248 = vpack.c.b16 %v1074, %v1068
        %v1249 = vpack.c.b16 %v1075, %v1069
        %v1250 = vpack.c.b16 %v1076, %v1070
        %v1251 = vpack.c.b16 %v1083, %v1077
        %v1252 = vpack.c.b16 %v1084, %v1078
        %v1253 = vpack.c.b16 %v1085, %v1079
        %v1254 = vpack.c.b16 %v1086, %v1080
        %v1255 = vpack.c.b16 %v1087, %v1081
        %v1256 = vpack.c.b16 %v1088, %v1082
        %v1257 = vpack.c.b16 %v1095, %v1089
        %v1258 = vpack.c.b16 %v1096, %v1090
        %v1259 = vpack.c.b16 %v1097, %v1091
        %v1260 = vpack.c.b16 %v1098, %v1092
        %v1261 = vpack.c.b16 %v1099, %v1093
        %v1262 = vpack.c.b16 %v1100, %v1094
        %v1263 = vpack.c.b16 %v1107, %v1101
        %v1264 = vpack.c.b16 %v1108, %v1102
        %v1265 = vpack.c.b16 %v1109, %v1103
        %v1266 = vpack.c.b16 %v1110, %v1104
        %v1267 = vpack.c.b16 %v1111, %v1105
        %v1268 = vpack.c.b16 %v1112, %v1106
        %v1269 = vpack.c.b16 %v1119, %v1113
        %v1270 = vpack.c.b16 %v1120, %v1114
        %v1271 = vpack.c.b16 %v1121, %v1115
        %v1272 = vpack.c.b16 %v1122, %v1116
        %v1273 = vpack.c.b16 %v1123, %v1117
        %v1274 = vpack.c.b16 %v1124, %v1118
        %v1275 = vpack.c.b16 %v1131, %v1125
        %v1276 = vpack.c.b16 %v1132, %v1126
        %v1277 = vpack.c.b16 %v1133, %v1127
        %v1278 = vpack.c.b16 %v1134, %v1128
        %v1279 = vpack.c.b16 %v1135, %v1129
        %v1280 = vpack.c.b16 %v1136, %v1130
        %v1281 = vpack.c.b16 %v1143, %v1137
        %v1282 = vpack.c.b16 %v1144, %v1138
        %v1283 = vpack.c.b16 %v1145, %v1139
        %v1284 = vpack.c.b16 %v1146, %v1140
        %v1285 = vpack.c.b16 %v1147, %v1141
        %v1286 = vpack.c.b16 %v1148, %v1142
        %v1287 = vpack.c.b16 %v1155, %v1149
        %v1288 = vpack.c.b16 %v1156, %v1150
        %v1289 = vpack.c.b16 %v1157, %v1151
        %v1290 = vpack.c.b16 %v1158, %v1152
        %v1291 = vpack.c.b16 %v1159, %v1153
        %v1292 = vpack.c.b16 %v1160, %v1154
        %v1293 = vpack.c.b16 %v1167, %v1161
        %v1294 = vpack.c.b16 %v1168, %v1162
        %v1295 = vpack.c.b16 %v1169, %v1163
        %v1296 = vpack.c.b16 %v1170, %v1164
        %v1297 = vpack.c.b16 %v1171, %v1165
        %v1298 = vpack.c.b16 %v1172, %v1166
        %v1299 = vpack.c.b16 %v1179, %v1173
        %v1300 = vpack.c.b16 %v1180, %v1174
        %v1301 = vpack.c.b16 %v1181, %v1175
        %v1302 = vpack.c.b16 %v1182, %v1176
        %v1303 = vpack.c.b16 %v1183, %v1177
        %v1304 = vpack.c.b16 %v1184, %v1178
        %v1305 = vpack.c.b16 %v1191, %v1185
        %v1306 = vpack.c.b16 %v1192, %v1186
        %v1307 = vpack.c.b16 %v1193, %v1187
        %v1308 = vpack.c.b16 %v1194, %v1188
        %v1309 = vpack.c.b16 %v1195, %v1189
        %v1310 = vpack.c.b16 %v1196, %v1190
        %v1311 = vpack.c.b16 %v1203, %v1197
        %v1312 = vpack.c.b16 %v1204, %v1198
        %v1313 = vpack.c.b16 %v1205, %v1199
        %v1314 = vpack.c.b16 %v1206, %v1200
        %v1315 = vpack.c.b16 %v1207, %v1201
        %v1316 = vpack.c.b16 %v1208, %v1202
        %v1317 = vpack.c.b16 %v1215, %v1209
        %v1318 = vpack.c.b16 %v1216, %v1210
        %v1319 = vpack.c.b16 %v1217, %v1211
        %v1320 = vpack.c.b16 %v1218, %v1212
        %v1321 = vpack.c.b16 %v1219, %v1213
        %v1322 = vpack.c.b16 %v1220, %v1214
        %v1323 = vpack.c.b16 %v1227, %v1221
        %v1324 = vpack.c.b16 %v1228, %v1222
        %v1325 = vpack.c.b16 %v1229, %v1223
        %v1326 = vpack.c.b16 %v1230, %v1224
        %v1327 = vpack.c.b16 %v1231, %v1225
        %v1328 = vpack.c.b16 %v1232, %v1226
        %1425 = vmatprep.subr.bf16.mxu0 %v1234
        %1426 = vmatpush1.bf16.msra.mxu0 %v1233
        %1427 = vmatprep.subr.bf16.mxu0 %v1240
        %1428 = vmatpush1.bf16.msra.mxu0 %v1239
        %1429 = vmatprep.subr.bf16.mxu0 %v1246
        %1430 = vmatpush1.bf16.msra.mxu0 %v1245
        %1431 = vmatprep.subr.bf16.mxu0 %v1252
        %1432 = vmatpush1.bf16.msra.mxu0 %v1251
        %1433 = vmatprep.subr.bf16.mxu0 %v1258
        %1434 = vmatpush1.bf16.msra.mxu0 %v1257
        %1435 = vmatprep.subr.bf16.mxu0 %v1264
        %1436 = vmatpush1.bf16.msra.mxu0 %v1263
        %1437 = vmatprep.subr.bf16.mxu0 %v1270
        %1438 = vmatpush1.bf16.msra.mxu0 %v1269
        %1439 = vmatprep.subr.bf16.mxu0 %v1276
        %1440 = vmatpush1.bf16.msra.mxu0 %v1275
        %1441 = vmatprep.subr.bf16.mxu0 %v1282
        %1442 = vmatpush1.bf16.msra.mxu0 %v1281
        %1443 = vmatprep.subr.bf16.mxu0 %v1288
        %1444 = vmatpush1.bf16.msra.mxu0 %v1287
        %1445 = vmatprep.subr.bf16.mxu0 %v1294
        %1446 = vmatpush1.bf16.msra.mxu0 %v1293
        %1447 = vmatprep.subr.bf16.mxu0 %v1300
        %1448 = vmatpush1.bf16.msra.mxu0 %v1299
        %1449 = vmatprep.subr.bf16.mxu0 %v1306
        %1450 = vmatpush1.bf16.msra.mxu0 %v1305
        %1451 = vmatprep.subr.bf16.mxu0 %v1312
        %1452 = vmatpush1.bf16.msra.mxu0 %v1311
        %1453 = vmatprep.subr.bf16.mxu0 %v1318
        %1454 = vmatpush1.bf16.msra.mxu0 %v1317
        %1455 = vmatprep.subr.bf16.mxu0 %v1324
        %1456 = vmatpush1.bf16.msra.mxu0 %v1323
        %1457 = vmatprep.mubr.bf16.mxu0 %v802
        %1458 = vmatmul.mubr.bf16.gmra.mrb[0].mxu0 %v801
        %v1459 = vpop.f32.mrb[0].mxu0
        %v1460 = vadd.f32 %v918, %v1459
        %v1461 = vpop.f32.mrb[0].mxu0
        %v1462 = vadd.f32 %v922, %v1461
        %v1463 = vpop.f32.mrb[0].mxu0
        %v1464 = vadd.f32 %v918, %v1463
        %v1465 = vpop.f32.mrb[0].mxu0
        %v1466 = vadd.f32 %v922, %v1465
        %1467 = vmatprep.mubr.bf16.mxu0 %v804
        %1468 = vmatmul.mubr.bf16.gmra.mrb[0].mxu0 %v803
        %v1469 = vpop.f32.mrb[0].mxu0
        %v1470 = vadd.f32 %v918, %v1469
        %v1471 = vpop.f32.mrb[0].mxu0
        %v1472 = vadd.f32 %v922, %v1471
        %v1473 = vpop.f32.mrb[0].mxu0
        %v1474 = vadd.f32 %v918, %v1473
        %v1475 = vpop.f32.mrb[0].mxu0
        %v1476 = vadd.f32 %v922, %v1475
        %1477 = vmatprep.mubr.bf16.mxu0 %v806
        %1478 = vmatmul.mubr.bf16.gmra.mrb[0].mxu0 %v805
        %v1479 = vpop.f32.mrb[0].mxu0
        %v1480 = vadd.f32 %v918, %v1479
        %v1481 = vpop.f32.mrb[0].mxu0
        %v1482 = vadd.f32 %v922, %v1481
        %v1483 = vpop.f32.mrb[0].mxu0
        %v1484 = vadd.f32 %v918, %v1483
        %v1485 = vpop.f32.mrb[0].mxu0
        %v1486 = vadd.f32 %v922, %v1485
        %1487 = vmatprep.mubr.bf16.mxu0 %v808
        %1488 = vmatmul.mubr.bf16.gmra.mrb[0].mxu0 %v807
        %v1489 = vpop.f32.mrb[0].mxu0
        %v1490 = vadd.f32 %v918, %v1489
        %v1491 = vpop.f32.mrb[0].mxu0
        %v1492 = vadd.f32 %v922, %v1491
        %v1493 = vpop.f32.mrb[0].mxu0
        %v1494 = vadd.f32 %v918, %v1493
        %v1495 = vpop.f32.mrb[0].mxu0
        %v1496 = vadd.f32 %v922, %v1495
        %1497 = vmatprep.mubr.bf16.mxu0 %v810
        %1498 = vmatmul.mubr.bf16.gmra.mrb[0].mxu0 %v809
        %v1499 = vpop.f32.mrb[0].mxu0
        %v1500 = vadd.f32 %v918, %v1499
        %v1501 = vpop.f32.mrb[0].mxu0
        %v1502 = vadd.f32 %v922, %v1501
        %v1503 = vpop.f32.mrb[0].mxu0
        %v1504 = vadd.f32 %v918, %v1503
        %v1505 = vpop.f32.mrb[0].mxu0
        %v1506 = vadd.f32 %v922, %v1505
        %1507 = vmatprep.mubr.bf16.mxu0 %v812
        %1508 = vmatmul.mubr.bf16.gmra.mrb[0].mxu0 %v811
        %v1509 = vpop.f32.mrb[0].mxu0
        %v1510 = vadd.f32 %v918, %v1509
        %v1511 = vpop.f32.mrb[0].mxu0
        %v1512 = vadd.f32 %v922, %v1511
        %v1513 = vpop.f32.mrb[0].mxu0
        %v1514 = vadd.f32 %v918, %v1513
        %v1515 = vpop.f32.mrb[0].mxu0
        %v1516 = vadd.f32 %v922, %v1515
        %1517 = vmatprep.mubr.bf16.mxu0 %v814
        %1518 = vmatmul.mubr.bf16.gmra.mrb[0].mxu0 %v813
        %v1519 = vpop.f32.mrb[0].mxu0
        %v1520 = vadd.f32 %v918, %v1519
        %v1521 = vpop.f32.mrb[0].mxu0
        %v1522 = vadd.f32 %v922, %v1521
        %v1523 = vpop.f32.mrb[0].mxu0
        %v1524 = vadd.f32 %v918, %v1523
        %v1525 = vpop.f32.mrb[0].mxu0
        %v1526 = vadd.f32 %v922, %v1525
        %1527 = vmatprep.mubr.bf16.mxu0 %v816
        %1528 = vmatmul.mubr.bf16.gmra.mrb[0].mxu0 %v815
        %v1529 = vpop.f32.mrb[0].mxu0
        %v1530 = vadd.f32 %v918, %v1529
        %v1531 = vpop.f32.mrb[0].mxu0
        %v1532 = vadd.f32 %v922, %v1531
        %v1533 = vpop.f32.mrb[0].mxu0
        %v1534 = vadd.f32 %v918, %v1533
        %v1535 = vpop.f32.mrb[0].mxu0
        %v1536 = vadd.f32 %v922, %v1535
        %1537 = vdwg.mxu0
        %1538 = vmatprep.subr.bf16.mxu0 %v1236
        %1539 = vmatpush1.bf16.msra.mxu0 %v1235
        %1540 = vmatprep.subr.bf16.mxu0 %v1242
        %1541 = vmatpush1.bf16.msra.mxu0 %v1241
        %1542 = vmatprep.subr.bf16.mxu0 %v1248
        %1543 = vmatpush1.bf16.msra.mxu0 %v1247
        %1544 = vmatprep.subr.bf16.mxu0 %v1254
        %1545 = vmatpush1.bf16.msra.mxu0 %v1253
        %1546 = vmatprep.subr.bf16.mxu0 %v1260
        %1547 = vmatpush1.bf16.msra.mxu0 %v1259
        %1548 = vmatprep.subr.bf16.mxu0 %v1266
        %1549 = vmatpush1.bf16.msra.mxu0 %v1265
        %1550 = vmatprep.subr.bf16.mxu0 %v1272
        %1551 = vmatpush1.bf16.msra.mxu0 %v1271
        %1552 = vmatprep.subr.bf16.mxu0 %v1278
        %1553 = vmatpush1.bf16.msra.mxu0 %v1277
        %1554 = vmatprep.subr.bf16.mxu0 %v1284
        %1555 = vmatpush1.bf16.msra.mxu0 %v1283
        %1556 = vmatprep.subr.bf16.mxu0 %v1290
        %1557 = vmatpush1.bf16.msra.mxu0 %v1289
        %1558 = vmatprep.subr.bf16.mxu0 %v1296
        %1559 = vmatpush1.bf16.msra.mxu0 %v1295
        %1560 = vmatprep.subr.bf16.mxu0 %v1302
        %1561 = vmatpush1.bf16.msra.mxu0 %v1301
        %1562 = vmatprep.subr.bf16.mxu0 %v1308
        %1563 = vmatpush1.bf16.msra.mxu0 %v1307
        %1564 = vmatprep.subr.bf16.mxu0 %v1314
        %1565 = vmatpush1.bf16.msra.mxu0 %v1313
        %1566 = vmatprep.subr.bf16.mxu0 %v1320
        %1567 = vmatpush1.bf16.msra.mxu0 %v1319
        %1568 = vmatprep.subr.bf16.mxu0 %v1326
        %1569 = vmatpush1.bf16.msra.mxu0 %v1325
        %1570 = vmatprep.mubr.bf16.mxu0 %v802
        %1571 = vmatmul.mubr.bf16.gmra.mrb[0].mxu0 %v801
        %v1572 = vpop.f32.mrb[0].mxu0
        %v1573 = vadd.f32 %v926, %v1572
        %v1574 = vpop.f32.mrb[0].mxu0
        %v1575 = vadd.f32 %v930, %v1574
        %v1576 = vpop.f32.mrb[0].mxu0
        %v1577 = vadd.f32 %v926, %v1576
        %v1578 = vpop.f32.mrb[0].mxu0
        %v1579 = vadd.f32 %v930, %v1578
        %1580 = vmatprep.mubr.bf16.mxu0 %v804
        %1581 = vmatmul.mubr.bf16.gmra.mrb[0].mxu0 %v803
        %v1582 = vpop.f32.mrb[0].mxu0
        %v1583 = vadd.f32 %v926, %v1582
        %v1584 = vpop.f32.mrb[0].mxu0
        %v1585 = vadd.f32 %v930, %v1584
        %v1586 = vpop.f32.mrb[0].mxu0
        %v1587 = vadd.f32 %v926, %v1586
        %v1588 = vpop.f32.mrb[0].mxu0
        %v1589 = vadd.f32 %v930, %v1588
        %1590 = vmatprep.mubr.bf16.mxu0 %v806
        %1591 = vmatmul.mubr.bf16.gmra.mrb[0].mxu0 %v805
        %v1592 = vpop.f32.mrb[0].mxu0
        %v1593 = vadd.f32 %v926, %v1592
        %v1594 = vpop.f32.mrb[0].mxu0
        %v1595 = vadd.f32 %v930, %v1594
        %v1596 = vpop.f32.mrb[0].mxu0
        %v1597 = vadd.f32 %v926, %v1596
        %v1598 = vpop.f32.mrb[0].mxu0
        %v1599 = vadd.f32 %v930, %v1598
        %1600 = vmatprep.mubr.bf16.mxu0 %v808
        %1601 = vmatmul.mubr.bf16.gmra.mrb[0].mxu0 %v807
        %v1602 = vpop.f32.mrb[0].mxu0
        %v1603 = vadd.f32 %v926, %v1602
        %v1604 = vpop.f32.mrb[0].mxu0
        %v1605 = vadd.f32 %v930, %v1604
        %v1606 = vpop.f32.mrb[0].mxu0
        %v1607 = vadd.f32 %v926, %v1606
        %v1608 = vpop.f32.mrb[0].mxu0
        %v1609 = vadd.f32 %v930, %v1608
        %1610 = vmatprep.mubr.bf16.mxu0 %v810
        %1611 = vmatmul.mubr.bf16.gmra.mrb[0].mxu0 %v809
        %v1612 = vpop.f32.mrb[0].mxu0
        %v1613 = vadd.f32 %v926, %v1612
        %v1614 = vpop.f32.mrb[0].mxu0
        %v1615 = vadd.f32 %v930, %v1614
        %v1616 = vpop.f32.mrb[0].mxu0
        %v1617 = vadd.f32 %v926, %v1616
        %v1618 = vpop.f32.mrb[0].mxu0
        %v1619 = vadd.f32 %v930, %v1618
        %1620 = vmatprep.mubr.bf16.mxu0 %v812
        %1621 = vmatmul.mubr.bf16.gmra.mrb[0].mxu0 %v811
        %v1622 = vpop.f32.mrb[0].mxu0
        %v1623 = vadd.f32 %v926, %v1622
        %v1624 = vpop.f32.mrb[0].mxu0
        %v1625 = vadd.f32 %v930, %v1624
        %v1626 = vpop.f32.mrb[0].mxu0
        %v1627 = vadd.f32 %v926, %v1626
        %v1628 = vpop.f32.mrb[0].mxu0
        %v1629 = vadd.f32 %v930, %v1628
        %1630 = vmatprep.mubr.bf16.mxu0 %v814
        %1631 = vmatmul.mubr.bf16.gmra.mrb[0].mxu0 %v813
        %v1632 = vpop.f32.mrb[0].mxu0
        %v1633 = vadd.f32 %v926, %v1632
        %v1634 = vpop.f32.mrb[0].mxu0
        %v1635 = vadd.f32 %v930, %v1634
        %v1636 = vpop.f32.mrb[0].mxu0
        %v1637 = vadd.f32 %v926, %v1636
        %v1638 = vpop.f32.mrb[0].mxu0
        %v1639 = vadd.f32 %v930, %v1638
        %1640 = vmatprep.mubr.bf16.mxu0 %v816
        %1641 = vmatmul.mubr.bf16.gmra.mrb[0].mxu0 %v815
        %v1642 = vpop.f32.mrb[0].mxu0
        %v1643 = vadd.f32 %v926, %v1642
        %v1644 = vpop.f32.mrb[0].mxu0
        %v1645 = vadd.f32 %v930, %v1644
        %v1646 = vpop.f32.mrb[0].mxu0
        %v1647 = vadd.f32 %v926, %v1646
        %v1648 = vpop.f32.mrb[0].mxu0
        %v1649 = vadd.f32 %v930, %v1648
        %1650 = vdwg.mxu0
        %1651 = vmatprep.subr.bf16.mxu0 %v1238
        %1652 = vmatpush1.bf16.msra.mxu0 %v1237
        %1653 = vmatprep.subr.bf16.mxu0 %v1244
        %1654 = vmatpush1.bf16.msra.mxu0 %v1243
        %1655 = vmatprep.subr.bf16.mxu0 %v1250
        %1656 = vmatpush1.bf16.msra.mxu0 %v1249
        %1657 = vmatprep.subr.bf16.mxu0 %v1256
        %1658 = vmatpush1.bf16.msra.mxu0 %v1255
        %1659 = vmatprep.subr.bf16.mxu0 %v1262
        %1660 = vmatpush1.bf16.msra.mxu0 %v1261
        %1661 = vmatprep.subr.bf16.mxu0 %v1268
        %1662 = vmatpush1.bf16.msra.mxu0 %v1267
        %1663 = vmatprep.subr.bf16.mxu0 %v1274
        %1664 = vmatpush1.bf16.msra.mxu0 %v1273
        %1665 = vmatprep.subr.bf16.mxu0 %v1280
        %1666 = vmatpush1.bf16.msra.mxu0 %v1279
        %1667 = vmatprep.subr.bf16.mxu0 %v1286
        %1668 = vmatpush1.bf16.msra.mxu0 %v1285
        %1669 = vmatprep.subr.bf16.mxu0 %v1292
        %1670 = vmatpush1.bf16.msra.mxu0 %v1291
        %1671 = vmatprep.subr.bf16.mxu0 %v1298
        %1672 = vmatpush1.bf16.msra.mxu0 %v1297
        %1673 = vmatprep.subr.bf16.mxu0 %v1304
        %1674 = vmatpush1.bf16.msra.mxu0 %v1303
        %1675 = vmatprep.subr.bf16.mxu0 %v1310
        %1676 = vmatpush1.bf16.msra.mxu0 %v1309
        %1677 = vmatprep.subr.bf16.mxu0 %v1316
        %1678 = vmatpush1.bf16.msra.mxu0 %v1315
        %1679 = vmatprep.subr.bf16.mxu0 %v1322
        %1680 = vmatpush1.bf16.msra.mxu0 %v1321
        %1681 = vmatprep.subr.bf16.mxu0 %v1328
        %1682 = vmatpush1.bf16.msra.mxu0 %v1327
        %1683 = vmatprep.mubr.bf16.mxu0 %v802
        %1684 = vmatmul.mubr.bf16.gmra.mrb[0].mxu0 %v801
        %v1685 = vpop.f32.mrb[0].mxu0
        %v1686 = vadd.f32 %v934, %v1685
        %v1687 = vpop.f32.mrb[0].mxu0
        %v1688 = vadd.f32 %v938, %v1687
        %v1689 = vpop.f32.mrb[0].mxu0
        %v1690 = vadd.f32 %v934, %v1689
        %v1691 = vpop.f32.mrb[0].mxu0
        %v1692 = vadd.f32 %v938, %v1691
        %1693 = vmatprep.mubr.bf16.mxu0 %v804
        %1694 = vmatmul.mubr.bf16.gmra.mrb[0].mxu0 %v803
        %v1695 = vpop.f32.mrb[0].mxu0
        %v1696 = vadd.f32 %v934, %v1695
        %v1697 = vpop.f32.mrb[0].mxu0
        %v1698 = vadd.f32 %v938, %v1697
        %v1699 = vpop.f32.mrb[0].mxu0
        %v1700 = vadd.f32 %v934, %v1699
        %v1701 = vpop.f32.mrb[0].mxu0
        %v1702 = vadd.f32 %v938, %v1701
        %1703 = vmatprep.mubr.bf16.mxu0 %v806
        %1704 = vmatmul.mubr.bf16.gmra.mrb[0].mxu0 %v805
        %v1705 = vpop.f32.mrb[0].mxu0
        %v1706 = vadd.f32 %v934, %v1705
        %v1707 = vpop.f32.mrb[0].mxu0
        %v1708 = vadd.f32 %v938, %v1707
        %v1709 = vpop.f32.mrb[0].mxu0
        %v1710 = vadd.f32 %v934, %v1709
        %v1711 = vpop.f32.mrb[0].mxu0
        %v1712 = vadd.f32 %v938, %v1711
        %1713 = vmatprep.mubr.bf16.mxu0 %v808
        %1714 = vmatmul.mubr.bf16.gmra.mrb[0].mxu0 %v807
        %v1715 = vpop.f32.mrb[0].mxu0
        %v1716 = vadd.f32 %v934, %v1715
        %v1717 = vpop.f32.mrb[0].mxu0
        %v1718 = vadd.f32 %v938, %v1717
        %v1719 = vpop.f32.mrb[0].mxu0
        %v1720 = vadd.f32 %v934, %v1719
        %v1721 = vpop.f32.mrb[0].mxu0
        %v1722 = vadd.f32 %v938, %v1721
        %1723 = vmatprep.mubr.bf16.mxu0 %v810
        %1724 = vmatmul.mubr.bf16.gmra.mrb[0].mxu0 %v809
        %v1725 = vpop.f32.mrb[0].mxu0
        %v1726 = vadd.f32 %v934, %v1725
        %v1727 = vpop.f32.mrb[0].mxu0
        %v1728 = vadd.f32 %v938, %v1727
        %v1729 = vpop.f32.mrb[0].mxu0
        %v1730 = vadd.f32 %v934, %v1729
        %v1731 = vpop.f32.mrb[0].mxu0
        %v1732 = vadd.f32 %v938, %v1731
        %1733 = vmatprep.mubr.bf16.mxu0 %v812
        %1734 = vmatmul.mubr.bf16.gmra.mrb[0].mxu0 %v811
        %v1735 = vpop.f32.mrb[0].mxu0
        %v1736 = vadd.f32 %v934, %v1735
        %v1737 = vpop.f32.mrb[0].mxu0
        %v1738 = vadd.f32 %v938, %v1737
        %v1739 = vpop.f32.mrb[0].mxu0
        %v1740 = vadd.f32 %v934, %v1739
        %v1741 = vpop.f32.mrb[0].mxu0
        %v1742 = vadd.f32 %v938, %v1741
        %1743 = vmatprep.mubr.bf16.mxu0 %v814
        %1744 = vmatmul.mubr.bf16.gmra.mrb[0].mxu0 %v813
        %v1745 = vpop.f32.mrb[0].mxu0
        %v1746 = vadd.f32 %v934, %v1745
        %v1747 = vpop.f32.mrb[0].mxu0
        %v1748 = vadd.f32 %v938, %v1747
        %v1749 = vpop.f32.mrb[0].mxu0
        %v1750 = vadd.f32 %v934, %v1749
        %v1751 = vpop.f32.mrb[0].mxu0
        %v1752 = vadd.f32 %v938, %v1751
        %1753 = vmatprep.mubr.bf16.mxu0 %v816
        %1754 = vmatmul.mubr.bf16.gmra.mrb[0].mxu0 %v815
        %v1755 = vpop.f32.mrb[0].mxu0
        %v1756 = vadd.f32 %v934, %v1755
        %v1757 = vpop.f32.mrb[0].mxu0
        %v1758 = vadd.f32 %v938, %v1757
        %v1759 = vpop.f32.mrb[0].mxu0
        %v1760 = vadd.f32 %v934, %v1759
        %v1761 = vpop.f32.mrb[0].mxu0
        %v1762 = vadd.f32 %v938, %v1761
        %1763 = vdwg.mxu0
        %v1764 = vpack.c.bf16 %v1464, %v1460
        %v1765 = vpack.c.bf16 %v1466, %v1462
        %v1766 = vpack.c.bf16 %v1474, %v1470
        %v1767 = vpack.c.bf16 %v1476, %v1472
        %v1768 = vpack.c.bf16 %v1484, %v1480
        %v1769 = vpack.c.bf16 %v1486, %v1482
        %v1770 = vpack.c.bf16 %v1494, %v1490
        %v1771 = vpack.c.bf16 %v1496, %v1492
        %v1772 = vpack.c.bf16 %v1504, %v1500
        %v1773 = vpack.c.bf16 %v1506, %v1502
        %v1774 = vpack.c.bf16 %v1514, %v1510
        %v1775 = vpack.c.bf16 %v1516, %v1512
        %v1776 = vpack.c.bf16 %v1524, %v1520
        %v1777 = vpack.c.bf16 %v1526, %v1522
        %v1778 = vpack.c.bf16 %v1534, %v1530
        %v1779 = vpack.c.bf16 %v1536, %v1532
        %v1780 = vpack.c.bf16 %v1577, %v1573
        %v1781 = vpack.c.bf16 %v1579, %v1575
        %v1782 = vpack.c.bf16 %v1587, %v1583
        %v1783 = vpack.c.bf16 %v1589, %v1585
        %v1784 = vpack.c.bf16 %v1597, %v1593
        %v1785 = vpack.c.bf16 %v1599, %v1595
        %v1786 = vpack.c.bf16 %v1607, %v1603
        %v1787 = vpack.c.bf16 %v1609, %v1605
        %v1788 = vpack.c.bf16 %v1617, %v1613
        %v1789 = vpack.c.bf16 %v1619, %v1615
        %v1790 = vpack.c.bf16 %v1627, %v1623
        %v1791 = vpack.c.bf16 %v1629, %v1625
        %v1792 = vpack.c.bf16 %v1637, %v1633
        %v1793 = vpack.c.bf16 %v1639, %v1635
        %v1794 = vpack.c.bf16 %v1647, %v1643
        %v1795 = vpack.c.bf16 %v1649, %v1645
        %v1796 = vpack.c.bf16 %v1690, %v1686
        %v1797 = vpack.c.bf16 %v1692, %v1688
        %v1798 = vpack.c.bf16 %v1700, %v1696
        %v1799 = vpack.c.bf16 %v1702, %v1698
        %v1800 = vpack.c.bf16 %v1710, %v1706
        %v1801 = vpack.c.bf16 %v1712, %v1708
        %v1802 = vpack.c.bf16 %v1720, %v1716
        %v1803 = vpack.c.bf16 %v1722, %v1718
        %v1804 = vpack.c.bf16 %v1730, %v1726
        %v1805 = vpack.c.bf16 %v1732, %v1728
        %v1806 = vpack.c.bf16 %v1740, %v1736
        %v1807 = vpack.c.bf16 %v1742, %v1738
        %v1808 = vpack.c.bf16 %v1750, %v1746
        %v1809 = vpack.c.bf16 %v1752, %v1748
        %v1810 = vpack.c.bf16 %v1760, %v1756
        %v1811 = vpack.c.bf16 %v1762, %v1758
        %1812 = vmatprep.subr.bf16.mxu0 0
        %1813 = vmatpush1.bf16.xpose.msra.mxu0 %v1780
        %1814 = vmatprep.subr.bf16.mxu0 0
        %1815 = vmatpush1.bf16.xpose.msra.mxu0 %v1782
        %1816 = vmatprep.subr.bf16.mxu0 0
        %1817 = vmatpush1.bf16.xpose.msra.mxu0 %v1784
        %1818 = vmatprep.subr.bf16.mxu0 0
        %1819 = vmatpush1.bf16.xpose.msra.mxu0 %v1786
        %1820 = vmatprep.subr.bf16.mxu0 0
        %1821 = vmatpush1.bf16.xpose.msra.mxu0 %v1788
        %1822 = vmatprep.subr.bf16.mxu0 0
        %1823 = vmatpush1.bf16.xpose.msra.mxu0 %v1790
        %1824 = vmatprep.subr.bf16.mxu0 0
        %1825 = vmatpush1.bf16.xpose.msra.mxu0 %v1792
        %1826 = vmatprep.subr.bf16.mxu0 0
        %1827 = vmatpush1.bf16.xpose.msra.mxu0 %v1794
        %1828 = vmatprep.subr.bf16.mxu0 0
        %1829 = vmatpush1.bf16.xpose.msra.mxu0 0
        %1830 = vmatprep.subr.bf16.mxu0 0
        %1831 = vmatpush1.bf16.xpose.msra.mxu0 0
        %1832 = vmatprep.subr.bf16.mxu0 0
        %1833 = vmatpush1.bf16.xpose.msra.mxu0 0
        %1834 = vmatprep.subr.bf16.mxu0 0
        %1835 = vmatpush1.bf16.xpose.msra.mxu0 0
        %1836 = vmatprep.subr.bf16.mxu0 0
        %1837 = vmatpush1.bf16.xpose.msra.mxu0 0
        %1838 = vmatprep.subr.bf16.mxu0 0
        %1839 = vmatpush1.bf16.xpose.msra.mxu0 0
        %1840 = vmatprep.subr.bf16.mxu0 0
        %1841 = vmatpush1.bf16.xpose.msra.mxu0 0
        %1842 = vmatprep.subr.bf16.mxu0 0
        %1843 = vmatpush1.bf16.xpose.msra.mxu0 0
        %1844 = vmatprep.mubr.bf16.mxu0 0
        %1845 = vmatmul.mubr.bf16.gmra.mrb[0].mxu0 %v1764
        %v1846 = vpop.f32.mrb[0].mxu0
        %v1847 = vadd.f32 %v785, %v1846
        %v1848 = vpop.f32.mrb[0].mxu0
        %v1849 = vpop.f32.mrb[0].mxu0
        %v1850 = vadd.f32 %v786, %v1849
        %v1851 = vpop.f32.mrb[0].mxu0
        %1852 = vmatprep.mubr.bf16.mxu0 0
        %1853 = vmatmul.mubr.bf16.gmra.mrb[0].mxu0 %v1766
        %v1854 = vpop.f32.mrb[0].mxu0
        %v1855 = vadd.f32 %v787, %v1854
        %v1856 = vpop.f32.mrb[0].mxu0
        %v1857 = vpop.f32.mrb[0].mxu0
        %v1858 = vadd.f32 %v788, %v1857
        %v1859 = vpop.f32.mrb[0].mxu0
        %1860 = vmatprep.mubr.bf16.mxu0 0
        %1861 = vmatmul.mubr.bf16.gmra.mrb[0].mxu0 %v1768
        %v1862 = vpop.f32.mrb[0].mxu0
        %v1863 = vadd.f32 %v789, %v1862
        %v1864 = vpop.f32.mrb[0].mxu0
        %v1865 = vpop.f32.mrb[0].mxu0
        %v1866 = vadd.f32 %v790, %v1865
        %v1867 = vpop.f32.mrb[0].mxu0
        %1868 = vmatprep.mubr.bf16.mxu0 0
        %1869 = vmatmul.mubr.bf16.gmra.mrb[0].mxu0 %v1770
        %v1870 = vpop.f32.mrb[0].mxu0
        %v1871 = vadd.f32 %v791, %v1870
        %v1872 = vpop.f32.mrb[0].mxu0
        %v1873 = vpop.f32.mrb[0].mxu0
        %v1874 = vadd.f32 %v792, %v1873
        %v1875 = vpop.f32.mrb[0].mxu0
        %1876 = vmatprep.mubr.bf16.mxu0 0
        %1877 = vmatmul.mubr.bf16.gmra.mrb[0].mxu0 %v1772
        %v1878 = vpop.f32.mrb[0].mxu0
        %v1879 = vadd.f32 %v793, %v1878
        %v1880 = vpop.f32.mrb[0].mxu0
        %v1881 = vpop.f32.mrb[0].mxu0
        %v1882 = vadd.f32 %v794, %v1881
        %v1883 = vpop.f32.mrb[0].mxu0
        %1884 = vmatprep.mubr.bf16.mxu0 0
        %1885 = vmatmul.mubr.bf16.gmra.mrb[0].mxu0 %v1774
        %v1886 = vpop.f32.mrb[0].mxu0
        %v1887 = vadd.f32 %v795, %v1886
        %v1888 = vpop.f32.mrb[0].mxu0
        %v1889 = vpop.f32.mrb[0].mxu0
        %v1890 = vadd.f32 %v796, %v1889
        %v1891 = vpop.f32.mrb[0].mxu0
        %1892 = vmatprep.mubr.bf16.mxu0 0
        %1893 = vmatmul.mubr.bf16.gmra.mrb[0].mxu0 %v1776
        %v1894 = vpop.f32.mrb[0].mxu0
        %v1895 = vadd.f32 %v797, %v1894
        %v1896 = vpop.f32.mrb[0].mxu0
        %v1897 = vpop.f32.mrb[0].mxu0
        %v1898 = vadd.f32 %v798, %v1897
        %v1899 = vpop.f32.mrb[0].mxu0
        %1900 = vmatprep.mubr.bf16.mxu0 0
        %1901 = vmatmul.mubr.bf16.gmra.mrb[0].mxu0 %v1778
        %v1902 = vpop.f32.mrb[0].mxu0
        %v1903 = vadd.f32 %v799, %v1902
        %v1904 = vpop.f32.mrb[0].mxu0
        %v1905 = vpop.f32.mrb[0].mxu0
        %v1906 = vadd.f32 %v800, %v1905
        %v1907 = vpop.f32.mrb[0].mxu0
        %1908 = vdwg.mxu0
        %1909 = vmax.xlane.f32.xlu0 %v1847
        %v1910 = vpop.xlane.xlu0 %1909
        %1911 = vmax.xlane.f32.xlu0 %v1850
        %v1912 = vpop.xlane.xlu0 %1911
        %1913 = vmax.xlane.f32.xlu0 %v1855
        %v1914 = vpop.xlane.xlu0 %1913
        %1915 = vmax.xlane.f32.xlu0 %v1858
        %v1916 = vpop.xlane.xlu0 %1915
        %1917 = vmax.xlane.f32.xlu0 %v1863
        %v1918 = vpop.xlane.xlu0 %1917
        %1919 = vmax.xlane.f32.xlu0 %v1866
        %v1920 = vpop.xlane.xlu0 %1919
        %1921 = vmax.xlane.f32.xlu0 %v1871
        %v1922 = vpop.xlane.xlu0 %1921
        %1923 = vmax.xlane.f32.xlu0 %v1874
        %v1924 = vpop.xlane.xlu0 %1923
        %1925 = vmax.xlane.f32.xlu0 %v1879
        %v1926 = vpop.xlane.xlu0 %1925
        %1927 = vmax.xlane.f32.xlu0 %v1882
        %v1928 = vpop.xlane.xlu0 %1927
        %1929 = vmax.xlane.f32.xlu0 %v1887
        %v1930 = vpop.xlane.xlu0 %1929
        %1931 = vmax.xlane.f32.xlu0 %v1890
        %v1932 = vpop.xlane.xlu0 %1931
        %1933 = vmax.xlane.f32.xlu0 %v1895
        %v1934 = vpop.xlane.xlu0 %1933
        %1935 = vmax.xlane.f32.xlu0 %v1898
        %v1936 = vpop.xlane.xlu0 %1935
        %1937 = vmax.xlane.f32.xlu0 %v1903
        %v1938 = vpop.xlane.xlu0 %1937
        %1939 = vmax.xlane.f32.xlu0 %v1906
        %v1940 = vpop.xlane.xlu0 %1939
        %v1941 = vsub.f32 %v1847, %v1910
        %v1942 = vsub.f32 %v1850, %v1912
        %v1943 = vsub.f32 %v1855, %v1914
        %v1944 = vsub.f32 %v1858, %v1916
        %v1945 = vsub.f32 %v1863, %v1918
        %v1946 = vsub.f32 %v1866, %v1920
        %v1947 = vsub.f32 %v1871, %v1922
        %v1948 = vsub.f32 %v1874, %v1924
        %v1949 = vsub.f32 %v1879, %v1926
        %v1950 = vsub.f32 %v1882, %v1928
        %v1951 = vsub.f32 %v1887, %v1930
        %v1952 = vsub.f32 %v1890, %v1932
        %v1953 = vsub.f32 %v1895, %v1934
        %v1954 = vsub.f32 %v1898, %v1936
        %v1955 = vsub.f32 %v1903, %v1938
        %v1956 = vsub.f32 %v1906, %v1940
        %v1957 = vmul.f32 %v1941, 1.442695
        %v1958 = vpow.pop %v1957
        %v1959 = vmul.f32 %v1942, 1.442695
        %v1960 = vpow.pop %v1959
        %v1961 = vmul.f32 %v1943, 1.442695
        %v1962 = vpow.pop %v1961
        %v1963 = vmul.f32 %v1944, 1.442695
        %v1964 = vpow.pop %v1963
        %v1965 = vmul.f32 %v1945, 1.442695
        %v1966 = vpow.pop %v1965
        %v1967 = vmul.f32 %v1946, 1.442695
        %v1968 = vpow.pop %v1967
        %v1969 = vmul.f32 %v1947, 1.442695
        %v1970 = vpow.pop %v1969
        %v1971 = vmul.f32 %v1948, 1.442695
        %v1972 = vpow.pop %v1971
        %v1973 = vmul.f32 %v1949, 1.442695
        %v1974 = vpow.pop %v1973
        %v1975 = vmul.f32 %v1950, 1.442695
        %v1976 = vpow.pop %v1975
        %v1977 = vmul.f32 %v1951, 1.442695
        %v1978 = vpow.pop %v1977
        %v1979 = vmul.f32 %v1952, 1.442695
        %v1980 = vpow.pop %v1979
        %v1981 = vmul.f32 %v1953, 1.442695
        %v1982 = vpow.pop %v1981
        %v1983 = vmul.f32 %v1954, 1.442695
        %v1984 = vpow.pop %v1983
        %v1985 = vmul.f32 %v1955, 1.442695
        %v1986 = vpow.pop %v1985
        %v1987 = vmul.f32 %v1956, 1.442695
        %v1988 = vpow.pop %v1987
        %1989 = vadd.xlane.f32.xlu0 %v1958
        %v1990 = vpop.xlane.xlu0 %1989
        %1991 = vadd.xlane.f32.xlu0 %v1960
        %v1992 = vpop.xlane.xlu0 %1991
        %1993 = vadd.xlane.f32.xlu0 %v1962
        %v1994 = vpop.xlane.xlu0 %1993
        %1995 = vadd.xlane.f32.xlu0 %v1964
        %v1996 = vpop.xlane.xlu0 %1995
        %1997 = vadd.xlane.f32.xlu0 %v1966
        %v1998 = vpop.xlane.xlu0 %1997
        %1999 = vadd.xlane.f32.xlu0 %v1968
        %v2000 = vpop.xlane.xlu0 %1999
        %2001 = vadd.xlane.f32.xlu0 %v1970
        %v2002 = vpop.xlane.xlu0 %2001
        %2003 = vadd.xlane.f32.xlu0 %v1972
        %v2004 = vpop.xlane.xlu0 %2003
        %2005 = vadd.xlane.f32.xlu0 %v1974
        %v2006 = vpop.xlane.xlu0 %2005
        %2007 = vadd.xlane.f32.xlu0 %v1976
        %v2008 = vpop.xlane.xlu0 %2007
        %2009 = vadd.xlane.f32.xlu0 %v1978
        %v2010 = vpop.xlane.xlu0 %2009
        %2011 = vadd.xlane.f32.xlu0 %v1980
        %v2012 = vpop.xlane.xlu0 %2011
        %2013 = vadd.xlane.f32.xlu0 %v1982
        %v2014 = vpop.xlane.xlu0 %2013
        %2015 = vadd.xlane.f32.xlu0 %v1984
        %v2016 = vpop.xlane.xlu0 %2015
        %2017 = vadd.xlane.f32.xlu0 %v1986
        %v2018 = vpop.xlane.xlu0 %2017
        %2019 = vadd.xlane.f32.xlu0 %v1988
        %v2020 = vpop.xlane.xlu0 %2019
        %v2021 = vrcp.pop %v1990
        %v2022 = vrcp.pop %v1992
        %v2023 = vrcp.pop %v1994
        %v2024 = vrcp.pop %v1996
        %v2025 = vrcp.pop %v1998
        %v2026 = vrcp.pop %v2000
        %v2027 = vrcp.pop %v2002
        %v2028 = vrcp.pop %v2004
        %v2029 = vrcp.pop %v2006
        %v2030 = vrcp.pop %v2008
        %v2031 = vrcp.pop %v2010
        %v2032 = vrcp.pop %v2012
        %v2033 = vrcp.pop %v2014
        %v2034 = vrcp.pop %v2016
        %v2035 = vrcp.pop %v2018
        %v2036 = vrcp.pop %v2020
        %v2037 = vmul.f32 %v1958, %v2021
        %v2038 = vmul.f32 %v1960, %v2022
        %v2039 = vmul.f32 %v1962, %v2023
        %v2040 = vmul.f32 %v1964, %v2024
        %v2041 = vmul.f32 %v1966, %v2025
        %v2042 = vmul.f32 %v1968, %v2026
        %v2043 = vmul.f32 %v1970, %v2027
        %v2044 = vmul.f32 %v1972, %v2028
        %v2045 = vmul.f32 %v1974, %v2029
        %v2046 = vmul.f32 %v1976, %v2030
        %v2047 = vmul.f32 %v1978, %v2031
        %v2048 = vmul.f32 %v1980, %v2032
        %v2049 = vmul.f32 %v1982, %v2033
        %v2050 = vmul.f32 %v1984, %v2034
        %v2051 = vmul.f32 %v1986, %v2035
        %v2052 = vmul.f32 %v1988, %v2036
        %v2053 = vpack.c.bf16 %v2038, %v2037
        %v2054 = vpack.c.bf16 %v2040, %v2039
        %v2055 = vpack.c.bf16 %v2042, %v2041
        %v2056 = vpack.c.bf16 %v2044, %v2043
        %v2057 = vpack.c.bf16 %v2046, %v2045
        %v2058 = vpack.c.bf16 %v2048, %v2047
        %v2059 = vpack.c.bf16 %v2050, %v2049
        %v2060 = vpack.c.bf16 %v2052, %v2051
        %2061 = vmatprep.subr.bf16.mxu0 0
        %2062 = vmatpush1.bf16.msra.mxu0 %v1796
        %2063 = vmatprep.subr.bf16.mxu0 0
        %2064 = vmatpush1.bf16.msra.mxu0 %v1798
        %2065 = vmatprep.subr.bf16.mxu0 0
        %2066 = vmatpush1.bf16.msra.mxu0 %v1800
        %2067 = vmatprep.subr.bf16.mxu0 0
        %2068 = vmatpush1.bf16.msra.mxu0 %v1802
        %2069 = vmatprep.subr.bf16.mxu0 0
        %2070 = vmatpush1.bf16.msra.mxu0 %v1804
        %2071 = vmatprep.subr.bf16.mxu0 0
        %2072 = vmatpush1.bf16.msra.mxu0 %v1806
        %2073 = vmatprep.subr.bf16.mxu0 0
        %2074 = vmatpush1.bf16.msra.mxu0 %v1808
        %2075 = vmatprep.subr.bf16.mxu0 0
        %2076 = vmatpush1.bf16.msra.mxu0 %v1810
        %2077 = vmatprep.subr.bf16.mxu0 0
        %2078 = vmatpush1.bf16.msra.mxu0 0
        %2079 = vmatprep.subr.bf16.mxu0 0
        %2080 = vmatpush1.bf16.msra.mxu0 0
        %2081 = vmatprep.subr.bf16.mxu0 0
        %2082 = vmatpush1.bf16.msra.mxu0 0
        %2083 = vmatprep.subr.bf16.mxu0 0
        %2084 = vmatpush1.bf16.msra.mxu0 0
        %2085 = vmatprep.subr.bf16.mxu0 0
        %2086 = vmatpush1.bf16.msra.mxu0 0
        %2087 = vmatprep.subr.bf16.mxu0 0
        %2088 = vmatpush1.bf16.msra.mxu0 0
        %2089 = vmatprep.subr.bf16.mxu0 0
        %2090 = vmatpush1.bf16.msra.mxu0 0
        %2091 = vmatprep.subr.bf16.mxu0 0
        %2092 = vmatpush1.bf16.msra.mxu0 0
        %2093 = vmatprep.mubr.bf16.mxu0 0
        %2094 = vmatmul.mubr.bf16.gmra.mrb[0].mxu0 %v2053
        %v2095 = vpop.f32.mrb[0].mxu0
        %v2096 = vadd.f32 0.0, %v2095
        %v2097 = vpop.f32.mrb[0].mxu0
        %v2098 = vpop.f32.mrb[0].mxu0
        %v2099 = vadd.f32 0.0, %v2098
        %v2100 = vpop.f32.mrb[0].mxu0
        %2101 = vmatprep.mubr.bf16.mxu0 0
        %2102 = vmatmul.mubr.bf16.gmra.mrb[0].mxu0 %v2054
        %v2103 = vpop.f32.mrb[0].mxu0
        %v2104 = vadd.f32 0.0, %v2103
        %v2105 = vpop.f32.mrb[0].mxu0
        %v2106 = vpop.f32.mrb[0].mxu0
        %v2107 = vadd.f32 0.0, %v2106
        %v2108 = vpop.f32.mrb[0].mxu0
        %2109 = vmatprep.mubr.bf16.mxu0 0
        %2110 = vmatmul.mubr.bf16.gmra.mrb[0].mxu0 %v2055
        %v2111 = vpop.f32.mrb[0].mxu0
        %v2112 = vadd.f32 0.0, %v2111
        %v2113 = vpop.f32.mrb[0].mxu0
        %v2114 = vpop.f32.mrb[0].mxu0
        %v2115 = vadd.f32 0.0, %v2114
        %v2116 = vpop.f32.mrb[0].mxu0
        %2117 = vmatprep.mubr.bf16.mxu0 0
        %2118 = vmatmul.mubr.bf16.gmra.mrb[0].mxu0 %v2056
        %v2119 = vpop.f32.mrb[0].mxu0
        %v2120 = vadd.f32 0.0, %v2119
        %v2121 = vpop.f32.mrb[0].mxu0
        %v2122 = vpop.f32.mrb[0].mxu0
        %v2123 = vadd.f32 0.0, %v2122
        %v2124 = vpop.f32.mrb[0].mxu0
        %2125 = vmatprep.mubr.bf16.mxu0 0
        %2126 = vmatmul.mubr.bf16.gmra.mrb[0].mxu0 %v2057
        %v2127 = vpop.f32.mrb[0].mxu0
        %v2128 = vadd.f32 0.0, %v2127
        %v2129 = vpop.f32.mrb[0].mxu0
        %v2130 = vpop.f32.mrb[0].mxu0
        %v2131 = vadd.f32 0.0, %v2130
        %v2132 = vpop.f32.mrb[0].mxu0
        %2133 = vmatprep.mubr.bf16.mxu0 0
        %2134 = vmatmul.mubr.bf16.gmra.mrb[0].mxu0 %v2058
        %v2135 = vpop.f32.mrb[0].mxu0
        %v2136 = vadd.f32 0.0, %v2135
        %v2137 = vpop.f32.mrb[0].mxu0
        %v2138 = vpop.f32.mrb[0].mxu0
        %v2139 = vadd.f32 0.0, %v2138
        %v2140 = vpop.f32.mrb[0].mxu0
        %2141 = vmatprep.mubr.bf16.mxu0 0
        %2142 = vmatmul.mubr.bf16.gmra.mrb[0].mxu0 %v2059
        %v2143 = vpop.f32.mrb[0].mxu0
        %v2144 = vadd.f32 0.0, %v2143
        %v2145 = vpop.f32.mrb[0].mxu0
        %v2146 = vpop.f32.mrb[0].mxu0
        %v2147 = vadd.f32 0.0, %v2146
        %v2148 = vpop.f32.mrb[0].mxu0
        %2149 = vmatprep.mubr.bf16.mxu0 0
        %2150 = vmatmul.mubr.bf16.gmra.mrb[0].mxu0 %v2060
        %v2151 = vpop.f32.mrb[0].mxu0
        %v2152 = vadd.f32 0.0, %v2151
        %v2153 = vpop.f32.mrb[0].mxu0
        %v2154 = vpop.f32.mrb[0].mxu0
        %v2155 = vadd.f32 0.0, %v2154
        %v2156 = vpop.f32.mrb[0].mxu0
        %2157 = vdwg.mxu0
        %2158 = vmatprep.subr.bf16.mxu0 0
        %2159 = vmatpush1.bf16.xpose.msra.mxu0 %v1781
        %2160 = vmatprep.subr.bf16.mxu0 0
        %2161 = vmatpush1.bf16.xpose.msra.mxu0 %v1783
        %2162 = vmatprep.subr.bf16.mxu0 0
        %2163 = vmatpush1.bf16.xpose.msra.mxu0 %v1785
        %2164 = vmatprep.subr.bf16.mxu0 0
        %2165 = vmatpush1.bf16.xpose.msra.mxu0 %v1787
        %2166 = vmatprep.subr.bf16.mxu0 0
        %2167 = vmatpush1.bf16.xpose.msra.mxu0 %v1789
        %2168 = vmatprep.subr.bf16.mxu0 0
        %2169 = vmatpush1.bf16.xpose.msra.mxu0 %v1791
        %2170 = vmatprep.subr.bf16.mxu0 0
        %2171 = vmatpush1.bf16.xpose.msra.mxu0 %v1793
        %2172 = vmatprep.subr.bf16.mxu0 0
        %2173 = vmatpush1.bf16.xpose.msra.mxu0 %v1795
        %2174 = vmatprep.subr.bf16.mxu0 0
        %2175 = vmatpush1.bf16.xpose.msra.mxu0 0
        %2176 = vmatprep.subr.bf16.mxu0 0
        %2177 = vmatpush1.bf16.xpose.msra.mxu0 0
        %2178 = vmatprep.subr.bf16.mxu0 0
        %2179 = vmatpush1.bf16.xpose.msra.mxu0 0
        %2180 = vmatprep.subr.bf16.mxu0 0
        %2181 = vmatpush1.bf16.xpose.msra.mxu0 0
        %2182 = vmatprep.subr.bf16.mxu0 0
        %2183 = vmatpush1.bf16.xpose.msra.mxu0 0
        %2184 = vmatprep.subr.bf16.mxu0 0
        %2185 = vmatpush1.bf16.xpose.msra.mxu0 0
        %2186 = vmatprep.subr.bf16.mxu0 0
        %2187 = vmatpush1.bf16.xpose.msra.mxu0 0
        %2188 = vmatprep.subr.bf16.mxu0 0
        %2189 = vmatpush1.bf16.xpose.msra.mxu0 0
        %2190 = vmatprep.mubr.bf16.mxu0 0
        %2191 = vmatmul.mubr.bf16.gmra.mrb[0].mxu0 %v1765
        %v2192 = vpop.f32.mrb[0].mxu0
        %v2193 = vadd.f32 %v785, %v2192
        %v2194 = vpop.f32.mrb[0].mxu0
        %v2195 = vpop.f32.mrb[0].mxu0
        %v2196 = vadd.f32 %v786, %v2195
        %v2197 = vpop.f32.mrb[0].mxu0
        %2198 = vmatprep.mubr.bf16.mxu0 0
        %2199 = vmatmul.mubr.bf16.gmra.mrb[0].mxu0 %v1767
        %v2200 = vpop.f32.mrb[0].mxu0
        %v2201 = vadd.f32 %v787, %v2200
        %v2202 = vpop.f32.mrb[0].mxu0
        %v2203 = vpop.f32.mrb[0].mxu0
        %v2204 = vadd.f32 %v788, %v2203
        %v2205 = vpop.f32.mrb[0].mxu0
        %2206 = vmatprep.mubr.bf16.mxu0 0
        %2207 = vmatmul.mubr.bf16.gmra.mrb[0].mxu0 %v1769
        %v2208 = vpop.f32.mrb[0].mxu0
        %v2209 = vadd.f32 %v789, %v2208
        %v2210 = vpop.f32.mrb[0].mxu0
        %v2211 = vpop.f32.mrb[0].mxu0
        %v2212 = vadd.f32 %v790, %v2211
        %v2213 = vpop.f32.mrb[0].mxu0
        %2214 = vmatprep.mubr.bf16.mxu0 0
        %2215 = vmatmul.mubr.bf16.gmra.mrb[0].mxu0 %v1771
        %v2216 = vpop.f32.mrb[0].mxu0
        %v2217 = vadd.f32 %v791, %v2216
        %v2218 = vpop.f32.mrb[0].mxu0
        %v2219 = vpop.f32.mrb[0].mxu0
        %v2220 = vadd.f32 %v792, %v2219
        %v2221 = vpop.f32.mrb[0].mxu0
        %2222 = vmatprep.mubr.bf16.mxu0 0
        %2223 = vmatmul.mubr.bf16.gmra.mrb[0].mxu0 %v1773
        %v2224 = vpop.f32.mrb[0].mxu0
        %v2225 = vadd.f32 %v793, %v2224
        %v2226 = vpop.f32.mrb[0].mxu0
        %v2227 = vpop.f32.mrb[0].mxu0
        %v2228 = vadd.f32 %v794, %v2227
        %v2229 = vpop.f32.mrb[0].mxu0
        %2230 = vmatprep.mubr.bf16.mxu0 0
        %2231 = vmatmul.mubr.bf16.gmra.mrb[0].mxu0 %v1775
        %v2232 = vpop.f32.mrb[0].mxu0
        %v2233 = vadd.f32 %v795, %v2232
        %v2234 = vpop.f32.mrb[0].mxu0
        %v2235 = vpop.f32.mrb[0].mxu0
        %v2236 = vadd.f32 %v796, %v2235
        %v2237 = vpop.f32.mrb[0].mxu0
        %2238 = vmatprep.mubr.bf16.mxu0 0
        %2239 = vmatmul.mubr.bf16.gmra.mrb[0].mxu0 %v1777
        %v2240 = vpop.f32.mrb[0].mxu0
        %v2241 = vadd.f32 %v797, %v2240
        %v2242 = vpop.f32.mrb[0].mxu0
        %v2243 = vpop.f32.mrb[0].mxu0
        %v2244 = vadd.f32 %v798, %v2243
        %v2245 = vpop.f32.mrb[0].mxu0
        %2246 = vmatprep.mubr.bf16.mxu0 0
        %2247 = vmatmul.mubr.bf16.gmra.mrb[0].mxu0 %v1779
        %v2248 = vpop.f32.mrb[0].mxu0
        %v2249 = vadd.f32 %v799, %v2248
        %v2250 = vpop.f32.mrb[0].mxu0
        %v2251 = vpop.f32.mrb[0].mxu0
        %v2252 = vadd.f32 %v800, %v2251
        %v2253 = vpop.f32.mrb[0].mxu0
        %2254 = vdwg.mxu0
        %2255 = vmax.xlane.f32.xlu0 %v2193
        %v2256 = vpop.xlane.xlu0 %2255
        %2257 = vmax.xlane.f32.xlu0 %v2196
        %v2258 = vpop.xlane.xlu0 %2257
        %2259 = vmax.xlane.f32.xlu0 %v2201
        %v2260 = vpop.xlane.xlu0 %2259
        %2261 = vmax.xlane.f32.xlu0 %v2204
        %v2262 = vpop.xlane.xlu0 %2261
        %2263 = vmax.xlane.f32.xlu0 %v2209
        %v2264 = vpop.xlane.xlu0 %2263
        %2265 = vmax.xlane.f32.xlu0 %v2212
        %v2266 = vpop.xlane.xlu0 %2265
        %2267 = vmax.xlane.f32.xlu0 %v2217
        %v2268 = vpop.xlane.xlu0 %2267
        %2269 = vmax.xlane.f32.xlu0 %v2220
        %v2270 = vpop.xlane.xlu0 %2269
        %2271 = vmax.xlane.f32.xlu0 %v2225
        %v2272 = vpop.xlane.xlu0 %2271
        %2273 = vmax.xlane.f32.xlu0 %v2228
        %v2274 = vpop.xlane.xlu0 %2273
        %2275 = vmax.xlane.f32.xlu0 %v2233
        %v2276 = vpop.xlane.xlu0 %2275
        %2277 = vmax.xlane.f32.xlu0 %v2236
        %v2278 = vpop.xlane.xlu0 %2277
        %2279 = vmax.xlane.f32.xlu0 %v2241
        %v2280 = vpop.xlane.xlu0 %2279
        %2281 = vmax.xlane.f32.xlu0 %v2244
        %v2282 = vpop.xlane.xlu0 %2281
        %2283 = vmax.xlane.f32.xlu0 %v2249
        %v2284 = vpop.xlane.xlu0 %2283
        %2285 = vmax.xlane.f32.xlu0 %v2252
        %v2286 = vpop.xlane.xlu0 %2285
        %v2287 = vsub.f32 %v2193, %v2256
        %v2288 = vsub.f32 %v2196, %v2258
        %v2289 = vsub.f32 %v2201, %v2260
        %v2290 = vsub.f32 %v2204, %v2262
        %v2291 = vsub.f32 %v2209, %v2264
        %v2292 = vsub.f32 %v2212, %v2266
        %v2293 = vsub.f32 %v2217, %v2268
        %v2294 = vsub.f32 %v2220, %v2270
        %v2295 = vsub.f32 %v2225, %v2272
        %v2296 = vsub.f32 %v2228, %v2274
        %v2297 = vsub.f32 %v2233, %v2276
        %v2298 = vsub.f32 %v2236, %v2278
        %v2299 = vsub.f32 %v2241, %v2280
        %v2300 = vsub.f32 %v2244, %v2282
        %v2301 = vsub.f32 %v2249, %v2284
        %v2302 = vsub.f32 %v2252, %v2286
        %v2303 = vmul.f32 %v2287, 1.442695
        %v2304 = vpow.pop %v2303
        %v2305 = vmul.f32 %v2288, 1.442695
        %v2306 = vpow.pop %v2305
        %v2307 = vmul.f32 %v2289, 1.442695
        %v2308 = vpow.pop %v2307
        %v2309 = vmul.f32 %v2290, 1.442695
        %v2310 = vpow.pop %v2309
        %v2311 = vmul.f32 %v2291, 1.442695
        %v2312 = vpow.pop %v2311
        %v2313 = vmul.f32 %v2292, 1.442695
        %v2314 = vpow.pop %v2313
        %v2315 = vmul.f32 %v2293, 1.442695
        %v2316 = vpow.pop %v2315
        %v2317 = vmul.f32 %v2294, 1.442695
        %v2318 = vpow.pop %v2317
        %v2319 = vmul.f32 %v2295, 1.442695
        %v2320 = vpow.pop %v2319
        %v2321 = vmul.f32 %v2296, 1.442695
        %v2322 = vpow.pop %v2321
        %v2323 = vmul.f32 %v2297, 1.442695
        %v2324 = vpow.pop %v2323
        %v2325 = vmul.f32 %v2298, 1.442695
        %v2326 = vpow.pop %v2325
        %v2327 = vmul.f32 %v2299, 1.442695
        %v2328 = vpow.pop %v2327
        %v2329 = vmul.f32 %v2300, 1.442695
        %v2330 = vpow.pop %v2329
        %v2331 = vmul.f32 %v2301, 1.442695
        %v2332 = vpow.pop %v2331
        %v2333 = vmul.f32 %v2302, 1.442695
        %v2334 = vpow.pop %v2333
        %2335 = vadd.xlane.f32.xlu0 %v2304
        %v2336 = vpop.xlane.xlu0 %2335
        %2337 = vadd.xlane.f32.xlu0 %v2306
        %v2338 = vpop.xlane.xlu0 %2337
        %2339 = vadd.xlane.f32.xlu0 %v2308
        %v2340 = vpop.xlane.xlu0 %2339
        %2341 = vadd.xlane.f32.xlu0 %v2310
        %v2342 = vpop.xlane.xlu0 %2341
        %2343 = vadd.xlane.f32.xlu0 %v2312
        %v2344 = vpop.xlane.xlu0 %2343
        %2345 = vadd.xlane.f32.xlu0 %v2314
        %v2346 = vpop.xlane.xlu0 %2345
        %2347 = vadd.xlane.f32.xlu0 %v2316
        %v2348 = vpop.xlane.xlu0 %2347
        %2349 = vadd.xlane.f32.xlu0 %v2318
        %v2350 = vpop.xlane.xlu0 %2349
        %2351 = vadd.xlane.f32.xlu0 %v2320
        %v2352 = vpop.xlane.xlu0 %2351
        %2353 = vadd.xlane.f32.xlu0 %v2322
        %v2354 = vpop.xlane.xlu0 %2353
        %2355 = vadd.xlane.f32.xlu0 %v2324
        %v2356 = vpop.xlane.xlu0 %2355
        %2357 = vadd.xlane.f32.xlu0 %v2326
        %v2358 = vpop.xlane.xlu0 %2357
        %2359 = vadd.xlane.f32.xlu0 %v2328
        %v2360 = vpop.xlane.xlu0 %2359
        %2361 = vadd.xlane.f32.xlu0 %v2330
        %v2362 = vpop.xlane.xlu0 %2361
        %2363 = vadd.xlane.f32.xlu0 %v2332
        %v2364 = vpop.xlane.xlu0 %2363
        %2365 = vadd.xlane.f32.xlu0 %v2334
        %v2366 = vpop.xlane.xlu0 %2365
        %v2367 = vrcp.pop %v2336
        %v2368 = vrcp.pop %v2338
        %v2369 = vrcp.pop %v2340
        %v2370 = vrcp.pop %v2342
        %v2371 = vrcp.pop %v2344
        %v2372 = vrcp.pop %v2346
        %v2373 = vrcp.pop %v2348
        %v2374 = vrcp.pop %v2350
        %v2375 = vrcp.pop %v2352
        %v2376 = vrcp.pop %v2354
        %v2377 = vrcp.pop %v2356
        %v2378 = vrcp.pop %v2358
        %v2379 = vrcp.pop %v2360
        %v2380 = vrcp.pop %v2362
        %v2381 = vrcp.pop %v2364
        %v2382 = vrcp.pop %v2366
        %v2383 = vmul.f32 %v2304, %v2367
        %v2384 = vmul.f32 %v2306, %v2368
        %v2385 = vmul.f32 %v2308, %v2369
        %v2386 = vmul.f32 %v2310, %v2370
        %v2387 = vmul.f32 %v2312, %v2371
        %v2388 = vmul.f32 %v2314, %v2372
        %v2389 = vmul.f32 %v2316, %v2373
        %v2390 = vmul.f32 %v2318, %v2374
        %v2391 = vmul.f32 %v2320, %v2375
        %v2392 = vmul.f32 %v2322, %v2376
        %v2393 = vmul.f32 %v2324, %v2377
        %v2394 = vmul.f32 %v2326, %v2378
        %v2395 = vmul.f32 %v2328, %v2379
        %v2396 = vmul.f32 %v2330, %v2380
        %v2397 = vmul.f32 %v2332, %v2381
        %v2398 = vmul.f32 %v2334, %v2382
        %v2399 = vpack.c.bf16 %v2384, %v2383
        %v2400 = vpack.c.bf16 %v2386, %v2385
        %v2401 = vpack.c.bf16 %v2388, %v2387
        %v2402 = vpack.c.bf16 %v2390, %v2389
        %v2403 = vpack.c.bf16 %v2392, %v2391
        %v2404 = vpack.c.bf16 %v2394, %v2393
        %v2405 = vpack.c.bf16 %v2396, %v2395
        %v2406 = vpack.c.bf16 %v2398, %v2397
        %2407 = vmatprep.subr.bf16.mxu0 0
        %2408 = vmatpush1.bf16.msra.mxu0 %v1797
        %2409 = vmatprep.subr.bf16.mxu0 0
        %2410 = vmatpush1.bf16.msra.mxu0 %v1799
        %2411 = vmatprep.subr.bf16.mxu0 0
        %2412 = vmatpush1.bf16.msra.mxu0 %v1801
        %2413 = vmatprep.subr.bf16.mxu0 0
        %2414 = vmatpush1.bf16.msra.mxu0 %v1803
        %2415 = vmatprep.subr.bf16.mxu0 0
        %2416 = vmatpush1.bf16.msra.mxu0 %v1805
        %2417 = vmatprep.subr.bf16.mxu0 0
        %2418 = vmatpush1.bf16.msra.mxu0 %v1807
        %2419 = vmatprep.subr.bf16.mxu0 0
        %2420 = vmatpush1.bf16.msra.mxu0 %v1809
        %2421 = vmatprep.subr.bf16.mxu0 0
        %2422 = vmatpush1.bf16.msra.mxu0 %v1811
        %2423 = vmatprep.subr.bf16.mxu0 0
        %2424 = vmatpush1.bf16.msra.mxu0 0
        %2425 = vmatprep.subr.bf16.mxu0 0
        %2426 = vmatpush1.bf16.msra.mxu0 0
        %2427 = vmatprep.subr.bf16.mxu0 0
        %2428 = vmatpush1.bf16.msra.mxu0 0
        %2429 = vmatprep.subr.bf16.mxu0 0
        %2430 = vmatpush1.bf16.msra.mxu0 0
        %2431 = vmatprep.subr.bf16.mxu0 0
        %2432 = vmatpush1.bf16.msra.mxu0 0
        %2433 = vmatprep.subr.bf16.mxu0 0
        %2434 = vmatpush1.bf16.msra.mxu0 0
        %2435 = vmatprep.subr.bf16.mxu0 0
        %2436 = vmatpush1.bf16.msra.mxu0 0
        %2437 = vmatprep.subr.bf16.mxu0 0
        %2438 = vmatpush1.bf16.msra.mxu0 0
        %2439 = vmatprep.mubr.bf16.mxu0 0
        %2440 = vmatmul.mubr.bf16.gmra.mrb[0].mxu0 %v2399
        %v2441 = vpop.f32.mrb[0].mxu0
        %v2442 = vadd.f32 0.0, %v2441
        %v2443 = vpop.f32.mrb[0].mxu0
        %v2444 = vpop.f32.mrb[0].mxu0
        %v2445 = vadd.f32 0.0, %v2444
        %v2446 = vpop.f32.mrb[0].mxu0
        %2447 = vmatprep.mubr.bf16.mxu0 0
        %2448 = vmatmul.mubr.bf16.gmra.mrb[0].mxu0 %v2400
        %v2449 = vpop.f32.mrb[0].mxu0
        %v2450 = vadd.f32 0.0, %v2449
        %v2451 = vpop.f32.mrb[0].mxu0
        %v2452 = vpop.f32.mrb[0].mxu0
        %v2453 = vadd.f32 0.0, %v2452
        %v2454 = vpop.f32.mrb[0].mxu0
        %2455 = vmatprep.mubr.bf16.mxu0 0
        %2456 = vmatmul.mubr.bf16.gmra.mrb[0].mxu0 %v2401
        %v2457 = vpop.f32.mrb[0].mxu0
        %v2458 = vadd.f32 0.0, %v2457
        %v2459 = vpop.f32.mrb[0].mxu0
        %v2460 = vpop.f32.mrb[0].mxu0
        %v2461 = vadd.f32 0.0, %v2460
        %v2462 = vpop.f32.mrb[0].mxu0
        %2463 = vmatprep.mubr.bf16.mxu0 0
        %2464 = vmatmul.mubr.bf16.gmra.mrb[0].mxu0 %v2402
        %v2465 = vpop.f32.mrb[0].mxu0
        %v2466 = vadd.f32 0.0, %v2465
        %v2467 = vpop.f32.mrb[0].mxu0
        %v2468 = vpop.f32.mrb[0].mxu0
        %v2469 = vadd.f32 0.0, %v2468
        %v2470 = vpop.f32.mrb[0].mxu0
        %2471 = vmatprep.mubr.bf16.mxu0 0
        %2472 = vmatmul.mubr.bf16.gmra.mrb[0].mxu0 %v2403
        %v2473 = vpop.f32.mrb[0].mxu0
        %v2474 = vadd.f32 0.0, %v2473
        %v2475 = vpop.f32.mrb[0].mxu0
        %v2476 = vpop.f32.mrb[0].mxu0
        %v2477 = vadd.f32 0.0, %v2476
        %v2478 = vpop.f32.mrb[0].mxu0
        %2479 = vmatprep.mubr.bf16.mxu0 0
        %2480 = vmatmul.mubr.bf16.gmra.mrb[0].mxu0 %v2404
        %v2481 = vpop.f32.mrb[0].mxu0
        %v2482 = vadd.f32 0.0, %v2481
        %v2483 = vpop.f32.mrb[0].mxu0
        %v2484 = vpop.f32.mrb[0].mxu0
        %v2485 = vadd.f32 0.0, %v2484
        %v2486 = vpop.f32.mrb[0].mxu0
        %2487 = vmatprep.mubr.bf16.mxu0 0
        %2488 = vmatmul.mubr.bf16.gmra.mrb[0].mxu0 %v2405
        %v2489 = vpop.f32.mrb[0].mxu0
        %v2490 = vadd.f32 0.0, %v2489
        %v2491 = vpop.f32.mrb[0].mxu0
        %v2492 = vpop.f32.mrb[0].mxu0
        %v2493 = vadd.f32 0.0, %v2492
        %v2494 = vpop.f32.mrb[0].mxu0
        %2495 = vmatprep.mubr.bf16.mxu0 0
        %2496 = vmatmul.mubr.bf16.gmra.mrb[0].mxu0 %v2406
        %v2497 = vpop.f32.mrb[0].mxu0
        %v2498 = vadd.f32 0.0, %v2497
        %v2499 = vpop.f32.mrb[0].mxu0
        %v2500 = vpop.f32.mrb[0].mxu0
        %v2501 = vadd.f32 0.0, %v2500
        %v2502 = vpop.f32.mrb[0].mxu0
        %2503 = vdwg.mxu0
        %v2504 = vpack.c.bf16 %v2099, %v2096
        %v2505 = vpack.c.bf16 %v2445, %v2442
        %v2506 = vpack.c.bf16 %v2107, %v2104
        %v2507 = vpack.c.bf16 %v2453, %v2450
        %v2508 = vpack.c.bf16 %v2115, %v2112
        %v2509 = vpack.c.bf16 %v2461, %v2458
        %v2510 = vpack.c.bf16 %v2123, %v2120
        %v2511 = vpack.c.bf16 %v2469, %v2466
        %v2512 = vpack.c.bf16 %v2131, %v2128
        %v2513 = vpack.c.bf16 %v2477, %v2474
        %v2514 = vpack.c.bf16 %v2139, %v2136
        %v2515 = vpack.c.bf16 %v2485, %v2482
        %v2516 = vpack.c.bf16 %v2147, %v2144
        %v2517 = vpack.c.bf16 %v2493, %v2490
        %v2518 = vpack.c.bf16 %v2155, %v2152
        %v2519 = vpack.c.bf16 %v2501, %v2498
        %v2520 = vld [vmem:[%s655] sm:$0xff]
        %v2521 = vld [vmem:[%s655 + $0x8] sm:$0xff]
        %v2522 = vld [vmem:[%s655 + $0x10] sm:$0xff]
        %v2523 = vld [vmem:[%s655 + $0x18] sm:$0xff]
        %v2524 = vld [vmem:[%s655 + $0x20] sm:$0xff]
        %v2525 = vld [vmem:[%s655 + $0x28] sm:$0xff]
        %v2526 = vld [vmem:[%s655 + $0x30] sm:$0xff]
        %v2527 = vld [vmem:[%s655 + $0x38] sm:$0xff]
        %v2528 = vld [vmem:[%s655 + $0x40] sm:$0xff]
        %v2529 = vld [vmem:[%s655 + $0x48] sm:$0xff]
        %v2530 = vld [vmem:[%s655 + $0x50] sm:$0xff]
        %v2531 = vld [vmem:[%s655 + $0x58] sm:$0xff]
        %v2532 = vld [vmem:[%s655 + $0x60] sm:$0xff]
        %v2533 = vld [vmem:[%s655 + $0x68] sm:$0xff]
        %v2534 = vld [vmem:[%s655 + $0x70] sm:$0xff]
        %v2535 = vld [vmem:[%s655 + $0x78] sm:$0xff]
        %v2536 = vld [vmem:[%s655 + $0x80] sm:$0xff]
        %v2537 = vld [vmem:[%s655 + $0x88] sm:$0xff]
        %v2538 = vld [vmem:[%s655 + $0x90] sm:$0xff]
        %v2539 = vld [vmem:[%s655 + $0x98] sm:$0xff]
        %v2540 = vld [vmem:[%s655 + $0xa0] sm:$0xff]
        %v2541 = vld [vmem:[%s655 + $0xa8] sm:$0xff]
        %v2542 = vld [vmem:[%s655 + $0xb0] sm:$0xff]
        %v2543 = vld [vmem:[%s655 + $0xb8] sm:$0xff]
        %v2544 = vld [vmem:[%s655 + $0xc0] sm:$0xff]
        %v2545 = vld [vmem:[%s655 + $0xc8] sm:$0xff]
        %v2546 = vld [vmem:[%s655 + $0xd0] sm:$0xff]
        %v2547 = vld [vmem:[%s655 + $0xd8] sm:$0xff]
        %v2548 = vld [vmem:[%s655 + $0xe0] sm:$0xff]
        %v2549 = vld [vmem:[%s655 + $0xe8] sm:$0xff]
        %v2550 = vld [vmem:[%s655 + $0xf0] sm:$0xff]
        %v2551 = vld [vmem:[%s655 + $0xf8] sm:$0xff]
        %v2552 = vld [vmem:[%s659] sm:$0x3]
        %v2554 = vlaneseq
        %v2555 = vshrl.u32 %v2554, 7
        %v2556 = vsub.s32 0, %v2555
        %v2557 = vrot.slane %v2552, %v2556
        %v2558 = vlaneseq
        %v2559 = vshrl.u32 %v2558, 7
        %v2560 = vsub.s32 1, %v2559
        %v2561 = vrot.slane %v2552, %v2560
        %v2596 = vunpack.c.l.b16 %v2520
        %v2597 = vunpack.c.h.b16 %v2520
        %v2598 = vunpack.c.l.b16 %v2521
        %v2599 = vunpack.c.h.b16 %v2521
        %v2600 = vunpack.c.l.b16 %v2522
        %v2601 = vunpack.c.h.b16 %v2522
        %v2602 = vunpack.c.l.b16 %v2523
        %v2603 = vunpack.c.h.b16 %v2523
        %v2604 = vunpack.c.l.b16 %v2524
        %v2605 = vunpack.c.h.b16 %v2524
        %v2606 = vunpack.c.l.b16 %v2525
        %v2607 = vunpack.c.h.b16 %v2525
        %v2608 = vunpack.c.l.b16 %v2526
        %v2609 = vunpack.c.h.b16 %v2526
        %v2610 = vunpack.c.l.b16 %v2527
        %v2611 = vunpack.c.h.b16 %v2527
        %v2612 = vunpack.c.l.b16 %v2528
        %v2613 = vunpack.c.h.b16 %v2528
        %v2614 = vunpack.c.l.b16 %v2529
        %v2615 = vunpack.c.h.b16 %v2529
        %v2616 = vunpack.c.l.b16 %v2530
        %v2617 = vunpack.c.h.b16 %v2530
        %v2618 = vunpack.c.l.b16 %v2531
        %v2619 = vunpack.c.h.b16 %v2531
        %v2620 = vunpack.c.l.b16 %v2532
        %v2621 = vunpack.c.h.b16 %v2532
        %v2622 = vunpack.c.l.b16 %v2533
        %v2623 = vunpack.c.h.b16 %v2533
        %v2624 = vunpack.c.l.b16 %v2534
        %v2625 = vunpack.c.h.b16 %v2534
        %v2626 = vunpack.c.l.b16 %v2535
        %v2627 = vunpack.c.h.b16 %v2535
        %v2628 = vunpack.c.l.b16 %v2536
        %v2629 = vunpack.c.h.b16 %v2536
        %v2630 = vunpack.c.l.b16 %v2537
        %v2631 = vunpack.c.h.b16 %v2537
        %v2632 = vunpack.c.l.b16 %v2538
        %v2633 = vunpack.c.h.b16 %v2538
        %v2634 = vunpack.c.l.b16 %v2539
        %v2635 = vunpack.c.h.b16 %v2539
        %v2636 = vunpack.c.l.b16 %v2540
        %v2637 = vunpack.c.h.b16 %v2540
        %v2638 = vunpack.c.l.b16 %v2541
        %v2639 = vunpack.c.h.b16 %v2541
        %v2640 = vunpack.c.l.b16 %v2542
        %v2641 = vunpack.c.h.b16 %v2542
        %v2642 = vunpack.c.l.b16 %v2543
        %v2643 = vunpack.c.h.b16 %v2543
        %v2644 = vunpack.c.l.b16 %v2544
        %v2645 = vunpack.c.h.b16 %v2544
        %v2646 = vunpack.c.l.b16 %v2545
        %v2647 = vunpack.c.h.b16 %v2545
        %v2648 = vunpack.c.l.b16 %v2546
        %v2649 = vunpack.c.h.b16 %v2546
        %v2650 = vunpack.c.l.b16 %v2547
        %v2651 = vunpack.c.h.b16 %v2547
        %v2652 = vunpack.c.l.b16 %v2548
        %v2653 = vunpack.c.h.b16 %v2548
        %v2654 = vunpack.c.l.b16 %v2549
        %v2655 = vunpack.c.h.b16 %v2549
        %v2656 = vunpack.c.l.b16 %v2550
        %v2657 = vunpack.c.h.b16 %v2550
        %v2658 = vunpack.c.l.b16 %v2551
        %v2659 = vunpack.c.h.b16 %v2551
        %v2660 = vpack.c.b16 %v2598, %v2596
        %v2661 = vpack.c.b16 %v2599, %v2597
        %v2662 = vpack.c.b16 %v2602, %v2600
        %v2663 = vpack.c.b16 %v2603, %v2601
        %v2664 = vpack.c.b16 %v2606, %v2604
        %v2665 = vpack.c.b16 %v2607, %v2605
        %v2666 = vpack.c.b16 %v2610, %v2608
        %v2667 = vpack.c.b16 %v2611, %v2609
        %v2668 = vpack.c.b16 %v2614, %v2612
        %v2669 = vpack.c.b16 %v2615, %v2613
        %v2670 = vpack.c.b16 %v2618, %v2616
        %v2671 = vpack.c.b16 %v2619, %v2617
        %v2672 = vpack.c.b16 %v2622, %v2620
        %v2673 = vpack.c.b16 %v2623, %v2621
        %v2674 = vpack.c.b16 %v2626, %v2624
        %v2675 = vpack.c.b16 %v2627, %v2625
        %v2676 = vpack.c.b16 %v2630, %v2628
        %v2677 = vpack.c.b16 %v2631, %v2629
        %v2678 = vpack.c.b16 %v2634, %v2632
        %v2679 = vpack.c.b16 %v2635, %v2633
        %v2680 = vpack.c.b16 %v2638, %v2636
        %v2681 = vpack.c.b16 %v2639, %v2637
        %v2682 = vpack.c.b16 %v2642, %v2640
        %v2683 = vpack.c.b16 %v2643, %v2641
        %v2684 = vpack.c.b16 %v2646, %v2644
        %v2685 = vpack.c.b16 %v2647, %v2645
        %v2686 = vpack.c.b16 %v2650, %v2648
        %v2687 = vpack.c.b16 %v2651, %v2649
        %v2688 = vpack.c.b16 %v2654, %v2652
        %v2689 = vpack.c.b16 %v2655, %v2653
        %v2690 = vpack.c.b16 %v2658, %v2656
        %v2691 = vpack.c.b16 %v2659, %v2657
        %2724 = vmatprep.subr.bf16.mxu0 %v2661
        %2725 = vmatpush1.bf16.msra.mxu0 %v2660
        %2726 = vmatprep.subr.bf16.mxu0 %v2663
        %2727 = vmatpush1.bf16.msra.mxu0 %v2662
        %2728 = vmatprep.subr.bf16.mxu0 %v2665
        %2729 = vmatpush1.bf16.msra.mxu0 %v2664
        %2730 = vmatprep.subr.bf16.mxu0 %v2667
        %2731 = vmatpush1.bf16.msra.mxu0 %v2666
        %2732 = vmatprep.subr.bf16.mxu0 %v2669
        %2733 = vmatpush1.bf16.msra.mxu0 %v2668
        %2734 = vmatprep.subr.bf16.mxu0 %v2671
        %2735 = vmatpush1.bf16.msra.mxu0 %v2670
        %2736 = vmatprep.subr.bf16.mxu0 %v2673
        %2737 = vmatpush1.bf16.msra.mxu0 %v2672
        %2738 = vmatprep.subr.bf16.mxu0 %v2675
        %2739 = vmatpush1.bf16.msra.mxu0 %v2674
        %2740 = vmatprep.subr.bf16.mxu0 %v2677
        %2741 = vmatpush1.bf16.msra.mxu0 %v2676
        %2742 = vmatprep.subr.bf16.mxu0 %v2679
        %2743 = vmatpush1.bf16.msra.mxu0 %v2678
        %2744 = vmatprep.subr.bf16.mxu0 %v2681
        %2745 = vmatpush1.bf16.msra.mxu0 %v2680
        %2746 = vmatprep.subr.bf16.mxu0 %v2683
        %2747 = vmatpush1.bf16.msra.mxu0 %v2682
        %2748 = vmatprep.subr.bf16.mxu0 %v2685
        %2749 = vmatpush1.bf16.msra.mxu0 %v2684
        %2750 = vmatprep.subr.bf16.mxu0 %v2687
        %2751 = vmatpush1.bf16.msra.mxu0 %v2686
        %2752 = vmatprep.subr.bf16.mxu0 %v2689
        %2753 = vmatpush1.bf16.msra.mxu0 %v2688
        %2754 = vmatprep.subr.bf16.mxu0 %v2691
        %2755 = vmatpush1.bf16.msra.mxu0 %v2690
        %2756 = vmatprep.mubr.bf16.mxu0 %v2505
        %2757 = vmatmul.mubr.bf16.gmra.mrb[0].mxu0 %v2504
        %v2758 = vpop.f32.mrb[0].mxu0
        %v2759 = vadd.f32 %v2557, %v2758
        %v2760 = vpop.f32.mrb[0].mxu0
        %v2761 = vadd.f32 %v2561, %v2760
        %v2762 = vpop.f32.mrb[0].mxu0
        %v2763 = vadd.f32 %v2557, %v2762
        %v2764 = vpop.f32.mrb[0].mxu0
        %v2765 = vadd.f32 %v2561, %v2764
        %2766 = vmatprep.mubr.bf16.mxu0 %v2507
        %2767 = vmatmul.mubr.bf16.gmra.mrb[0].mxu0 %v2506
        %v2768 = vpop.f32.mrb[0].mxu0
        %v2769 = vadd.f32 %v2557, %v2768
        %v2770 = vpop.f32.mrb[0].mxu0
        %v2771 = vadd.f32 %v2561, %v2770
        %v2772 = vpop.f32.mrb[0].mxu0
        %v2773 = vadd.f32 %v2557, %v2772
        %v2774 = vpop.f32.mrb[0].mxu0
        %v2775 = vadd.f32 %v2561, %v2774
        %2776 = vmatprep.mubr.bf16.mxu0 %v2509
        %2777 = vmatmul.mubr.bf16.gmra.mrb[0].mxu0 %v2508
        %v2778 = vpop.f32.mrb[0].mxu0
        %v2779 = vadd.f32 %v2557, %v2778
        %v2780 = vpop.f32.mrb[0].mxu0
        %v2781 = vadd.f32 %v2561, %v2780
        %v2782 = vpop.f32.mrb[0].mxu0
        %v2783 = vadd.f32 %v2557, %v2782
        %v2784 = vpop.f32.mrb[0].mxu0
        %v2785 = vadd.f32 %v2561, %v2784
        %2786 = vmatprep.mubr.bf16.mxu0 %v2511
        %2787 = vmatmul.mubr.bf16.gmra.mrb[0].mxu0 %v2510
        %v2788 = vpop.f32.mrb[0].mxu0
        %v2789 = vadd.f32 %v2557, %v2788
        %v2790 = vpop.f32.mrb[0].mxu0
        %v2791 = vadd.f32 %v2561, %v2790
        %v2792 = vpop.f32.mrb[0].mxu0
        %v2793 = vadd.f32 %v2557, %v2792
        %v2794 = vpop.f32.mrb[0].mxu0
        %v2795 = vadd.f32 %v2561, %v2794
        %2796 = vmatprep.mubr.bf16.mxu0 %v2513
        %2797 = vmatmul.mubr.bf16.gmra.mrb[0].mxu0 %v2512
        %v2798 = vpop.f32.mrb[0].mxu0
        %v2799 = vadd.f32 %v2557, %v2798
        %v2800 = vpop.f32.mrb[0].mxu0
        %v2801 = vadd.f32 %v2561, %v2800
        %v2802 = vpop.f32.mrb[0].mxu0
        %v2803 = vadd.f32 %v2557, %v2802
        %v2804 = vpop.f32.mrb[0].mxu0
        %v2805 = vadd.f32 %v2561, %v2804
        %2806 = vmatprep.mubr.bf16.mxu0 %v2515
        %2807 = vmatmul.mubr.bf16.gmra.mrb[0].mxu0 %v2514
        %v2808 = vpop.f32.mrb[0].mxu0
        %v2809 = vadd.f32 %v2557, %v2808
        %v2810 = vpop.f32.mrb[0].mxu0
        %v2811 = vadd.f32 %v2561, %v2810
        %v2812 = vpop.f32.mrb[0].mxu0
        %v2813 = vadd.f32 %v2557, %v2812
        %v2814 = vpop.f32.mrb[0].mxu0
        %v2815 = vadd.f32 %v2561, %v2814
        %2816 = vmatprep.mubr.bf16.mxu0 %v2517
        %2817 = vmatmul.mubr.bf16.gmra.mrb[0].mxu0 %v2516
        %v2818 = vpop.f32.mrb[0].mxu0
        %v2819 = vadd.f32 %v2557, %v2818
        %v2820 = vpop.f32.mrb[0].mxu0
        %v2821 = vadd.f32 %v2561, %v2820
        %v2822 = vpop.f32.mrb[0].mxu0
        %v2823 = vadd.f32 %v2557, %v2822
        %v2824 = vpop.f32.mrb[0].mxu0
        %v2825 = vadd.f32 %v2561, %v2824
        %2826 = vmatprep.mubr.bf16.mxu0 %v2519
        %2827 = vmatmul.mubr.bf16.gmra.mrb[0].mxu0 %v2518
        %v2828 = vpop.f32.mrb[0].mxu0
        %v2829 = vadd.f32 %v2557, %v2828
        %v2830 = vpop.f32.mrb[0].mxu0
        %v2831 = vadd.f32 %v2561, %v2830
        %v2832 = vpop.f32.mrb[0].mxu0
        %v2833 = vadd.f32 %v2557, %v2832
        %v2834 = vpop.f32.mrb[0].mxu0
        %v2835 = vadd.f32 %v2561, %v2834
        %2836 = vdwg.mxu0
        %v2837 = vadd.f32 %v752, %v2759
        %v2838 = vadd.f32 %v753, %v2761
        %v2839 = vadd.f32 %v754, %v2763
        %v2840 = vadd.f32 %v755, %v2765
        %v2841 = vadd.f32 %v756, %v2769
        %v2842 = vadd.f32 %v757, %v2771
        %v2843 = vadd.f32 %v758, %v2773
        %v2844 = vadd.f32 %v759, %v2775
        %v2845 = vadd.f32 %v760, %v2779
        %v2846 = vadd.f32 %v761, %v2781
        %v2847 = vadd.f32 %v762, %v2783
        %v2848 = vadd.f32 %v763, %v2785
        %v2849 = vadd.f32 %v764, %v2789
        %v2850 = vadd.f32 %v765, %v2791
        %v2851 = vadd.f32 %v766, %v2793
        %v2852 = vadd.f32 %v767, %v2795
        %v2853 = vadd.f32 %v768, %v2799
        %v2854 = vadd.f32 %v769, %v2801
        %v2855 = vadd.f32 %v770, %v2803
        %v2856 = vadd.f32 %v771, %v2805
        %v2857 = vadd.f32 %v772, %v2809
        %v2858 = vadd.f32 %v773, %v2811
        %v2859 = vadd.f32 %v774, %v2813
        %v2860 = vadd.f32 %v775, %v2815
        %v2861 = vadd.f32 %v776, %v2819
        %v2862 = vadd.f32 %v777, %v2821
        %v2863 = vadd.f32 %v778, %v2823
        %v2864 = vadd.f32 %v779, %v2825
        %v2865 = vadd.f32 %v780, %v2829
        %v2866 = vadd.f32 %v781, %v2831
        %v2867 = vadd.f32 %v782, %v2833
        %v2868 = vadd.f32 %v783, %v2835
        %v2869 = vadd.f32 %v2837, %v2838
        %2870 = vadd.xlane.f32.xlu0 %v2869
        %v2871 = vpop.xlane.xlu0 %2870
        %v2872 = vadd.f32 %v2839, %v2840
        %2873 = vadd.xlane.f32.xlu0 %v2872
        %v2874 = vpop.xlane.xlu0 %2873
        %v2875 = vadd.f32 %v2841, %v2842
        %2876 = vadd.xlane.f32.xlu0 %v2875
        %v2877 = vpop.xlane.xlu0 %2876
        %v2878 = vadd.f32 %v2843, %v2844
        %2879 = vadd.xlane.f32.xlu0 %v2878
        %v2880 = vpop.xlane.xlu0 %2879
        %v2881 = vadd.f32 %v2845, %v2846
        %2882 = vadd.xlane.f32.xlu0 %v2881
        %v2883 = vpop.xlane.xlu0 %2882
        %v2884 = vadd.f32 %v2847, %v2848
        %2885 = vadd.xlane.f32.xlu0 %v2884
        %v2886 = vpop.xlane.xlu0 %2885
        %v2887 = vadd.f32 %v2849, %v2850
        %2888 = vadd.xlane.f32.xlu0 %v2887
        %v2889 = vpop.xlane.xlu0 %2888
        %v2890 = vadd.f32 %v2851, %v2852
        %2891 = vadd.xlane.f32.xlu0 %v2890
        %v2892 = vpop.xlane.xlu0 %2891
        %v2893 = vadd.f32 %v2853, %v2854
        %2894 = vadd.xlane.f32.xlu0 %v2893
        %v2895 = vpop.xlane.xlu0 %2894
        %v2896 = vadd.f32 %v2855, %v2856
        %2897 = vadd.xlane.f32.xlu0 %v2896
        %v2898 = vpop.xlane.xlu0 %2897
        %v2899 = vadd.f32 %v2857, %v2858
        %2900 = vadd.xlane.f32.xlu0 %v2899
        %v2901 = vpop.xlane.xlu0 %2900
        %v2902 = vadd.f32 %v2859, %v2860
        %2903 = vadd.xlane.f32.xlu0 %v2902
        %v2904 = vpop.xlane.xlu0 %2903
        %v2905 = vadd.f32 %v2861, %v2862
        %2906 = vadd.xlane.f32.xlu0 %v2905
        %v2907 = vpop.xlane.xlu0 %2906
        %v2908 = vadd.f32 %v2863, %v2864
        %2909 = vadd.xlane.f32.xlu0 %v2908
        %v2910 = vpop.xlane.xlu0 %2909
        %v2911 = vadd.f32 %v2865, %v2866
        %2912 = vadd.xlane.f32.xlu0 %v2911
        %v2913 = vpop.xlane.xlu0 %2912
        %v2914 = vadd.f32 %v2867, %v2868
        %2915 = vadd.xlane.f32.xlu0 %v2914
        %v2916 = vpop.xlane.xlu0 %2915
        %v2917 = vrcp.pop 256.0
        %v2918 = vmul.f32 %v2871, %v2917
        %v2919 = vmul.f32 %v2874, %v2917
        %v2920 = vmul.f32 %v2877, %v2917
        %v2921 = vmul.f32 %v2880, %v2917
        %v2922 = vmul.f32 %v2883, %v2917
        %v2923 = vmul.f32 %v2886, %v2917
        %v2924 = vmul.f32 %v2889, %v2917
        %v2925 = vmul.f32 %v2892, %v2917
        %v2926 = vmul.f32 %v2895, %v2917
        %v2927 = vmul.f32 %v2898, %v2917
        %v2928 = vmul.f32 %v2901, %v2917
        %v2929 = vmul.f32 %v2904, %v2917
        %v2930 = vmul.f32 %v2907, %v2917
        %v2931 = vmul.f32 %v2910, %v2917
        %v2932 = vmul.f32 %v2913, %v2917
        %v2933 = vmul.f32 %v2916, %v2917
        %v2934 = vsub.f32 %v2837, %v2918
        %v2935 = vsub.f32 %v2838, %v2918
        %v2936 = vsub.f32 %v2839, %v2919
        %v2937 = vsub.f32 %v2840, %v2919
        %v2938 = vsub.f32 %v2841, %v2920
        %v2939 = vsub.f32 %v2842, %v2920
        %v2940 = vsub.f32 %v2843, %v2921
        %v2941 = vsub.f32 %v2844, %v2921
        %v2942 = vsub.f32 %v2845, %v2922
        %v2943 = vsub.f32 %v2846, %v2922
        %v2944 = vsub.f32 %v2847, %v2923
        %v2945 = vsub.f32 %v2848, %v2923
        %v2946 = vsub.f32 %v2849, %v2924
        %v2947 = vsub.f32 %v2850, %v2924
        %v2948 = vsub.f32 %v2851, %v2925
        %v2949 = vsub.f32 %v2852, %v2925
        %v2950 = vsub.f32 %v2853, %v2926
        %v2951 = vsub.f32 %v2854, %v2926
        %v2952 = vsub.f32 %v2855, %v2927
        %v2953 = vsub.f32 %v2856, %v2927
        %v2954 = vsub.f32 %v2857, %v2928
        %v2955 = vsub.f32 %v2858, %v2928
        %v2956 = vsub.f32 %v2859, %v2929
        %v2957 = vsub.f32 %v2860, %v2929
        %v2958 = vsub.f32 %v2861, %v2930
        %v2959 = vsub.f32 %v2862, %v2930
        %v2960 = vsub.f32 %v2863, %v2931
        %v2961 = vsub.f32 %v2864, %v2931
        %v2962 = vsub.f32 %v2865, %v2932
        %v2963 = vsub.f32 %v2866, %v2932
        %v2964 = vsub.f32 %v2867, %v2933
        %v2965 = vsub.f32 %v2868, %v2933
        %v2966 = vmul.f32 %v2934, %v2934
        %v2967 = vmul.f32 %v2935, %v2935
        %v2968 = vmul.f32 %v2936, %v2936
        %v2969 = vmul.f32 %v2937, %v2937
        %v2970 = vmul.f32 %v2938, %v2938
        %v2971 = vmul.f32 %v2939, %v2939
        %v2972 = vmul.f32 %v2940, %v2940
        %v2973 = vmul.f32 %v2941, %v2941
        %v2974 = vmul.f32 %v2942, %v2942
        %v2975 = vmul.f32 %v2943, %v2943
        %v2976 = vmul.f32 %v2944, %v2944
        %v2977 = vmul.f32 %v2945, %v2945
        %v2978 = vmul.f32 %v2946, %v2946
        %v2979 = vmul.f32 %v2947, %v2947
        %v2980 = vmul.f32 %v2948, %v2948
        %v2981 = vmul.f32 %v2949, %v2949
        %v2982 = vmul.f32 %v2950, %v2950
        %v2983 = vmul.f32 %v2951, %v2951
        %v2984 = vmul.f32 %v2952, %v2952
        %v2985 = vmul.f32 %v2953, %v2953
        %v2986 = vmul.f32 %v2954, %v2954
        %v2987 = vmul.f32 %v2955, %v2955
        %v2988 = vmul.f32 %v2956, %v2956
        %v2989 = vmul.f32 %v2957, %v2957
        %v2990 = vmul.f32 %v2958, %v2958
        %v2991 = vmul.f32 %v2959, %v2959
        %v2992 = vmul.f32 %v2960, %v2960
        %v2993 = vmul.f32 %v2961, %v2961
        %v2994 = vmul.f32 %v2962, %v2962
        %v2995 = vmul.f32 %v2963, %v2963
        %v2996 = vmul.f32 %v2964, %v2964
        %v2997 = vmul.f32 %v2965, %v2965
        %v2998 = vadd.f32 %v2966, %v2967
        %2999 = vadd.xlane.f32.xlu0 %v2998
        %v3000 = vpop.xlane.xlu0 %2999
        %v3001 = vadd.f32 %v2968, %v2969
        %3002 = vadd.xlane.f32.xlu0 %v3001
        %v3003 = vpop.xlane.xlu0 %3002
        %v3004 = vadd.f32 %v2970, %v2971
        %3005 = vadd.xlane.f32.xlu0 %v3004
        %v3006 = vpop.xlane.xlu0 %3005
        %v3007 = vadd.f32 %v2972, %v2973
        %3008 = vadd.xlane.f32.xlu0 %v3007
        %v3009 = vpop.xlane.xlu0 %3008
        %v3010 = vadd.f32 %v2974, %v2975
        %3011 = vadd.xlane.f32.xlu0 %v3010
        %v3012 = vpop.xlane.xlu0 %3011
        %v3013 = vadd.f32 %v2976, %v2977
        %3014 = vadd.xlane.f32.xlu0 %v3013
        %v3015 = vpop.xlane.xlu0 %3014
        %v3016 = vadd.f32 %v2978, %v2979
        %3017 = vadd.xlane.f32.xlu0 %v3016
        %v3018 = vpop.xlane.xlu0 %3017
        %v3019 = vadd.f32 %v2980, %v2981
        %3020 = vadd.xlane.f32.xlu0 %v3019
        %v3021 = vpop.xlane.xlu0 %3020
        %v3022 = vadd.f32 %v2982, %v2983
        %3023 = vadd.xlane.f32.xlu0 %v3022
        %v3024 = vpop.xlane.xlu0 %3023
        %v3025 = vadd.f32 %v2984, %v2985
        %3026 = vadd.xlane.f32.xlu0 %v3025
        %v3027 = vpop.xlane.xlu0 %3026
        %v3028 = vadd.f32 %v2986, %v2987
        %3029 = vadd.xlane.f32.xlu0 %v3028
        %v3030 = vpop.xlane.xlu0 %3029
        %v3031 = vadd.f32 %v2988, %v2989
        %3032 = vadd.xlane.f32.xlu0 %v3031
        %v3033 = vpop.xlane.xlu0 %3032
        %v3034 = vadd.f32 %v2990, %v2991
        %3035 = vadd.xlane.f32.xlu0 %v3034
        %v3036 = vpop.xlane.xlu0 %3035
        %v3037 = vadd.f32 %v2992, %v2993
        %3038 = vadd.xlane.f32.xlu0 %v3037
        %v3039 = vpop.xlane.xlu0 %3038
        %v3040 = vadd.f32 %v2994, %v2995
        %3041 = vadd.xlane.f32.xlu0 %v3040
        %v3042 = vpop.xlane.xlu0 %3041
        %v3043 = vadd.f32 %v2996, %v2997
        %3044 = vadd.xlane.f32.xlu0 %v3043
        %v3045 = vpop.xlane.xlu0 %3044
        %v3046 = vmul.f32 %v3000, %v2917
        %v3047 = vmul.f32 %v3003, %v2917
        %v3048 = vmul.f32 %v3006, %v2917
        %v3049 = vmul.f32 %v3009, %v2917
        %v3050 = vmul.f32 %v3012, %v2917
        %v3051 = vmul.f32 %v3015, %v2917
        %v3052 = vmul.f32 %v3018, %v2917
        %v3053 = vmul.f32 %v3021, %v2917
        %v3054 = vmul.f32 %v3024, %v2917
        %v3055 = vmul.f32 %v3027, %v2917
        %v3056 = vmul.f32 %v3030, %v2917
        %v3057 = vmul.f32 %v3033, %v2917
        %v3058 = vmul.f32 %v3036, %v2917
        %v3059 = vmul.f32 %v3039, %v2917
        %v3060 = vmul.f32 %v3042, %v2917
        %v3061 = vmul.f32 %v3045, %v2917
        %v3062 = vadd.f32 %v3046, 1e-12
        %v3063 = vadd.f32 %v3047, 1e-12
        %v3064 = vadd.f32 %v3048, 1e-12
        %v3065 = vadd.f32 %v3049, 1e-12
        %v3066 = vadd.f32 %v3050, 1e-12
        %v3067 = vadd.f32 %v3051, 1e-12
        %v3068 = vadd.f32 %v3052, 1e-12
        %v3069 = vadd.f32 %v3053, 1e-12
        %v3070 = vadd.f32 %v3054, 1e-12
        %v3071 = vadd.f32 %v3055, 1e-12
        %v3072 = vadd.f32 %v3056, 1e-12
        %v3073 = vadd.f32 %v3057, 1e-12
        %v3074 = vadd.f32 %v3058, 1e-12
        %v3075 = vadd.f32 %v3059, 1e-12
        %v3076 = vadd.f32 %v3060, 1e-12
        %v3077 = vadd.f32 %v3061, 1e-12
        %v3078 = vrsqrt.pop %v3062
        %v3079 = vrsqrt.pop %v3063
        %v3080 = vrsqrt.pop %v3064
        %v3081 = vrsqrt.pop %v3065
        %v3082 = vrsqrt.pop %v3066
        %v3083 = vrsqrt.pop %v3067
        %v3084 = vrsqrt.pop %v3068
        %v3085 = vrsqrt.pop %v3069
        %v3086 = vrsqrt.pop %v3070
        %v3087 = vrsqrt.pop %v3071
        %v3088 = vrsqrt.pop %v3072
        %v3089 = vrsqrt.pop %v3073
        %v3090 = vrsqrt.pop %v3074
        %v3091 = vrsqrt.pop %v3075
        %v3092 = vrsqrt.pop %v3076
        %v3093 = vrsqrt.pop %v3077
        %v3094 = vmul.f32 %v2934, %v3078
        %v3095 = vmul.f32 %v2935, %v3078
        %v3096 = vmul.f32 %v2936, %v3079
        %v3097 = vmul.f32 %v2937, %v3079
        %v3098 = vmul.f32 %v2938, %v3080
        %v3099 = vmul.f32 %v2939, %v3080
        %v3100 = vmul.f32 %v2940, %v3081
        %v3101 = vmul.f32 %v2941, %v3081
        %v3102 = vmul.f32 %v2942, %v3082
        %v3103 = vmul.f32 %v2943, %v3082
        %v3104 = vmul.f32 %v2944, %v3083
        %v3105 = vmul.f32 %v2945, %v3083
        %v3106 = vmul.f32 %v2946, %v3084
        %v3107 = vmul.f32 %v2947, %v3084
        %v3108 = vmul.f32 %v2948, %v3085
        %v3109 = vmul.f32 %v2949, %v3085
        %v3110 = vmul.f32 %v2950, %v3086
        %v3111 = vmul.f32 %v2951, %v3086
        %v3112 = vmul.f32 %v2952, %v3087
        %v3113 = vmul.f32 %v2953, %v3087
        %v3114 = vmul.f32 %v2954, %v3088
        %v3115 = vmul.f32 %v2955, %v3088
        %v3116 = vmul.f32 %v2956, %v3089
        %v3117 = vmul.f32 %v2957, %v3089
        %v3118 = vmul.f32 %v2958, %v3090
        %v3119 = vmul.f32 %v2959, %v3090
        %v3120 = vmul.f32 %v2960, %v3091
        %v3121 = vmul.f32 %v2961, %v3091
        %v3122 = vmul.f32 %v2962, %v3092
        %v3123 = vmul.f32 %v2963, %v3092
        %v3124 = vmul.f32 %v2964, %v3093
        %v3125 = vmul.f32 %v2965, %v3093
        %v3127 = vlaneseq
        %v3128 = vshrl.u32 %v3127, 7
        %v3129 = vsub.s32 0, %v3128
        %v3130 = vrot.slane %v784, %v3129
        %v3131 = vlaneseq
        %v3132 = vshrl.u32 %v3131, 7
        %v3133 = vsub.s32 4, %v3132
        %v3134 = vrot.slane %v784, %v3133
        %v3137 = vlaneseq
        %v3138 = vshrl.u32 %v3137, 7
        %v3139 = vsub.s32 0, %v3138
        %v3140 = vrot.slane %v3130, %v3139
        %v3141 = vlaneseq
        %v3142 = vshrl.u32 %v3141, 7
        %v3143 = vsub.s32 0, %v3142
        %v3144 = vrot.slane %v3134, %v3143
        %v3145 = vmul.f32 %v3094, %v3140
        %v3146 = vmul.f32 %v3095, %v3144
        %v3147 = vmul.f32 %v3096, %v3140
        %v3148 = vmul.f32 %v3097, %v3144
        %v3149 = vmul.f32 %v3098, %v3140
        %v3150 = vmul.f32 %v3099, %v3144
        %v3151 = vmul.f32 %v3100, %v3140
        %v3152 = vmul.f32 %v3101, %v3144
        %v3153 = vmul.f32 %v3102, %v3140
        %v3154 = vmul.f32 %v3103, %v3144
        %v3155 = vmul.f32 %v3104, %v3140
        %v3156 = vmul.f32 %v3105, %v3144
        %v3157 = vmul.f32 %v3106, %v3140
        %v3158 = vmul.f32 %v3107, %v3144
        %v3159 = vmul.f32 %v3108, %v3140
        %v3160 = vmul.f32 %v3109, %v3144
        %v3161 = vmul.f32 %v3110, %v3140
        %v3162 = vmul.f32 %v3111, %v3144
        %v3163 = vmul.f32 %v3112, %v3140
        %v3164 = vmul.f32 %v3113, %v3144
        %v3165 = vmul.f32 %v3114, %v3140
        %v3166 = vmul.f32 %v3115, %v3144
        %v3167 = vmul.f32 %v3116, %v3140
        %v3168 = vmul.f32 %v3117, %v3144
        %v3169 = vmul.f32 %v3118, %v3140
        %v3170 = vmul.f32 %v3119, %v3144
        %v3171 = vmul.f32 %v3120, %v3140
        %v3172 = vmul.f32 %v3121, %v3144
        %v3173 = vmul.f32 %v3122, %v3140
        %v3174 = vmul.f32 %v3123, %v3144
        %v3175 = vmul.f32 %v3124, %v3140
        %v3176 = vmul.f32 %v3125, %v3144
        %v3177 = vlaneseq
        %v3178 = vshrl.u32 %v3177, 7
        %v3179 = vsub.s32 1, %v3178
        %v3180 = vrot.slane %v784, %v3179
        %v3181 = vlaneseq
        %v3182 = vshrl.u32 %v3181, 7
        %v3183 = vsub.s32 5, %v3182
        %v3184 = vrot.slane %v784, %v3183
        %v3187 = vlaneseq
        %v3188 = vshrl.u32 %v3187, 7
        %v3189 = vsub.s32 1, %v3188
        %v3190 = vrot.slane %v3180, %v3189
        %v3191 = vlaneseq
        %v3192 = vshrl.u32 %v3191, 7
        %v3193 = vsub.s32 1, %v3192
        %v3194 = vrot.slane %v3184, %v3193
        %v3195 = vadd.f32 %v3145, %v3190
        %v3196 = vadd.f32 %v3146, %v3194
        %v3197 = vadd.f32 %v3147, %v3190
        %v3198 = vadd.f32 %v3148, %v3194
        %v3199 = vadd.f32 %v3149, %v3190
        %v3200 = vadd.f32 %v3150, %v3194
        %v3201 = vadd.f32 %v3151, %v3190
        %v3202 = vadd.f32 %v3152, %v3194
        %v3203 = vadd.f32 %v3153, %v3190
        %v3204 = vadd.f32 %v3154, %v3194
        %v3205 = vadd.f32 %v3155, %v3190
        %v3206 = vadd.f32 %v3156, %v3194
        %v3207 = vadd.f32 %v3157, %v3190
        %v3208 = vadd.f32 %v3158, %v3194
        %v3209 = vadd.f32 %v3159, %v3190
        %v3210 = vadd.f32 %v3160, %v3194
        %v3211 = vadd.f32 %v3161, %v3190
        %v3212 = vadd.f32 %v3162, %v3194
        %v3213 = vadd.f32 %v3163, %v3190
        %v3214 = vadd.f32 %v3164, %v3194
        %v3215 = vadd.f32 %v3165, %v3190
        %v3216 = vadd.f32 %v3166, %v3194
        %v3217 = vadd.f32 %v3167, %v3190
        %v3218 = vadd.f32 %v3168, %v3194
        %v3219 = vadd.f32 %v3169, %v3190
        %v3220 = vadd.f32 %v3170, %v3194
        %v3221 = vadd.f32 %v3171, %v3190
        %v3222 = vadd.f32 %v3172, %v3194
        %v3223 = vadd.f32 %v3173, %v3190
        %v3224 = vadd.f32 %v3174, %v3194
        %v3225 = vadd.f32 %v3175, %v3190
        %v3226 = vadd.f32 %v3176, %v3194
        %v3227 = vpack.c.bf16 %v3197, %v3195
        %v3228 = vpack.c.bf16 %v3198, %v3196
        %v3229 = vpack.c.bf16 %v3201, %v3199
        %v3230 = vpack.c.bf16 %v3202, %v3200
        %v3231 = vpack.c.bf16 %v3205, %v3203
        %v3232 = vpack.c.bf16 %v3206, %v3204
        %v3233 = vpack.c.bf16 %v3209, %v3207
        %v3234 = vpack.c.bf16 %v3210, %v3208
        %v3235 = vpack.c.bf16 %v3213, %v3211
        %v3236 = vpack.c.bf16 %v3214, %v3212
        %v3237 = vpack.c.bf16 %v3217, %v3215
        %v3238 = vpack.c.bf16 %v3218, %v3216
        %v3239 = vpack.c.bf16 %v3221, %v3219
        %v3240 = vpack.c.bf16 %v3222, %v3220
        %v3241 = vpack.c.bf16 %v3225, %v3223
        %v3242 = vpack.c.bf16 %v3226, %v3224
        %v3243 = vld [vmem:[%s664] sm:$0xff]
        %v3244 = vld [vmem:[%s664 + $0x8] sm:$0xff]
        %v3245 = vld [vmem:[%s664 + $0x10] sm:$0xff]
        %v3246 = vld [vmem:[%s664 + $0x18] sm:$0xff]
        %v3247 = vld [vmem:[%s664 + $0x20] sm:$0xff]
        %v3248 = vld [vmem:[%s664 + $0x28] sm:$0xff]
        %v3249 = vld [vmem:[%s664 + $0x30] sm:$0xff]
        %v3250 = vld [vmem:[%s664 + $0x38] sm:$0xff]
        %v3251 = vld [vmem:[%s664 + $0x40] sm:$0xff]
        %v3252 = vld [vmem:[%s664 + $0x48] sm:$0xff]
        %v3253 = vld [vmem:[%s664 + $0x50] sm:$0xff]
        %v3254 = vld [vmem:[%s664 + $0x58] sm:$0xff]
        %v3255 = vld [vmem:[%s664 + $0x60] sm:$0xff]
        %v3256 = vld [vmem:[%s664 + $0x68] sm:$0xff]
        %v3257 = vld [vmem:[%s664 + $0x70] sm:$0xff]
        %v3258 = vld [vmem:[%s664 + $0x78] sm:$0xff]
        %v3259 = vld [vmem:[%s664 + $0x80] sm:$0xff]
        %v3260 = vld [vmem:[%s664 + $0x88] sm:$0xff]
        %v3261 = vld [vmem:[%s664 + $0x90] sm:$0xff]
        %v3262 = vld [vmem:[%s664 + $0x98] sm:$0xff]
        %v3263 = vld [vmem:[%s664 + $0xa0] sm:$0xff]
        %v3264 = vld [vmem:[%s664 + $0xa8] sm:$0xff]
        %v3265 = vld [vmem:[%s664 + $0xb0] sm:$0xff]
        %v3266 = vld [vmem:[%s664 + $0xb8] sm:$0xff]
        %v3267 = vld [vmem:[%s664 + $0xc0] sm:$0xff]
        %v3268 = vld [vmem:[%s664 + $0xc8] sm:$0xff]
        %v3269 = vld [vmem:[%s664 + $0xd0] sm:$0xff]
        %v3270 = vld [vmem:[%s664 + $0xd8] sm:$0xff]
        %v3271 = vld [vmem:[%s664 + $0xe0] sm:$0xff]
        %v3272 = vld [vmem:[%s664 + $0xe8] sm:$0xff]
        %v3273 = vld [vmem:[%s664 + $0xf0] sm:$0xff]
        %v3274 = vld [vmem:[%s664 + $0xf8] sm:$0xff]
        %v3275 = vld [vmem:[%s664 + $0x100] sm:$0xff]
        %v3276 = vld [vmem:[%s664 + $0x108] sm:$0xff]
        %v3277 = vld [vmem:[%s664 + $0x110] sm:$0xff]
        %v3278 = vld [vmem:[%s664 + $0x118] sm:$0xff]
        %v3279 = vld [vmem:[%s664 + $0x120] sm:$0xff]
        %v3280 = vld [vmem:[%s664 + $0x128] sm:$0xff]
        %v3281 = vld [vmem:[%s664 + $0x130] sm:$0xff]
        %v3282 = vld [vmem:[%s664 + $0x138] sm:$0xff]
        %v3283 = vld [vmem:[%s664 + $0x140] sm:$0xff]
        %v3284 = vld [vmem:[%s664 + $0x148] sm:$0xff]
        %v3285 = vld [vmem:[%s664 + $0x150] sm:$0xff]
        %v3286 = vld [vmem:[%s664 + $0x158] sm:$0xff]
        %v3287 = vld [vmem:[%s664 + $0x160] sm:$0xff]
        %v3288 = vld [vmem:[%s664 + $0x168] sm:$0xff]
        %v3289 = vld [vmem:[%s664 + $0x170] sm:$0xff]
        %v3290 = vld [vmem:[%s664 + $0x178] sm:$0xff]
        %v3291 = vld [vmem:[%s664 + $0x180] sm:$0xff]
        %v3292 = vld [vmem:[%s664 + $0x188] sm:$0xff]
        %v3293 = vld [vmem:[%s664 + $0x190] sm:$0xff]
        %v3294 = vld [vmem:[%s664 + $0x198] sm:$0xff]
        %v3295 = vld [vmem:[%s664 + $0x1a0] sm:$0xff]
        %v3296 = vld [vmem:[%s664 + $0x1a8] sm:$0xff]
        %v3297 = vld [vmem:[%s664 + $0x1b0] sm:$0xff]
        %v3298 = vld [vmem:[%s664 + $0x1b8] sm:$0xff]
        %v3299 = vld [vmem:[%s664 + $0x1c0] sm:$0xff]
        %v3300 = vld [vmem:[%s664 + $0x1c8] sm:$0xff]
        %v3301 = vld [vmem:[%s664 + $0x1d0] sm:$0xff]
        %v3302 = vld [vmem:[%s664 + $0x1d8] sm:$0xff]
        %v3303 = vld [vmem:[%s664 + $0x1e0] sm:$0xff]
        %v3304 = vld [vmem:[%s664 + $0x1e8] sm:$0xff]
        %v3305 = vld [vmem:[%s664 + $0x1f0] sm:$0xff]
        %v3306 = vld [vmem:[%s664 + $0x1f8] sm:$0xff]
        %v3307 = vld [vmem:[%s668] sm:$0xf]
        %v3309 = vlaneseq
        %v3310 = vshrl.u32 %v3309, 7
        %v3311 = vsub.s32 0, %v3310
        %v3312 = vrot.slane %v3307, %v3311
        %v3313 = vlaneseq
        %v3314 = vshrl.u32 %v3313, 7
        %v3315 = vsub.s32 1, %v3314
        %v3316 = vrot.slane %v3307, %v3315
        %v3317 = vlaneseq
        %v3318 = vshrl.u32 %v3317, 7
        %v3319 = vsub.s32 2, %v3318
        %v3320 = vrot.slane %v3307, %v3319
        %v3321 = vlaneseq
        %v3322 = vshrl.u32 %v3321, 7
        %v3323 = vsub.s32 3, %v3322
        %v3324 = vrot.slane %v3307, %v3323
        %v3393 = vunpack.c.l.b16 %v3243
        %v3394 = vunpack.c.h.b16 %v3243
        %v3395 = vunpack.c.l.b16 %v3244
        %v3396 = vunpack.c.h.b16 %v3244
        %v3397 = vunpack.c.l.b16 %v3245
        %v3398 = vunpack.c.h.b16 %v3245
        %v3399 = vunpack.c.l.b16 %v3246
        %v3400 = vunpack.c.h.b16 %v3246
        %v3401 = vunpack.c.l.b16 %v3247
        %v3402 = vunpack.c.h.b16 %v3247
        %v3403 = vunpack.c.l.b16 %v3248
        %v3404 = vunpack.c.h.b16 %v3248
        %v3405 = vunpack.c.l.b16 %v3249
        %v3406 = vunpack.c.h.b16 %v3249
        %v3407 = vunpack.c.l.b16 %v3250
        %v3408 = vunpack.c.h.b16 %v3250
        %v3409 = vunpack.c.l.b16 %v3251
        %v3410 = vunpack.c.h.b16 %v3251
        %v3411 = vunpack.c.l.b16 %v3252
        %v3412 = vunpack.c.h.b16 %v3252
        %v3413 = vunpack.c.l.b16 %v3253
        %v3414 = vunpack.c.h.b16 %v3253
        %v3415 = vunpack.c.l.b16 %v3254
        %v3416 = vunpack.c.h.b16 %v3254
        %v3417 = vunpack.c.l.b16 %v3255
        %v3418 = vunpack.c.h.b16 %v3255
        %v3419 = vunpack.c.l.b16 %v3256
        %v3420 = vunpack.c.h.b16 %v3256
        %v3421 = vunpack.c.l.b16 %v3257
        %v3422 = vunpack.c.h.b16 %v3257
        %v3423 = vunpack.c.l.b16 %v3258
        %v3424 = vunpack.c.h.b16 %v3258
        %v3425 = vunpack.c.l.b16 %v3259
        %v3426 = vunpack.c.h.b16 %v3259
        %v3427 = vunpack.c.l.b16 %v3260
        %v3428 = vunpack.c.h.b16 %v3260
        %v3429 = vunpack.c.l.b16 %v3261
        %v3430 = vunpack.c.h.b16 %v3261
        %v3431 = vunpack.c.l.b16 %v3262
        %v3432 = vunpack.c.h.b16 %v3262
        %v3433 = vunpack.c.l.b16 %v3263
        %v3434 = vunpack.c.h.b16 %v3263
        %v3435 = vunpack.c.l.b16 %v3264
        %v3436 = vunpack.c.h.b16 %v3264
        %v3437 = vunpack.c.l.b16 %v3265
        %v3438 = vunpack.c.h.b16 %v3265
        %v3439 = vunpack.c.l.b16 %v3266
        %v3440 = vunpack.c.h.b16 %v3266
        %v3441 = vunpack.c.l.b16 %v3267
        %v3442 = vunpack.c.h.b16 %v3267
        %v3443 = vunpack.c.l.b16 %v3268
        %v3444 = vunpack.c.h.b16 %v3268
        %v3445 = vunpack.c.l.b16 %v3269
        %v3446 = vunpack.c.h.b16 %v3269
        %v3447 = vunpack.c.l.b16 %v3270
        %v3448 = vunpack.c.h.b16 %v3270
        %v3449 = vunpack.c.l.b16 %v3271
        %v3450 = vunpack.c.h.b16 %v3271
        %v3451 = vunpack.c.l.b16 %v3272
        %v3452 = vunpack.c.h.b16 %v3272
        %v3453 = vunpack.c.l.b16 %v3273
        %v3454 = vunpack.c.h.b16 %v3273
        %v3455 = vunpack.c.l.b16 %v3274
        %v3456 = vunpack.c.h.b16 %v3274
        %v3457 = vunpack.c.l.b16 %v3275
        %v3458 = vunpack.c.h.b16 %v3275
        %v3459 = vunpack.c.l.b16 %v3276
        %v3460 = vunpack.c.h.b16 %v3276
        %v3461 = vunpack.c.l.b16 %v3277
        %v3462 = vunpack.c.h.b16 %v3277
        %v3463 = vunpack.c.l.b16 %v3278
        %v3464 = vunpack.c.h.b16 %v3278
        %v3465 = vunpack.c.l.b16 %v3279
        %v3466 = vunpack.c.h.b16 %v3279
        %v3467 = vunpack.c.l.b16 %v3280
        %v3468 = vunpack.c.h.b16 %v3280
        %v3469 = vunpack.c.l.b16 %v3281
        %v3470 = vunpack.c.h.b16 %v3281
        %v3471 = vunpack.c.l.b16 %v3282
        %v3472 = vunpack.c.h.b16 %v3282
        %v3473 = vunpack.c.l.b16 %v3283
        %v3474 = vunpack.c.h.b16 %v3283
        %v3475 = vunpack.c.l.b16 %v3284
        %v3476 = vunpack.c.h.b16 %v3284
        %v3477 = vunpack.c.l.b16 %v3285
        %v3478 = vunpack.c.h.b16 %v3285
        %v3479 = vunpack.c.l.b16 %v3286
        %v3480 = vunpack.c.h.b16 %v3286
        %v3481 = vunpack.c.l.b16 %v3287
        %v3482 = vunpack.c.h.b16 %v3287
        %v3483 = vunpack.c.l.b16 %v3288
        %v3484 = vunpack.c.h.b16 %v3288
        %v3485 = vunpack.c.l.b16 %v3289
        %v3486 = vunpack.c.h.b16 %v3289
        %v3487 = vunpack.c.l.b16 %v3290
        %v3488 = vunpack.c.h.b16 %v3290
        %v3489 = vunpack.c.l.b16 %v3291
        %v3490 = vunpack.c.h.b16 %v3291
        %v3491 = vunpack.c.l.b16 %v3292
        %v3492 = vunpack.c.h.b16 %v3292
        %v3493 = vunpack.c.l.b16 %v3293
        %v3494 = vunpack.c.h.b16 %v3293
        %v3495 = vunpack.c.l.b16 %v3294
        %v3496 = vunpack.c.h.b16 %v3294
        %v3497 = vunpack.c.l.b16 %v3295
        %v3498 = vunpack.c.h.b16 %v3295
        %v3499 = vunpack.c.l.b16 %v3296
        %v3500 = vunpack.c.h.b16 %v3296
        %v3501 = vunpack.c.l.b16 %v3297
        %v3502 = vunpack.c.h.b16 %v3297
        %v3503 = vunpack.c.l.b16 %v3298
        %v3504 = vunpack.c.h.b16 %v3298
        %v3505 = vunpack.c.l.b16 %v3299
        %v3506 = vunpack.c.h.b16 %v3299
        %v3507 = vunpack.c.l.b16 %v3300
        %v3508 = vunpack.c.h.b16 %v3300
        %v3509 = vunpack.c.l.b16 %v3301
        %v3510 = vunpack.c.h.b16 %v3301
        %v3511 = vunpack.c.l.b16 %v3302
        %v3512 = vunpack.c.h.b16 %v3302
        %v3513 = vunpack.c.l.b16 %v3303
        %v3514 = vunpack.c.h.b16 %v3303
        %v3515 = vunpack.c.l.b16 %v3304
        %v3516 = vunpack.c.h.b16 %v3304
        %v3517 = vunpack.c.l.b16 %v3305
        %v3518 = vunpack.c.h.b16 %v3305
        %v3519 = vunpack.c.l.b16 %v3306
        %v3520 = vunpack.c.h.b16 %v3306
        %v3521 = vpack.c.b16 %v3397, %v3393
        %v3522 = vpack.c.b16 %v3398, %v3394
        %v3523 = vpack.c.b16 %v3399, %v3395
        %v3524 = vpack.c.b16 %v3400, %v3396
        %v3525 = vpack.c.b16 %v3405, %v3401
        %v3526 = vpack.c.b16 %v3406, %v3402
        %v3527 = vpack.c.b16 %v3407, %v3403
        %v3528 = vpack.c.b16 %v3408, %v3404
        %v3529 = vpack.c.b16 %v3413, %v3409
        %v3530 = vpack.c.b16 %v3414, %v3410
        %v3531 = vpack.c.b16 %v3415, %v3411
        %v3532 = vpack.c.b16 %v3416, %v3412
        %v3533 = vpack.c.b16 %v3421, %v3417
        %v3534 = vpack.c.b16 %v3422, %v3418
        %v3535 = vpack.c.b16 %v3423, %v3419
        %v3536 = vpack.c.b16 %v3424, %v3420
        %v3537 = vpack.c.b16 %v3429, %v3425
        %v3538 = vpack.c.b16 %v3430, %v3426
        %v3539 = vpack.c.b16 %v3431, %v3427
        %v3540 = vpack.c.b16 %v3432, %v3428
        %v3541 = vpack.c.b16 %v3437, %v3433
        %v3542 = vpack.c.b16 %v3438, %v3434
        %v3543 = vpack.c.b16 %v3439, %v3435
        %v3544 = vpack.c.b16 %v3440, %v3436
        %v3545 = vpack.c.b16 %v3445, %v3441
        %v3546 = vpack.c.b16 %v3446, %v3442
        %v3547 = vpack.c.b16 %v3447, %v3443
        %v3548 = vpack.c.b16 %v3448, %v3444
        %v3549 = vpack.c.b16 %v3453, %v3449
        %v3550 = vpack.c.b16 %v3454, %v3450
        %v3551 = vpack.c.b16 %v3455, %v3451
        %v3552 = vpack.c.b16 %v3456, %v3452
        %v3553 = vpack.c.b16 %v3461, %v3457
        %v3554 = vpack.c.b16 %v3462, %v3458
        %v3555 = vpack.c.b16 %v3463, %v3459
        %v3556 = vpack.c.b16 %v3464, %v3460
        %v3557 = vpack.c.b16 %v3469, %v3465
        %v3558 = vpack.c.b16 %v3470, %v3466
        %v3559 = vpack.c.b16 %v3471, %v3467
        %v3560 = vpack.c.b16 %v3472, %v3468
        %v3561 = vpack.c.b16 %v3477, %v3473
        %v3562 = vpack.c.b16 %v3478, %v3474
        %v3563 = vpack.c.b16 %v3479, %v3475
        %v3564 = vpack.c.b16 %v3480, %v3476
        %v3565 = vpack.c.b16 %v3485, %v3481
        %v3566 = vpack.c.b16 %v3486, %v3482
        %v3567 = vpack.c.b16 %v3487, %v3483
        %v3568 = vpack.c.b16 %v3488, %v3484
        %v3569 = vpack.c.b16 %v3493, %v3489
        %v3570 = vpack.c.b16 %v3494, %v3490
        %v3571 = vpack.c.b16 %v3495, %v3491
        %v3572 = vpack.c.b16 %v3496, %v3492
        %v3573 = vpack.c.b16 %v3501, %v3497
        %v3574 = vpack.c.b16 %v3502, %v3498
        %v3575 = vpack.c.b16 %v3503, %v3499
        %v3576 = vpack.c.b16 %v3504, %v3500
        %v3577 = vpack.c.b16 %v3509, %v3505
        %v3578 = vpack.c.b16 %v3510, %v3506
        %v3579 = vpack.c.b16 %v3511, %v3507
        %v3580 = vpack.c.b16 %v3512, %v3508
        %v3581 = vpack.c.b16 %v3517, %v3513
        %v3582 = vpack.c.b16 %v3518, %v3514
        %v3583 = vpack.c.b16 %v3519, %v3515
        %v3584 = vpack.c.b16 %v3520, %v3516
        %3649 = vmatprep.subr.bf16.mxu0 %v3522
        %3650 = vmatpush1.bf16.msra.mxu0 %v3521
        %3651 = vmatprep.subr.bf16.mxu0 %v3526
        %3652 = vmatpush1.bf16.msra.mxu0 %v3525
        %3653 = vmatprep.subr.bf16.mxu0 %v3530
        %3654 = vmatpush1.bf16.msra.mxu0 %v3529
        %3655 = vmatprep.subr.bf16.mxu0 %v3534
        %3656 = vmatpush1.bf16.msra.mxu0 %v3533
        %3657 = vmatprep.subr.bf16.mxu0 %v3538
        %3658 = vmatpush1.bf16.msra.mxu0 %v3537
        %3659 = vmatprep.subr.bf16.mxu0 %v3542
        %3660 = vmatpush1.bf16.msra.mxu0 %v3541
        %3661 = vmatprep.subr.bf16.mxu0 %v3546
        %3662 = vmatpush1.bf16.msra.mxu0 %v3545
        %3663 = vmatprep.subr.bf16.mxu0 %v3550
        %3664 = vmatpush1.bf16.msra.mxu0 %v3549
        %3665 = vmatprep.subr.bf16.mxu0 %v3554
        %3666 = vmatpush1.bf16.msra.mxu0 %v3553
        %3667 = vmatprep.subr.bf16.mxu0 %v3558
        %3668 = vmatpush1.bf16.msra.mxu0 %v3557
        %3669 = vmatprep.subr.bf16.mxu0 %v3562
        %3670 = vmatpush1.bf16.msra.mxu0 %v3561
        %3671 = vmatprep.subr.bf16.mxu0 %v3566
        %3672 = vmatpush1.bf16.msra.mxu0 %v3565
        %3673 = vmatprep.subr.bf16.mxu0 %v3570
        %3674 = vmatpush1.bf16.msra.mxu0 %v3569
        %3675 = vmatprep.subr.bf16.mxu0 %v3574
        %3676 = vmatpush1.bf16.msra.mxu0 %v3573
        %3677 = vmatprep.subr.bf16.mxu0 %v3578
        %3678 = vmatpush1.bf16.msra.mxu0 %v3577
        %3679 = vmatprep.subr.bf16.mxu0 %v3582
        %3680 = vmatpush1.bf16.msra.mxu0 %v3581
        %3681 = vmatprep.mubr.bf16.mxu0 %v3228
        %3682 = vmatmul.mubr.bf16.gmra.mrb[0].mxu0 %v3227
        %v3683 = vpop.f32.mrb[0].mxu0
        %v3684 = vadd.f32 %v3312, %v3683
        %v3685 = vpop.f32.mrb[0].mxu0
        %v3686 = vadd.f32 %v3316, %v3685
        %v3687 = vpop.f32.mrb[0].mxu0
        %v3688 = vadd.f32 %v3312, %v3687
        %v3689 = vpop.f32.mrb[0].mxu0
        %v3690 = vadd.f32 %v3316, %v3689
        %3691 = vmatprep.mubr.bf16.mxu0 %v3230
        %3692 = vmatmul.mubr.bf16.gmra.mrb[0].mxu0 %v3229
        %v3693 = vpop.f32.mrb[0].mxu0
        %v3694 = vadd.f32 %v3312, %v3693
        %v3695 = vpop.f32.mrb[0].mxu0
        %v3696 = vadd.f32 %v3316, %v3695
        %v3697 = vpop.f32.mrb[0].mxu0
        %v3698 = vadd.f32 %v3312, %v3697
        %v3699 = vpop.f32.mrb[0].mxu0
        %v3700 = vadd.f32 %v3316, %v3699
        %3701 = vmatprep.mubr.bf16.mxu0 %v3232
        %3702 = vmatmul.mubr.bf16.gmra.mrb[0].mxu0 %v3231
        %v3703 = vpop.f32.mrb[0].mxu0
        %v3704 = vadd.f32 %v3312, %v3703
        %v3705 = vpop.f32.mrb[0].mxu0
        %v3706 = vadd.f32 %v3316, %v3705
        %v3707 = vpop.f32.mrb[0].mxu0
        %v3708 = vadd.f32 %v3312, %v3707
        %v3709 = vpop.f32.mrb[0].mxu0
        %v3710 = vadd.f32 %v3316, %v3709
        %3711 = vmatprep.mubr.bf16.mxu0 %v3234
        %3712 = vmatmul.mubr.bf16.gmra.mrb[0].mxu0 %v3233
        %v3713 = vpop.f32.mrb[0].mxu0
        %v3714 = vadd.f32 %v3312, %v3713
        %v3715 = vpop.f32.mrb[0].mxu0
        %v3716 = vadd.f32 %v3316, %v3715
        %v3717 = vpop.f32.mrb[0].mxu0
        %v3718 = vadd.f32 %v3312, %v3717
        %v3719 = vpop.f32.mrb[0].mxu0
        %v3720 = vadd.f32 %v3316, %v3719
        %3721 = vmatprep.mubr.bf16.mxu0 %v3236
        %3722 = vmatmul.mubr.bf16.gmra.mrb[0].mxu0 %v3235
        %v3723 = vpop.f32.mrb[0].mxu0
        %v3724 = vadd.f32 %v3312, %v3723
        %v3725 = vpop.f32.mrb[0].mxu0
        %v3726 = vadd.f32 %v3316, %v3725
        %v3727 = vpop.f32.mrb[0].mxu0
        %v3728 = vadd.f32 %v3312, %v3727
        %v3729 = vpop.f32.mrb[0].mxu0
        %v3730 = vadd.f32 %v3316, %v3729
        %3731 = vmatprep.mubr.bf16.mxu0 %v3238
        %3732 = vmatmul.mubr.bf16.gmra.mrb[0].mxu0 %v3237
        %v3733 = vpop.f32.mrb[0].mxu0
        %v3734 = vadd.f32 %v3312, %v3733
        %v3735 = vpop.f32.mrb[0].mxu0
        %v3736 = vadd.f32 %v3316, %v3735
        %v3737 = vpop.f32.mrb[0].mxu0
        %v3738 = vadd.f32 %v3312, %v3737
        %v3739 = vpop.f32.mrb[0].mxu0
        %v3740 = vadd.f32 %v3316, %v3739
        %3741 = vmatprep.mubr.bf16.mxu0 %v3240
        %3742 = vmatmul.mubr.bf16.gmra.mrb[0].mxu0 %v3239
        %v3743 = vpop.f32.mrb[0].mxu0
        %v3744 = vadd.f32 %v3312, %v3743
        %v3745 = vpop.f32.mrb[0].mxu0
        %v3746 = vadd.f32 %v3316, %v3745
        %v3747 = vpop.f32.mrb[0].mxu0
        %v3748 = vadd.f32 %v3312, %v3747
        %v3749 = vpop.f32.mrb[0].mxu0
        %v3750 = vadd.f32 %v3316, %v3749
        %3751 = vmatprep.mubr.bf16.mxu0 %v3242
        %3752 = vmatmul.mubr.bf16.gmra.mrb[0].mxu0 %v3241
        %v3753 = vpop.f32.mrb[0].mxu0
        %v3754 = vadd.f32 %v3312, %v3753
        %v3755 = vpop.f32.mrb[0].mxu0
        %v3756 = vadd.f32 %v3316, %v3755
        %v3757 = vpop.f32.mrb[0].mxu0
        %v3758 = vadd.f32 %v3312, %v3757
        %v3759 = vpop.f32.mrb[0].mxu0
        %v3760 = vadd.f32 %v3316, %v3759
        %3761 = vdwg.mxu0
        %3762 = vmatprep.subr.bf16.mxu0 %v3524
        %3763 = vmatpush1.bf16.msra.mxu0 %v3523
        %3764 = vmatprep.subr.bf16.mxu0 %v3528
        %3765 = vmatpush1.bf16.msra.mxu0 %v3527
        %3766 = vmatprep.subr.bf16.mxu0 %v3532
        %3767 = vmatpush1.bf16.msra.mxu0 %v3531
        %3768 = vmatprep.subr.bf16.mxu0 %v3536
        %3769 = vmatpush1.bf16.msra.mxu0 %v3535
        %3770 = vmatprep.subr.bf16.mxu0 %v3540
        %3771 = vmatpush1.bf16.msra.mxu0 %v3539
        %3772 = vmatprep.subr.bf16.mxu0 %v3544
        %3773 = vmatpush1.bf16.msra.mxu0 %v3543
        %3774 = vmatprep.subr.bf16.mxu0 %v3548
        %3775 = vmatpush1.bf16.msra.mxu0 %v3547
        %3776 = vmatprep.subr.bf16.mxu0 %v3552
        %3777 = vmatpush1.bf16.msra.mxu0 %v3551
        %3778 = vmatprep.subr.bf16.mxu0 %v3556
        %3779 = vmatpush1.bf16.msra.mxu0 %v3555
        %3780 = vmatprep.subr.bf16.mxu0 %v3560
        %3781 = vmatpush1.bf16.msra.mxu0 %v3559
        %3782 = vmatprep.subr.bf16.mxu0 %v3564
        %3783 = vmatpush1.bf16.msra.mxu0 %v3563
        %3784 = vmatprep.subr.bf16.mxu0 %v3568
        %3785 = vmatpush1.bf16.msra.mxu0 %v3567
        %3786 = vmatprep.subr.bf16.mxu0 %v3572
        %3787 = vmatpush1.bf16.msra.mxu0 %v3571
        %3788 = vmatprep.subr.bf16.mxu0 %v3576
        %3789 = vmatpush1.bf16.msra.mxu0 %v3575
        %3790 = vmatprep.subr.bf16.mxu0 %v3580
        %3791 = vmatpush1.bf16.msra.mxu0 %v3579
        %3792 = vmatprep.subr.bf16.mxu0 %v3584
        %3793 = vmatpush1.bf16.msra.mxu0 %v3583
        %3794 = vmatprep.mubr.bf16.mxu0 %v3228
        %3795 = vmatmul.mubr.bf16.gmra.mrb[0].mxu0 %v3227
        %v3796 = vpop.f32.mrb[0].mxu0
        %v3797 = vadd.f32 %v3320, %v3796
        %v3798 = vpop.f32.mrb[0].mxu0
        %v3799 = vadd.f32 %v3324, %v3798
        %v3800 = vpop.f32.mrb[0].mxu0
        %v3801 = vadd.f32 %v3320, %v3800
        %v3802 = vpop.f32.mrb[0].mxu0
        %v3803 = vadd.f32 %v3324, %v3802
        %3804 = vmatprep.mubr.bf16.mxu0 %v3230
        %3805 = vmatmul.mubr.bf16.gmra.mrb[0].mxu0 %v3229
        %v3806 = vpop.f32.mrb[0].mxu0
        %v3807 = vadd.f32 %v3320, %v3806
        %v3808 = vpop.f32.mrb[0].mxu0
        %v3809 = vadd.f32 %v3324, %v3808
        %v3810 = vpop.f32.mrb[0].mxu0
        %v3811 = vadd.f32 %v3320, %v3810
        %v3812 = vpop.f32.mrb[0].mxu0
        %v3813 = vadd.f32 %v3324, %v3812
        %3814 = vmatprep.mubr.bf16.mxu0 %v3232
        %3815 = vmatmul.mubr.bf16.gmra.mrb[0].mxu0 %v3231
        %v3816 = vpop.f32.mrb[0].mxu0
        %v3817 = vadd.f32 %v3320, %v3816
        %v3818 = vpop.f32.mrb[0].mxu0
        %v3819 = vadd.f32 %v3324, %v3818
        %v3820 = vpop.f32.mrb[0].mxu0
        %v3821 = vadd.f32 %v3320, %v3820
        %v3822 = vpop.f32.mrb[0].mxu0
        %v3823 = vadd.f32 %v3324, %v3822
        %3824 = vmatprep.mubr.bf16.mxu0 %v3234
        %3825 = vmatmul.mubr.bf16.gmra.mrb[0].mxu0 %v3233
        %v3826 = vpop.f32.mrb[0].mxu0
        %v3827 = vadd.f32 %v3320, %v3826
        %v3828 = vpop.f32.mrb[0].mxu0
        %v3829 = vadd.f32 %v3324, %v3828
        %v3830 = vpop.f32.mrb[0].mxu0
        %v3831 = vadd.f32 %v3320, %v3830
        %v3832 = vpop.f32.mrb[0].mxu0
        %v3833 = vadd.f32 %v3324, %v3832
        %3834 = vmatprep.mubr.bf16.mxu0 %v3236
        %3835 = vmatmul.mubr.bf16.gmra.mrb[0].mxu0 %v3235
        %v3836 = vpop.f32.mrb[0].mxu0
        %v3837 = vadd.f32 %v3320, %v3836
        %v3838 = vpop.f32.mrb[0].mxu0
        %v3839 = vadd.f32 %v3324, %v3838
        %v3840 = vpop.f32.mrb[0].mxu0
        %v3841 = vadd.f32 %v3320, %v3840
        %v3842 = vpop.f32.mrb[0].mxu0
        %v3843 = vadd.f32 %v3324, %v3842
        %3844 = vmatprep.mubr.bf16.mxu0 %v3238
        %3845 = vmatmul.mubr.bf16.gmra.mrb[0].mxu0 %v3237
        %v3846 = vpop.f32.mrb[0].mxu0
        %v3847 = vadd.f32 %v3320, %v3846
        %v3848 = vpop.f32.mrb[0].mxu0
        %v3849 = vadd.f32 %v3324, %v3848
        %v3850 = vpop.f32.mrb[0].mxu0
        %v3851 = vadd.f32 %v3320, %v3850
        %v3852 = vpop.f32.mrb[0].mxu0
        %v3853 = vadd.f32 %v3324, %v3852
        %3854 = vmatprep.mubr.bf16.mxu0 %v3240
        %3855 = vmatmul.mubr.bf16.gmra.mrb[0].mxu0 %v3239
        %v3856 = vpop.f32.mrb[0].mxu0
        %v3857 = vadd.f32 %v3320, %v3856
        %v3858 = vpop.f32.mrb[0].mxu0
        %v3859 = vadd.f32 %v3324, %v3858
        %v3860 = vpop.f32.mrb[0].mxu0
        %v3861 = vadd.f32 %v3320, %v3860
        %v3862 = vpop.f32.mrb[0].mxu0
        %v3863 = vadd.f32 %v3324, %v3862
        %3864 = vmatprep.mubr.bf16.mxu0 %v3242
        %3865 = vmatmul.mubr.bf16.gmra.mrb[0].mxu0 %v3241
        %v3866 = vpop.f32.mrb[0].mxu0
        %v3867 = vadd.f32 %v3320, %v3866
        %v3868 = vpop.f32.mrb[0].mxu0
        %v3869 = vadd.f32 %v3324, %v3868
        %v3870 = vpop.f32.mrb[0].mxu0
        %v3871 = vadd.f32 %v3320, %v3870
        %v3872 = vpop.f32.mrb[0].mxu0
        %v3873 = vadd.f32 %v3324, %v3872
        %3874 = vdwg.mxu0
        %v3875 = vmul.f32 %v3684, 0.5
        %v3876 = vmul.f32 %v3686, 0.5
        %v3877 = vmul.f32 %v3797, 0.5
        %v3878 = vmul.f32 %v3799, 0.5
        %v3879 = vmul.f32 %v3688, 0.5
        %v3880 = vmul.f32 %v3690, 0.5
        %v3881 = vmul.f32 %v3801, 0.5
        %v3882 = vmul.f32 %v3803, 0.5
        %v3883 = vmul.f32 %v3694, 0.5
        %v3884 = vmul.f32 %v3696, 0.5
        %v3885 = vmul.f32 %v3807, 0.5
        %v3886 = vmul.f32 %v3809, 0.5
        %v3887 = vmul.f32 %v3698, 0.5
        %v3888 = vmul.f32 %v3700, 0.5
        %v3889 = vmul.f32 %v3811, 0.5
        %v3890 = vmul.f32 %v3813, 0.5
        %v3891 = vmul.f32 %v3704, 0.5
        %v3892 = vmul.f32 %v3706, 0.5
        %v3893 = vmul.f32 %v3817, 0.5
        %v3894 = vmul.f32 %v3819, 0.5
        %v3895 = vmul.f32 %v3708, 0.5
        %v3896 = vmul.f32 %v3710, 0.5
        %v3897 = vmul.f32 %v3821, 0.5
        %v3898 = vmul.f32 %v3823, 0.5
        %v3899 = vmul.f32 %v3714, 0.5
        %v3900 = vmul.f32 %v3716, 0.5
        %v3901 = vmul.f32 %v3827, 0.5
        %v3902 = vmul.f32 %v3829, 0.5
        %v3903 = vmul.f32 %v3718, 0.5
        %v3904 = vmul.f32 %v3720, 0.5
        %v3905 = vmul.f32 %v3831, 0.5
        %v3906 = vmul.f32 %v3833, 0.5
        %v3907 = vmul.f32 %v3724, 0.5
        %v3908 = vmul.f32 %v3726, 0.5
        %v3909 = vmul.f32 %v3837, 0.5
        %v3910 = vmul.f32 %v3839, 0.5
        %v3911 = vmul.f32 %v3728, 0.5
        %v3912 = vmul.f32 %v3730, 0.5
        %v3913 = vmul.f32 %v3841, 0.5
        %v3914 = vmul.f32 %v3843, 0.5
        %v3915 = vmul.f32 %v3734, 0.5
        %v3916 = vmul.f32 %v3736, 0.5
        %v3917 = vmul.f32 %v3847, 0.5
        %v3918 = vmul.f32 %v3849, 0.5
        %v3919 = vmul.f32 %v3738, 0.5
        %v3920 = vmul.f32 %v3740, 0.5
        %v3921 = vmul.f32 %v3851, 0.5
        %v3922 = vmul.f32 %v3853, 0.5
        %v3923 = vmul.f32 %v3744, 0.5
        %v3924 = vmul.f32 %v3746, 0.5
        %v3925 = vmul.f32 %v3857, 0.5
        %v3926 = vmul.f32 %v3859, 0.5
        %v3927 = vmul.f32 %v3748, 0.5
        %v3928 = vmul.f32 %v3750, 0.5
        %v3929 = vmul.f32 %v3861, 0.5
        %v3930 = vmul.f32 %v3863, 0.5
        %v3931 = vmul.f32 %v3754, 0.5
        %v3932 = vmul.f32 %v3756, 0.5
        %v3933 = vmul.f32 %v3867, 0.5
        %v3934 = vmul.f32 %v3869, 0.5
        %v3935 = vmul.f32 %v3758, 0.5
        %v3936 = vmul.f32 %v3760, 0.5
        %v3937 = vmul.f32 %v3871, 0.5
        %v3938 = vmul.f32 %v3873, 0.5
        %v3939 = vmul.f32 %v3684, %v3684
        %v3940 = vmul.f32 %v3686, %v3686
        %v3941 = vmul.f32 %v3797, %v3797
        %v3942 = vmul.f32 %v3799, %v3799
        %v3943 = vmul.f32 %v3688, %v3688
        %v3944 = vmul.f32 %v3690, %v3690
        %v3945 = vmul.f32 %v3801, %v3801
        %v3946 = vmul.f32 %v3803, %v3803
        %v3947 = vmul.f32 %v3694, %v3694
        %v3948 = vmul.f32 %v3696, %v3696
        %v3949 = vmul.f32 %v3807, %v3807
        %v3950 = vmul.f32 %v3809, %v3809
        %v3951 = vmul.f32 %v3698, %v3698
        %v3952 = vmul.f32 %v3700, %v3700
        %v3953 = vmul.f32 %v3811, %v3811
        %v3954 = vmul.f32 %v3813, %v3813
        %v3955 = vmul.f32 %v3704, %v3704
        %v3956 = vmul.f32 %v3706, %v3706
        %v3957 = vmul.f32 %v3817, %v3817
        %v3958 = vmul.f32 %v3819, %v3819
        %v3959 = vmul.f32 %v3708, %v3708
        %v3960 = vmul.f32 %v3710, %v3710
        %v3961 = vmul.f32 %v3821, %v3821
        %v3962 = vmul.f32 %v3823, %v3823
        %v3963 = vmul.f32 %v3714, %v3714
        %v3964 = vmul.f32 %v3716, %v3716
        %v3965 = vmul.f32 %v3827, %v3827
        %v3966 = vmul.f32 %v3829, %v3829
        %v3967 = vmul.f32 %v3718, %v3718
        %v3968 = vmul.f32 %v3720, %v3720
        %v3969 = vmul.f32 %v3831, %v3831
        %v3970 = vmul.f32 %v3833, %v3833
        %v3971 = vmul.f32 %v3724, %v3724
        %v3972 = vmul.f32 %v3726, %v3726
        %v3973 = vmul.f32 %v3837, %v3837
        %v3974 = vmul.f32 %v3839, %v3839
        %v3975 = vmul.f32 %v3728, %v3728
        %v3976 = vmul.f32 %v3730, %v3730
        %v3977 = vmul.f32 %v3841, %v3841
        %v3978 = vmul.f32 %v3843, %v3843
        %v3979 = vmul.f32 %v3734, %v3734
        %v3980 = vmul.f32 %v3736, %v3736
        %v3981 = vmul.f32 %v3847, %v3847
        %v3982 = vmul.f32 %v3849, %v3849
        %v3983 = vmul.f32 %v3738, %v3738
        %v3984 = vmul.f32 %v3740, %v3740
        %v3985 = vmul.f32 %v3851, %v3851
        %v3986 = vmul.f32 %v3853, %v3853
        %v3987 = vmul.f32 %v3744, %v3744
        %v3988 = vmul.f32 %v3746, %v3746
        %v3989 = vmul.f32 %v3857, %v3857
        %v3990 = vmul.f32 %v3859, %v3859
        %v3991 = vmul.f32 %v3748, %v3748
        %v3992 = vmul.f32 %v3750, %v3750
        %v3993 = vmul.f32 %v3861, %v3861
        %v3994 = vmul.f32 %v3863, %v3863
        %v3995 = vmul.f32 %v3754, %v3754
        %v3996 = vmul.f32 %v3756, %v3756
        %v3997 = vmul.f32 %v3867, %v3867
        %v3998 = vmul.f32 %v3869, %v3869
        %v3999 = vmul.f32 %v3758, %v3758
        %v4000 = vmul.f32 %v3760, %v3760
        %v4001 = vmul.f32 %v3871, %v3871
        %v4002 = vmul.f32 %v3873, %v3873
        %v4003 = vmul.f32 %v3684, %v3939
        %v4004 = vmul.f32 %v3686, %v3940
        %v4005 = vmul.f32 %v3797, %v3941
        %v4006 = vmul.f32 %v3799, %v3942
        %v4007 = vmul.f32 %v3688, %v3943
        %v4008 = vmul.f32 %v3690, %v3944
        %v4009 = vmul.f32 %v3801, %v3945
        %v4010 = vmul.f32 %v3803, %v3946
        %v4011 = vmul.f32 %v3694, %v3947
        %v4012 = vmul.f32 %v3696, %v3948
        %v4013 = vmul.f32 %v3807, %v3949
        %v4014 = vmul.f32 %v3809, %v3950
        %v4015 = vmul.f32 %v3698, %v3951
        %v4016 = vmul.f32 %v3700, %v3952
        %v4017 = vmul.f32 %v3811, %v3953
        %v4018 = vmul.f32 %v3813, %v3954
        %v4019 = vmul.f32 %v3704, %v3955
        %v4020 = vmul.f32 %v3706, %v3956
        %v4021 = vmul.f32 %v3817, %v3957
        %v4022 = vmul.f32 %v3819, %v3958
        %v4023 = vmul.f32 %v3708, %v3959
        %v4024 = vmul.f32 %v3710, %v3960
        %v4025 = vmul.f32 %v3821, %v3961
        %v4026 = vmul.f32 %v3823, %v3962
        %v4027 = vmul.f32 %v3714, %v3963
        %v4028 = vmul.f32 %v3716, %v3964
        %v4029 = vmul.f32 %v3827, %v3965
        %v4030 = vmul.f32 %v3829, %v3966
        %v4031 = vmul.f32 %v3718, %v3967
        %v4032 = vmul.f32 %v3720, %v3968
        %v4033 = vmul.f32 %v3831, %v3969
        %v4034 = vmul.f32 %v3833, %v3970
        %v4035 = vmul.f32 %v3724, %v3971
        %v4036 = vmul.f32 %v3726, %v3972
        %v4037 = vmul.f32 %v3837, %v3973
        %v4038 = vmul.f32 %v3839, %v3974
        %v4039 = vmul.f32 %v3728, %v3975
        %v4040 = vmul.f32 %v3730, %v3976
        %v4041 = vmul.f32 %v3841, %v3977
        %v4042 = vmul.f32 %v3843, %v3978
        %v4043 = vmul.f32 %v3734, %v3979
        %v4044 = vmul.f32 %v3736, %v3980
        %v4045 = vmul.f32 %v3847, %v3981
        %v4046 = vmul.f32 %v3849, %v3982
        %v4047 = vmul.f32 %v3738, %v3983
        %v4048 = vmul.f32 %v3740, %v3984
        %v4049 = vmul.f32 %v3851, %v3985
        %v4050 = vmul.f32 %v3853, %v3986
        %v4051 = vmul.f32 %v3744, %v3987
        %v4052 = vmul.f32 %v3746, %v3988
        %v4053 = vmul.f32 %v3857, %v3989
        %v4054 = vmul.f32 %v3859, %v3990
        %v4055 = vmul.f32 %v3748, %v3991
        %v4056 = vmul.f32 %v3750, %v3992
        %v4057 = vmul.f32 %v3861, %v3993
        %v4058 = vmul.f32 %v3863, %v3994
        %v4059 = vmul.f32 %v3754, %v3995
        %v4060 = vmul.f32 %v3756, %v3996
        %v4061 = vmul.f32 %v3867, %v3997
        %v4062 = vmul.f32 %v3869, %v3998
        %v4063 = vmul.f32 %v3758, %v3999
        %v4064 = vmul.f32 %v3760, %v4000
        %v4065 = vmul.f32 %v3871, %v4001
        %v4066 = vmul.f32 %v3873, %v4002
        %v4067 = vmul.f32 %v4003, 0.044715
        %v4068 = vmul.f32 %v4004, 0.044715
        %v4069 = vmul.f32 %v4005, 0.044715
        %v4070 = vmul.f32 %v4006, 0.044715
        %v4071 = vmul.f32 %v4007, 0.044715
        %v4072 = vmul.f32 %v4008, 0.044715
        %v4073 = vmul.f32 %v4009, 0.044715
        %v4074 = vmul.f32 %v4010, 0.044715
        %v4075 = vmul.f32 %v4011, 0.044715
        %v4076 = vmul.f32 %v4012, 0.044715
        %v4077 = vmul.f32 %v4013, 0.044715
        %v4078 = vmul.f32 %v4014, 0.044715
        %v4079 = vmul.f32 %v4015, 0.044715
        %v4080 = vmul.f32 %v4016, 0.044715
        %v4081 = vmul.f32 %v4017, 0.044715
        %v4082 = vmul.f32 %v4018, 0.044715
        %v4083 = vmul.f32 %v4019, 0.044715
        %v4084 = vmul.f32 %v4020, 0.044715
        %v4085 = vmul.f32 %v4021, 0.044715
        %v4086 = vmul.f32 %v4022, 0.044715
        %v4087 = vmul.f32 %v4023, 0.044715
        %v4088 = vmul.f32 %v4024, 0.044715
        %v4089 = vmul.f32 %v4025, 0.044715
        %v4090 = vmul.f32 %v4026, 0.044715
        %v4091 = vmul.f32 %v4027, 0.044715
        %v4092 = vmul.f32 %v4028, 0.044715
        %v4093 = vmul.f32 %v4029, 0.044715
        %v4094 = vmul.f32 %v4030, 0.044715
        %v4095 = vmul.f32 %v4031, 0.044715
        %v4096 = vmul.f32 %v4032, 0.044715
        %v4097 = vmul.f32 %v4033, 0.044715
        %v4098 = vmul.f32 %v4034, 0.044715
        %v4099 = vmul.f32 %v4035, 0.044715
        %v4100 = vmul.f32 %v4036, 0.044715
        %v4101 = vmul.f32 %v4037, 0.044715
        %v4102 = vmul.f32 %v4038, 0.044715
        %v4103 = vmul.f32 %v4039, 0.044715
        %v4104 = vmul.f32 %v4040, 0.044715
        %v4105 = vmul.f32 %v4041, 0.044715
        %v4106 = vmul.f32 %v4042, 0.044715
        %v4107 = vmul.f32 %v4043, 0.044715
        %v4108 = vmul.f32 %v4044, 0.044715
        %v4109 = vmul.f32 %v4045, 0.044715
        %v4110 = vmul.f32 %v4046, 0.044715
        %v4111 = vmul.f32 %v4047, 0.044715
        %v4112 = vmul.f32 %v4048, 0.044715
        %v4113 = vmul.f32 %v4049, 0.044715
        %v4114 = vmul.f32 %v4050, 0.044715
        %v4115 = vmul.f32 %v4051, 0.044715
        %v4116 = vmul.f32 %v4052, 0.044715
        %v4117 = vmul.f32 %v4053, 0.044715
        %v4118 = vmul.f32 %v4054, 0.044715
        %v4119 = vmul.f32 %v4055, 0.044715
        %v4120 = vmul.f32 %v4056, 0.044715
        %v4121 = vmul.f32 %v4057, 0.044715
        %v4122 = vmul.f32 %v4058, 0.044715
        %v4123 = vmul.f32 %v4059, 0.044715
        %v4124 = vmul.f32 %v4060, 0.044715
        %v4125 = vmul.f32 %v4061, 0.044715
        %v4126 = vmul.f32 %v4062, 0.044715
        %v4127 = vmul.f32 %v4063, 0.044715
        %v4128 = vmul.f32 %v4064, 0.044715
        %v4129 = vmul.f32 %v4065, 0.044715
        %v4130 = vmul.f32 %v4066, 0.044715
        %v4131 = vadd.f32 %v3684, %v4067
        %v4132 = vadd.f32 %v3686, %v4068
        %v4133 = vadd.f32 %v3797, %v4069
        %v4134 = vadd.f32 %v3799, %v4070
        %v4135 = vadd.f32 %v3688, %v4071
        %v4136 = vadd.f32 %v3690, %v4072
        %v4137 = vadd.f32 %v3801, %v4073
        %v4138 = vadd.f32 %v3803, %v4074
        %v4139 = vadd.f32 %v3694, %v4075
        %v4140 = vadd.f32 %v3696, %v4076
        %v4141 = vadd.f32 %v3807, %v4077
        %v4142 = vadd.f32 %v3809, %v4078
        %v4143 = vadd.f32 %v3698, %v4079
        %v4144 = vadd.f32 %v3700, %v4080
        %v4145 = vadd.f32 %v3811, %v4081
        %v4146 = vadd.f32 %v3813, %v4082
        %v4147 = vadd.f32 %v3704, %v4083
        %v4148 = vadd.f32 %v3706, %v4084
        %v4149 = vadd.f32 %v3817, %v4085
        %v4150 = vadd.f32 %v3819, %v4086
        %v4151 = vadd.f32 %v3708, %v4087
        %v4152 = vadd.f32 %v3710, %v4088
        %v4153 = vadd.f32 %v3821, %v4089
        %v4154 = vadd.f32 %v3823, %v4090
        %v4155 = vadd.f32 %v3714, %v4091
        %v4156 = vadd.f32 %v3716, %v4092
        %v4157 = vadd.f32 %v3827, %v4093
        %v4158 = vadd.f32 %v3829, %v4094
        %v4159 = vadd.f32 %v3718, %v4095
        %v4160 = vadd.f32 %v3720, %v4096
        %v4161 = vadd.f32 %v3831, %v4097
        %v4162 = vadd.f32 %v3833, %v4098
        %v4163 = vadd.f32 %v3724, %v4099
        %v4164 = vadd.f32 %v3726, %v4100
        %v4165 = vadd.f32 %v3837, %v4101
        %v4166 = vadd.f32 %v3839, %v4102
        %v4167 = vadd.f32 %v3728, %v4103
        %v4168 = vadd.f32 %v3730, %v4104
        %v4169 = vadd.f32 %v3841, %v4105
        %v4170 = vadd.f32 %v3843, %v4106
        %v4171 = vadd.f32 %v3734, %v4107
        %v4172 = vadd.f32 %v3736, %v4108
        %v4173 = vadd.f32 %v3847, %v4109
        %v4174 = vadd.f32 %v3849, %v4110
        %v4175 = vadd.f32 %v3738, %v4111
        %v4176 = vadd.f32 %v3740, %v4112
        %v4177 = vadd.f32 %v3851, %v4113
        %v4178 = vadd.f32 %v3853, %v4114
        %v4179 = vadd.f32 %v3744, %v4115
        %v4180 = vadd.f32 %v3746, %v4116
        %v4181 = vadd.f32 %v3857, %v4117
        %v4182 = vadd.f32 %v3859, %v4118
        %v4183 = vadd.f32 %v3748, %v4119
        %v4184 = vadd.f32 %v3750, %v4120
        %v4185 = vadd.f32 %v3861, %v4121
        %v4186 = vadd.f32 %v3863, %v4122
        %v4187 = vadd.f32 %v3754, %v4123
        %v4188 = vadd.f32 %v3756, %v4124
        %v4189 = vadd.f32 %v3867, %v4125
        %v4190 = vadd.f32 %v3869, %v4126
        %v4191 = vadd.f32 %v3758, %v4127
        %v4192 = vadd.f32 %v3760, %v4128
        %v4193 = vadd.f32 %v3871, %v4129
        %v4194 = vadd.f32 %v3873, %v4130
        %v4195 = vmul.f32 %v4131, 0.7978846
        %v4196 = vmul.f32 %v4132, 0.7978846
        %v4197 = vmul.f32 %v4133, 0.7978846
        %v4198 = vmul.f32 %v4134, 0.7978846
        %v4199 = vmul.f32 %v4135, 0.7978846
        %v4200 = vmul.f32 %v4136, 0.7978846
        %v4201 = vmul.f32 %v4137, 0.7978846
        %v4202 = vmul.f32 %v4138, 0.7978846
        %v4203 = vmul.f32 %v4139, 0.7978846
        %v4204 = vmul.f32 %v4140, 0.7978846
        %v4205 = vmul.f32 %v4141, 0.7978846
        %v4206 = vmul.f32 %v4142, 0.7978846
        %v4207 = vmul.f32 %v4143, 0.7978846
        %v4208 = vmul.f32 %v4144, 0.7978846
        %v4209 = vmul.f32 %v4145, 0.7978846
        %v4210 = vmul.f32 %v4146, 0.7978846
        %v4211 = vmul.f32 %v4147, 0.7978846
        %v4212 = vmul.f32 %v4148, 0.7978846
        %v4213 = vmul.f32 %v4149, 0.7978846
        %v4214 = vmul.f32 %v4150, 0.7978846
        %v4215 = vmul.f32 %v4151, 0.7978846
        %v4216 = vmul.f32 %v4152, 0.7978846
        %v4217 = vmul.f32 %v4153, 0.7978846
        %v4218 = vmul.f32 %v4154, 0.7978846
        %v4219 = vmul.f32 %v4155, 0.7978846
        %v4220 = vmul.f32 %v4156, 0.7978846
        %v4221 = vmul.f32 %v4157, 0.7978846
        %v4222 = vmul.f32 %v4158, 0.7978846
        %v4223 = vmul.f32 %v4159, 0.7978846
        %v4224 = vmul.f32 %v4160, 0.7978846
        %v4225 = vmul.f32 %v4161, 0.7978846
        %v4226 = vmul.f32 %v4162, 0.7978846
        %v4227 = vmul.f32 %v4163, 0.7978846
        %v4228 = vmul.f32 %v4164, 0.7978846
        %v4229 = vmul.f32 %v4165, 0.7978846
        %v4230 = vmul.f32 %v4166, 0.7978846
        %v4231 = vmul.f32 %v4167, 0.7978846
        %v4232 = vmul.f32 %v4168, 0.7978846
        %v4233 = vmul.f32 %v4169, 0.7978846
        %v4234 = vmul.f32 %v4170, 0.7978846
        %v4235 = vmul.f32 %v4171, 0.7978846
        %v4236 = vmul.f32 %v4172, 0.7978846
        %v4237 = vmul.f32 %v4173, 0.7978846
        %v4238 = vmul.f32 %v4174, 0.7978846
        %v4239 = vmul.f32 %v4175, 0.7978846
        %v4240 = vmul.f32 %v4176, 0.7978846
        %v4241 = vmul.f32 %v4177, 0.7978846
        %v4242 = vmul.f32 %v4178, 0.7978846
        %v4243 = vmul.f32 %v4179, 0.7978846
        %v4244 = vmul.f32 %v4180, 0.7978846
        %v4245 = vmul.f32 %v4181, 0.7978846
        %v4246 = vmul.f32 %v4182, 0.7978846
        %v4247 = vmul.f32 %v4183, 0.7978846
        %v4248 = vmul.f32 %v4184, 0.7978846
        %v4249 = vmul.f32 %v4185, 0.7978846
        %v4250 = vmul.f32 %v4186, 0.7978846
        %v4251 = vmul.f32 %v4187, 0.7978846
        %v4252 = vmul.f32 %v4188, 0.7978846
        %v4253 = vmul.f32 %v4189, 0.7978846
        %v4254 = vmul.f32 %v4190, 0.7978846
        %v4255 = vmul.f32 %v4191, 0.7978846
        %v4256 = vmul.f32 %v4192, 0.7978846
        %v4257 = vmul.f32 %v4193, 0.7978846
        %v4258 = vmul.f32 %v4194, 0.7978846
        %v4259 = vtanh.pop %v4195
        %v4260 = vtanh.pop %v4196
        %v4261 = vtanh.pop %v4197
        %v4262 = vtanh.pop %v4198
        %v4263 = vtanh.pop %v4199
        %v4264 = vtanh.pop %v4200
        %v4265 = vtanh.pop %v4201
        %v4266 = vtanh.pop %v4202
        %v4267 = vtanh.pop %v4203
        %v4268 = vtanh.pop %v4204
        %v4269 = vtanh.pop %v4205
        %v4270 = vtanh.pop %v4206
        %v4271 = vtanh.pop %v4207
        %v4272 = vtanh.pop %v4208
        %v4273 = vtanh.pop %v4209
        %v4274 = vtanh.pop %v4210
        %v4275 = vtanh.pop %v4211
        %v4276 = vtanh.pop %v4212
        %v4277 = vtanh.pop %v4213
        %v4278 = vtanh.pop %v4214
        %v4279 = vtanh.pop %v4215
        %v4280 = vtanh.pop %v4216
        %v4281 = vtanh.pop %v4217
        %v4282 = vtanh.pop %v4218
        %v4283 = vtanh.pop %v4219
        %v4284 = vtanh.pop %v4220
        %v4285 = vtanh.pop %v4221
        %v4286 = vtanh.pop %v4222
        %v4287 = vtanh.pop %v4223
        %v4288 = vtanh.pop %v4224
        %v4289 = vtanh.pop %v4225
        %v4290 = vtanh.pop %v4226
        %v4291 = vtanh.pop %v4227
        %v4292 = vtanh.pop %v4228
        %v4293 = vtanh.pop %v4229
        %v4294 = vtanh.pop %v4230
        %v4295 = vtanh.pop %v4231
        %v4296 = vtanh.pop %v4232
        %v4297 = vtanh.pop %v4233
        %v4298 = vtanh.pop %v4234
        %v4299 = vtanh.pop %v4235
        %v4300 = vtanh.pop %v4236
        %v4301 = vtanh.pop %v4237
        %v4302 = vtanh.pop %v4238
        %v4303 = vtanh.pop %v4239
        %v4304 = vtanh.pop %v4240
        %v4305 = vtanh.pop %v4241
        %v4306 = vtanh.pop %v4242
        %v4307 = vtanh.pop %v4243
        %v4308 = vtanh.pop %v4244
        %v4309 = vtanh.pop %v4245
        %v4310 = vtanh.pop %v4246
        %v4311 = vtanh.pop %v4247
        %v4312 = vtanh.pop %v4248
        %v4313 = vtanh.pop %v4249
        %v4314 = vtanh.pop %v4250
        %v4315 = vtanh.pop %v4251
        %v4316 = vtanh.pop %v4252
        %v4317 = vtanh.pop %v4253
        %v4318 = vtanh.pop %v4254
        %v4319 = vtanh.pop %v4255
        %v4320 = vtanh.pop %v4256
        %v4321 = vtanh.pop %v4257
        %v4322 = vtanh.pop %v4258
        %v4323 = vadd.f32 %v4259, 1.0
        %v4324 = vadd.f32 %v4260, 1.0
        %v4325 = vadd.f32 %v4261, 1.0
        %v4326 = vadd.f32 %v4262, 1.0
        %v4327 = vadd.f32 %v4263, 1.0
        %v4328 = vadd.f32 %v4264, 1.0
        %v4329 = vadd.f32 %v4265, 1.0
        %v4330 = vadd.f32 %v4266, 1.0
        %v4331 = vadd.f32 %v4267, 1.0
        %v4332 = vadd.f32 %v4268, 1.0
        %v4333 = vadd.f32 %v4269, 1.0
        %v4334 = vadd.f32 %v4270, 1.0
        %v4335 = vadd.f32 %v4271, 1.0
        %v4336 = vadd.f32 %v4272, 1.0
        %v4337 = vadd.f32 %v4273, 1.0
        %v4338 = vadd.f32 %v4274, 1.0
        %v4339 = vadd.f32 %v4275, 1.0
        %v4340 = vadd.f32 %v4276, 1.0
        %v4341 = vadd.f32 %v4277, 1.0
        %v4342 = vadd.f32 %v4278, 1.0
        %v4343 = vadd.f32 %v4279, 1.0
        %v4344 = vadd.f32 %v4280, 1.0
        %v4345 = vadd.f32 %v4281, 1.0
        %v4346 = vadd.f32 %v4282, 1.0
        %v4347 = vadd.f32 %v4283, 1.0
        %v4348 = vadd.f32 %v4284, 1.0
        %v4349 = vadd.f32 %v4285, 1.0
        %v4350 = vadd.f32 %v4286, 1.0
        %v4351 = vadd.f32 %v4287, 1.0
        %v4352 = vadd.f32 %v4288, 1.0
        %v4353 = vadd.f32 %v4289, 1.0
        %v4354 = vadd.f32 %v4290, 1.0
        %v4355 = vadd.f32 %v4291, 1.0
        %v4356 = vadd.f32 %v4292, 1.0
        %v4357 = vadd.f32 %v4293, 1.0
        %v4358 = vadd.f32 %v4294, 1.0
        %v4359 = vadd.f32 %v4295, 1.0
        %v4360 = vadd.f32 %v4296, 1.0
        %v4361 = vadd.f32 %v4297, 1.0
        %v4362 = vadd.f32 %v4298, 1.0
        %v4363 = vadd.f32 %v4299, 1.0
        %v4364 = vadd.f32 %v4300, 1.0
        %v4365 = vadd.f32 %v4301, 1.0
        %v4366 = vadd.f32 %v4302, 1.0
        %v4367 = vadd.f32 %v4303, 1.0
        %v4368 = vadd.f32 %v4304, 1.0
        %v4369 = vadd.f32 %v4305, 1.0
        %v4370 = vadd.f32 %v4306, 1.0
        %v4371 = vadd.f32 %v4307, 1.0
        %v4372 = vadd.f32 %v4308, 1.0
        %v4373 = vadd.f32 %v4309, 1.0
        %v4374 = vadd.f32 %v4310, 1.0
        %v4375 = vadd.f32 %v4311, 1.0
        %v4376 = vadd.f32 %v4312, 1.0
        %v4377 = vadd.f32 %v4313, 1.0
        %v4378 = vadd.f32 %v4314, 1.0
        %v4379 = vadd.f32 %v4315, 1.0
        %v4380 = vadd.f32 %v4316, 1.0
        %v4381 = vadd.f32 %v4317, 1.0
        %v4382 = vadd.f32 %v4318, 1.0
        %v4383 = vadd.f32 %v4319, 1.0
        %v4384 = vadd.f32 %v4320, 1.0
        %v4385 = vadd.f32 %v4321, 1.0
        %v4386 = vadd.f32 %v4322, 1.0
        %v4387 = vmul.f32 %v3875, %v4323
        %v4388 = vmul.f32 %v3876, %v4324
        %v4389 = vmul.f32 %v3877, %v4325
        %v4390 = vmul.f32 %v3878, %v4326
        %v4391 = vmul.f32 %v3879, %v4327
        %v4392 = vmul.f32 %v3880, %v4328
        %v4393 = vmul.f32 %v3881, %v4329
        %v4394 = vmul.f32 %v3882, %v4330
        %v4395 = vmul.f32 %v3883, %v4331
        %v4396 = vmul.f32 %v3884, %v4332
        %v4397 = vmul.f32 %v3885, %v4333
        %v4398 = vmul.f32 %v3886, %v4334
        %v4399 = vmul.f32 %v3887, %v4335
        %v4400 = vmul.f32 %v3888, %v4336
        %v4401 = vmul.f32 %v3889, %v4337
        %v4402 = vmul.f32 %v3890, %v4338
        %v4403 = vmul.f32 %v3891, %v4339
        %v4404 = vmul.f32 %v3892, %v4340
        %v4405 = vmul.f32 %v3893, %v4341
        %v4406 = vmul.f32 %v3894, %v4342
        %v4407 = vmul.f32 %v3895, %v4343
        %v4408 = vmul.f32 %v3896, %v4344
        %v4409 = vmul.f32 %v3897, %v4345
        %v4410 = vmul.f32 %v3898, %v4346
        %v4411 = vmul.f32 %v3899, %v4347
        %v4412 = vmul.f32 %v3900, %v4348
        %v4413 = vmul.f32 %v3901, %v4349
        %v4414 = vmul.f32 %v3902, %v4350
        %v4415 = vmul.f32 %v3903, %v4351
        %v4416 = vmul.f32 %v3904, %v4352
        %v4417 = vmul.f32 %v3905, %v4353
        %v4418 = vmul.f32 %v3906, %v4354
        %v4419 = vmul.f32 %v3907, %v4355
        %v4420 = vmul.f32 %v3908, %v4356
        %v4421 = vmul.f32 %v3909, %v4357
        %v4422 = vmul.f32 %v3910, %v4358
        %v4423 = vmul.f32 %v3911, %v4359
        %v4424 = vmul.f32 %v3912, %v4360
        %v4425 = vmul.f32 %v3913, %v4361
        %v4426 = vmul.f32 %v3914, %v4362
        %v4427 = vmul.f32 %v3915, %v4363
        %v4428 = vmul.f32 %v3916, %v4364
        %v4429 = vmul.f32 %v3917, %v4365
        %v4430 = vmul.f32 %v3918, %v4366
        %v4431 = vmul.f32 %v3919, %v4367
        %v4432 = vmul.f32 %v3920, %v4368
        %v4433 = vmul.f32 %v3921, %v4369
        %v4434 = vmul.f32 %v3922, %v4370
        %v4435 = vmul.f32 %v3923, %v4371
        %v4436 = vmul.f32 %v3924, %v4372
        %v4437 = vmul.f32 %v3925, %v4373
        %v4438 = vmul.f32 %v3926, %v4374
        %v4439 = vmul.f32 %v3927, %v4375
        %v4440 = vmul.f32 %v3928, %v4376
        %v4441 = vmul.f32 %v3929, %v4377
        %v4442 = vmul.f32 %v3930, %v4378
        %v4443 = vmul.f32 %v3931, %v4379
        %v4444 = vmul.f32 %v3932, %v4380
        %v4445 = vmul.f32 %v3933, %v4381
        %v4446 = vmul.f32 %v3934, %v4382
        %v4447 = vmul.f32 %v3935, %v4383
        %v4448 = vmul.f32 %v3936, %v4384
        %v4449 = vmul.f32 %v3937, %v4385
        %v4450 = vmul.f32 %v3938, %v4386
        %v4451 = vpack.c.bf16 %v4391, %v4387
        %v4452 = vpack.c.bf16 %v4392, %v4388
        %v4453 = vpack.c.bf16 %v4393, %v4389
        %v4454 = vpack.c.bf16 %v4394, %v4390
        %v4455 = vpack.c.bf16 %v4399, %v4395
        %v4456 = vpack.c.bf16 %v4400, %v4396
        %v4457 = vpack.c.bf16 %v4401, %v4397
        %v4458 = vpack.c.bf16 %v4402, %v4398
        %v4459 = vpack.c.bf16 %v4407, %v4403
        %v4460 = vpack.c.bf16 %v4408, %v4404
        %v4461 = vpack.c.bf16 %v4409, %v4405
        %v4462 = vpack.c.bf16 %v4410, %v4406
        %v4463 = vpack.c.bf16 %v4415, %v4411
        %v4464 = vpack.c.bf16 %v4416, %v4412
        %v4465 = vpack.c.bf16 %v4417, %v4413
        %v4466 = vpack.c.bf16 %v4418, %v4414
        %v4467 = vpack.c.bf16 %v4423, %v4419
        %v4468 = vpack.c.bf16 %v4424, %v4420
        %v4469 = vpack.c.bf16 %v4425, %v4421
        %v4470 = vpack.c.bf16 %v4426, %v4422
        %v4471 = vpack.c.bf16 %v4431, %v4427
        %v4472 = vpack.c.bf16 %v4432, %v4428
        %v4473 = vpack.c.bf16 %v4433, %v4429
        %v4474 = vpack.c.bf16 %v4434, %v4430
        %v4475 = vpack.c.bf16 %v4439, %v4435
        %v4476 = vpack.c.bf16 %v4440, %v4436
        %v4477 = vpack.c.bf16 %v4441, %v4437
        %v4478 = vpack.c.bf16 %v4442, %v4438
        %v4479 = vpack.c.bf16 %v4447, %v4443
        %v4480 = vpack.c.bf16 %v4448, %v4444
        %v4481 = vpack.c.bf16 %v4449, %v4445
        %v4482 = vpack.c.bf16 %v4450, %v4446
        %v4483 = vld [vmem:[%s673] sm:$0xff]
        %v4484 = vld [vmem:[%s673 + $0x8] sm:$0xff]
        %v4485 = vld [vmem:[%s673 + $0x10] sm:$0xff]
        %v4486 = vld [vmem:[%s673 + $0x18] sm:$0xff]
        %v4487 = vld [vmem:[%s673 + $0x20] sm:$0xff]
        %v4488 = vld [vmem:[%s673 + $0x28] sm:$0xff]
        %v4489 = vld [vmem:[%s673 + $0x30] sm:$0xff]
        %v4490 = vld [vmem:[%s673 + $0x38] sm:$0xff]
        %v4491 = vld [vmem:[%s673 + $0x40] sm:$0xff]
        %v4492 = vld [vmem:[%s673 + $0x48] sm:$0xff]
        %v4493 = vld [vmem:[%s673 + $0x50] sm:$0xff]
        %v4494 = vld [vmem:[%s673 + $0x58] sm:$0xff]
        %v4495 = vld [vmem:[%s673 + $0x60] sm:$0xff]
        %v4496 = vld [vmem:[%s673 + $0x68] sm:$0xff]
        %v4497 = vld [vmem:[%s673 + $0x70] sm:$0xff]
        %v4498 = vld [vmem:[%s673 + $0x78] sm:$0xff]
        %v4499 = vld [vmem:[%s673 + $0x80] sm:$0xff]
        %v4500 = vld [vmem:[%s673 + $0x88] sm:$0xff]
        %v4501 = vld [vmem:[%s673 + $0x90] sm:$0xff]
        %v4502 = vld [vmem:[%s673 + $0x98] sm:$0xff]
        %v4503 = vld [vmem:[%s673 + $0xa0] sm:$0xff]
        %v4504 = vld [vmem:[%s673 + $0xa8] sm:$0xff]
        %v4505 = vld [vmem:[%s673 + $0xb0] sm:$0xff]
        %v4506 = vld [vmem:[%s673 + $0xb8] sm:$0xff]
        %v4507 = vld [vmem:[%s673 + $0xc0] sm:$0xff]
        %v4508 = vld [vmem:[%s673 + $0xc8] sm:$0xff]
        %v4509 = vld [vmem:[%s673 + $0xd0] sm:$0xff]
        %v4510 = vld [vmem:[%s673 + $0xd8] sm:$0xff]
        %v4511 = vld [vmem:[%s673 + $0xe0] sm:$0xff]
        %v4512 = vld [vmem:[%s673 + $0xe8] sm:$0xff]
        %v4513 = vld [vmem:[%s673 + $0xf0] sm:$0xff]
        %v4514 = vld [vmem:[%s673 + $0xf8] sm:$0xff]
        %v4515 = vld [vmem:[%s673 + $0x100] sm:$0xff]
        %v4516 = vld [vmem:[%s673 + $0x108] sm:$0xff]
        %v4517 = vld [vmem:[%s673 + $0x110] sm:$0xff]
        %v4518 = vld [vmem:[%s673 + $0x118] sm:$0xff]
        %v4519 = vld [vmem:[%s673 + $0x120] sm:$0xff]
        %v4520 = vld [vmem:[%s673 + $0x128] sm:$0xff]
        %v4521 = vld [vmem:[%s673 + $0x130] sm:$0xff]
        %v4522 = vld [vmem:[%s673 + $0x138] sm:$0xff]
        %v4523 = vld [vmem:[%s673 + $0x140] sm:$0xff]
        %v4524 = vld [vmem:[%s673 + $0x148] sm:$0xff]
        %v4525 = vld [vmem:[%s673 + $0x150] sm:$0xff]
        %v4526 = vld [vmem:[%s673 + $0x158] sm:$0xff]
        %v4527 = vld [vmem:[%s673 + $0x160] sm:$0xff]
        %v4528 = vld [vmem:[%s673 + $0x168] sm:$0xff]
        %v4529 = vld [vmem:[%s673 + $0x170] sm:$0xff]
        %v4530 = vld [vmem:[%s673 + $0x178] sm:$0xff]
        %v4531 = vld [vmem:[%s673 + $0x180] sm:$0xff]
        %v4532 = vld [vmem:[%s673 + $0x188] sm:$0xff]
        %v4533 = vld [vmem:[%s673 + $0x190] sm:$0xff]
        %v4534 = vld [vmem:[%s673 + $0x198] sm:$0xff]
        %v4535 = vld [vmem:[%s673 + $0x1a0] sm:$0xff]
        %v4536 = vld [vmem:[%s673 + $0x1a8] sm:$0xff]
        %v4537 = vld [vmem:[%s673 + $0x1b0] sm:$0xff]
        %v4538 = vld [vmem:[%s673 + $0x1b8] sm:$0xff]
        %v4539 = vld [vmem:[%s673 + $0x1c0] sm:$0xff]
        %v4540 = vld [vmem:[%s673 + $0x1c8] sm:$0xff]
        %v4541 = vld [vmem:[%s673 + $0x1d0] sm:$0xff]
        %v4542 = vld [vmem:[%s673 + $0x1d8] sm:$0xff]
        %v4543 = vld [vmem:[%s673 + $0x1e0] sm:$0xff]
        %v4544 = vld [vmem:[%s673 + $0x1e8] sm:$0xff]
        %v4545 = vld [vmem:[%s673 + $0x1f0] sm:$0xff]
        %v4546 = vld [vmem:[%s673 + $0x1f8] sm:$0xff]
        %v4611 = vunpack.c.l.b16 %v4483
        %v4612 = vunpack.c.h.b16 %v4483
        %v4613 = vunpack.c.l.b16 %v4484
        %v4614 = vunpack.c.h.b16 %v4484
        %v4615 = vunpack.c.l.b16 %v4485
        %v4616 = vunpack.c.h.b16 %v4485
        %v4617 = vunpack.c.l.b16 %v4486
        %v4618 = vunpack.c.h.b16 %v4486
        %v4619 = vunpack.c.l.b16 %v4487
        %v4620 = vunpack.c.h.b16 %v4487
        %v4621 = vunpack.c.l.b16 %v4488
        %v4622 = vunpack.c.h.b16 %v4488
        %v4623 = vunpack.c.l.b16 %v4489
        %v4624 = vunpack.c.h.b16 %v4489
        %v4625 = vunpack.c.l.b16 %v4490
        %v4626 = vunpack.c.h.b16 %v4490
        %v4627 = vunpack.c.l.b16 %v4491
        %v4628 = vunpack.c.h.b16 %v4491
        %v4629 = vunpack.c.l.b16 %v4492
        %v4630 = vunpack.c.h.b16 %v4492
        %v4631 = vunpack.c.l.b16 %v4493
        %v4632 = vunpack.c.h.b16 %v4493
        %v4633 = vunpack.c.l.b16 %v4494
        %v4634 = vunpack.c.h.b16 %v4494
        %v4635 = vunpack.c.l.b16 %v4495
        %v4636 = vunpack.c.h.b16 %v4495
        %v4637 = vunpack.c.l.b16 %v4496
        %v4638 = vunpack.c.h.b16 %v4496
        %v4639 = vunpack.c.l.b16 %v4497
        %v4640 = vunpack.c.h.b16 %v4497
        %v4641 = vunpack.c.l.b16 %v4498
        %v4642 = vunpack.c.h.b16 %v4498
        %v4643 = vunpack.c.l.b16 %v4499
        %v4644 = vunpack.c.h.b16 %v4499
        %v4645 = vunpack.c.l.b16 %v4500
        %v4646 = vunpack.c.h.b16 %v4500
        %v4647 = vunpack.c.l.b16 %v4501
        %v4648 = vunpack.c.h.b16 %v4501
        %v4649 = vunpack.c.l.b16 %v4502
        %v4650 = vunpack.c.h.b16 %v4502
        %v4651 = vunpack.c.l.b16 %v4503
        %v4652 = vunpack.c.h.b16 %v4503
        %v4653 = vunpack.c.l.b16 %v4504
        %v4654 = vunpack.c.h.b16 %v4504
        %v4655 = vunpack.c.l.b16 %v4505
        %v4656 = vunpack.c.h.b16 %v4505
        %v4657 = vunpack.c.l.b16 %v4506
        %v4658 = vunpack.c.h.b16 %v4506
        %v4659 = vunpack.c.l.b16 %v4507
        %v4660 = vunpack.c.h.b16 %v4507
        %v4661 = vunpack.c.l.b16 %v4508
        %v4662 = vunpack.c.h.b16 %v4508
        %v4663 = vunpack.c.l.b16 %v4509
        %v4664 = vunpack.c.h.b16 %v4509
        %v4665 = vunpack.c.l.b16 %v4510
        %v4666 = vunpack.c.h.b16 %v4510
        %v4667 = vunpack.c.l.b16 %v4511
        %v4668 = vunpack.c.h.b16 %v4511
        %v4669 = vunpack.c.l.b16 %v4512
        %v4670 = vunpack.c.h.b16 %v4512
        %v4671 = vunpack.c.l.b16 %v4513
        %v4672 = vunpack.c.h.b16 %v4513
        %v4673 = vunpack.c.l.b16 %v4514
        %v4674 = vunpack.c.h.b16 %v4514
        %v4675 = vunpack.c.l.b16 %v4515
        %v4676 = vunpack.c.h.b16 %v4515
        %v4677 = vunpack.c.l.b16 %v4516
        %v4678 = vunpack.c.h.b16 %v4516
        %v4679 = vunpack.c.l.b16 %v4517
        %v4680 = vunpack.c.h.b16 %v4517
        %v4681 = vunpack.c.l.b16 %v4518
        %v4682 = vunpack.c.h.b16 %v4518
        %v4683 = vunpack.c.l.b16 %v4519
        %v4684 = vunpack.c.h.b16 %v4519
        %v4685 = vunpack.c.l.b16 %v4520
        %v4686 = vunpack.c.h.b16 %v4520
        %v4687 = vunpack.c.l.b16 %v4521
        %v4688 = vunpack.c.h.b16 %v4521
        %v4689 = vunpack.c.l.b16 %v4522
        %v4690 = vunpack.c.h.b16 %v4522
        %v4691 = vunpack.c.l.b16 %v4523
        %v4692 = vunpack.c.h.b16 %v4523
        %v4693 = vunpack.c.l.b16 %v4524
        %v4694 = vunpack.c.h.b16 %v4524
        %v4695 = vunpack.c.l.b16 %v4525
        %v4696 = vunpack.c.h.b16 %v4525
        %v4697 = vunpack.c.l.b16 %v4526
        %v4698 = vunpack.c.h.b16 %v4526
        %v4699 = vunpack.c.l.b16 %v4527
        %v4700 = vunpack.c.h.b16 %v4527
        %v4701 = vunpack.c.l.b16 %v4528
        %v4702 = vunpack.c.h.b16 %v4528
        %v4703 = vunpack.c.l.b16 %v4529
        %v4704 = vunpack.c.h.b16 %v4529
        %v4705 = vunpack.c.l.b16 %v4530
        %v4706 = vunpack.c.h.b16 %v4530
        %v4707 = vunpack.c.l.b16 %v4531
        %v4708 = vunpack.c.h.b16 %v4531
        %v4709 = vunpack.c.l.b16 %v4532
        %v4710 = vunpack.c.h.b16 %v4532
        %v4711 = vunpack.c.l.b16 %v4533
        %v4712 = vunpack.c.h.b16 %v4533
        %v4713 = vunpack.c.l.b16 %v4534
        %v4714 = vunpack.c.h.b16 %v4534
        %v4715 = vunpack.c.l.b16 %v4535
        %v4716 = vunpack.c.h.b16 %v4535
        %v4717 = vunpack.c.l.b16 %v4536
        %v4718 = vunpack.c.h.b16 %v4536
        %v4719 = vunpack.c.l.b16 %v4537
        %v4720 = vunpack.c.h.b16 %v4537
        %v4721 = vunpack.c.l.b16 %v4538
        %v4722 = vunpack.c.h.b16 %v4538
        %v4723 = vunpack.c.l.b16 %v4539
        %v4724 = vunpack.c.h.b16 %v4539
        %v4725 = vunpack.c.l.b16 %v4540
        %v4726 = vunpack.c.h.b16 %v4540
        %v4727 = vunpack.c.l.b16 %v4541
        %v4728 = vunpack.c.h.b16 %v4541
        %v4729 = vunpack.c.l.b16 %v4542
        %v4730 = vunpack.c.h.b16 %v4542
        %v4731 = vunpack.c.l.b16 %v4543
        %v4732 = vunpack.c.h.b16 %v4543
        %v4733 = vunpack.c.l.b16 %v4544
        %v4734 = vunpack.c.h.b16 %v4544
        %v4735 = vunpack.c.l.b16 %v4545
        %v4736 = vunpack.c.h.b16 %v4545
        %v4737 = vunpack.c.l.b16 %v4546
        %v4738 = vunpack.c.h.b16 %v4546
        %v4739 = vpack.c.b16 %v4613, %v4611
        %v4740 = vpack.c.b16 %v4614, %v4612
        %v4741 = vpack.c.b16 %v4617, %v4615
        %v4742 = vpack.c.b16 %v4618, %v4616
        %v4743 = vpack.c.b16 %v4621, %v4619
        %v4744 = vpack.c.b16 %v4622, %v4620
        %v4745 = vpack.c.b16 %v4625, %v4623
        %v4746 = vpack.c.b16 %v4626, %v4624
        %v4747 = vpack.c.b16 %v4629, %v4627
        %v4748 = vpack.c.b16 %v4630, %v4628
        %v4749 = vpack.c.b16 %v4633, %v4631
        %v4750 = vpack.c.b16 %v4634, %v4632
        %v4751 = vpack.c.b16 %v4637, %v4635
        %v4752 = vpack.c.b16 %v4638, %v4636
        %v4753 = vpack.c.b16 %v4641, %v4639
        %v4754 = vpack.c.b16 %v4642, %v4640
        %v4755 = vpack.c.b16 %v4645, %v4643
        %v4756 = vpack.c.b16 %v4646, %v4644
        %v4757 = vpack.c.b16 %v4649, %v4647
        %v4758 = vpack.c.b16 %v4650, %v4648
        %v4759 = vpack.c.b16 %v4653, %v4651
        %v4760 = vpack.c.b16 %v4654, %v4652
        %v4761 = vpack.c.b16 %v4657, %v4655
        %v4762 = vpack.c.b16 %v4658, %v4656
        %v4763 = vpack.c.b16 %v4661, %v4659
        %v4764 = vpack.c.b16 %v4662, %v4660
        %v4765 = vpack.c.b16 %v4665, %v4663
        %v4766 = vpack.c.b16 %v4666, %v4664
        %v4767 = vpack.c.b16 %v4669, %v4667
        %v4768 = vpack.c.b16 %v4670, %v4668
        %v4769 = vpack.c.b16 %v4673, %v4671
        %v4770 = vpack.c.b16 %v4674, %v4672
        %v4771 = vpack.c.b16 %v4677, %v4675
        %v4772 = vpack.c.b16 %v4678, %v4676
        %v4773 = vpack.c.b16 %v4681, %v4679
        %v4774 = vpack.c.b16 %v4682, %v4680
        %v4775 = vpack.c.b16 %v4685, %v4683
        %v4776 = vpack.c.b16 %v4686, %v4684
        %v4777 = vpack.c.b16 %v4689, %v4687
        %v4778 = vpack.c.b16 %v4690, %v4688
        %v4779 = vpack.c.b16 %v4693, %v4691
        %v4780 = vpack.c.b16 %v4694, %v4692
        %v4781 = vpack.c.b16 %v4697, %v4695
        %v4782 = vpack.c.b16 %v4698, %v4696
        %v4783 = vpack.c.b16 %v4701, %v4699
        %v4784 = vpack.c.b16 %v4702, %v4700
        %v4785 = vpack.c.b16 %v4705, %v4703
        %v4786 = vpack.c.b16 %v4706, %v4704
        %v4787 = vpack.c.b16 %v4709, %v4707
        %v4788 = vpack.c.b16 %v4710, %v4708
        %v4789 = vpack.c.b16 %v4713, %v4711
        %v4790 = vpack.c.b16 %v4714, %v4712
        %v4791 = vpack.c.b16 %v4717, %v4715
        %v4792 = vpack.c.b16 %v4718, %v4716
        %v4793 = vpack.c.b16 %v4721, %v4719
        %v4794 = vpack.c.b16 %v4722, %v4720
        %v4795 = vpack.c.b16 %v4725, %v4723
        %v4796 = vpack.c.b16 %v4726, %v4724
        %v4797 = vpack.c.b16 %v4729, %v4727
        %v4798 = vpack.c.b16 %v4730, %v4728
        %v4799 = vpack.c.b16 %v4733, %v4731
        %v4800 = vpack.c.b16 %v4734, %v4732
        %v4801 = vpack.c.b16 %v4737, %v4735
        %v4802 = vpack.c.b16 %v4738, %v4736
        %4867 = vmatprep.subr.bf16.mxu0 %v4740
        %4868 = vmatpush1.bf16.msra.mxu0 %v4739
        %4869 = vmatprep.subr.bf16.mxu0 %v4742
        %4870 = vmatpush1.bf16.msra.mxu0 %v4741
        %4871 = vmatprep.subr.bf16.mxu0 %v4744
        %4872 = vmatpush1.bf16.msra.mxu0 %v4743
        %4873 = vmatprep.subr.bf16.mxu0 %v4746
        %4874 = vmatpush1.bf16.msra.mxu0 %v4745
        %4875 = vmatprep.subr.bf16.mxu0 %v4748
        %4876 = vmatpush1.bf16.msra.mxu0 %v4747
        %4877 = vmatprep.subr.bf16.mxu0 %v4750
        %4878 = vmatpush1.bf16.msra.mxu0 %v4749
        %4879 = vmatprep.subr.bf16.mxu0 %v4752
        %4880 = vmatpush1.bf16.msra.mxu0 %v4751
        %4881 = vmatprep.subr.bf16.mxu0 %v4754
        %4882 = vmatpush1.bf16.msra.mxu0 %v4753
        %4883 = vmatprep.subr.bf16.mxu0 %v4756
        %4884 = vmatpush1.bf16.msra.mxu0 %v4755
        %4885 = vmatprep.subr.bf16.mxu0 %v4758
        %4886 = vmatpush1.bf16.msra.mxu0 %v4757
        %4887 = vmatprep.subr.bf16.mxu0 %v4760
        %4888 = vmatpush1.bf16.msra.mxu0 %v4759
        %4889 = vmatprep.subr.bf16.mxu0 %v4762
        %4890 = vmatpush1.bf16.msra.mxu0 %v4761
        %4891 = vmatprep.subr.bf16.mxu0 %v4764
        %4892 = vmatpush1.bf16.msra.mxu0 %v4763
        %4893 = vmatprep.subr.bf16.mxu0 %v4766
        %4894 = vmatpush1.bf16.msra.mxu0 %v4765
        %4895 = vmatprep.subr.bf16.mxu0 %v4768
        %4896 = vmatpush1.bf16.msra.mxu0 %v4767
        %4897 = vmatprep.subr.bf16.mxu0 %v4770
        %4898 = vmatpush1.bf16.msra.mxu0 %v4769
        %4899 = vmatprep.mubr.bf16.mxu0 %v4452
        %4900 = vmatmul.mubr.bf16.gmra.mrb[0].mxu0 %v4451
        %v4901 = vpop.f32.mrb[0].mxu0
        %v4902 = vadd.f32 0.0, %v4901
        %v4903 = vpop.f32.mrb[0].mxu0
        %v4904 = vadd.f32 0.0, %v4903
        %v4905 = vpop.f32.mrb[0].mxu0
        %v4906 = vadd.f32 0.0, %v4905
        %v4907 = vpop.f32.mrb[0].mxu0
        %v4908 = vadd.f32 0.0, %v4907
        %4909 = vmatprep.mubr.bf16.mxu0 %v4456
        %4910 = vmatmul.mubr.bf16.gmra.mrb[0].mxu0 %v4455
        %v4911 = vpop.f32.mrb[0].mxu0
        %v4912 = vadd.f32 0.0, %v4911
        %v4913 = vpop.f32.mrb[0].mxu0
        %v4914 = vadd.f32 0.0, %v4913
        %v4915 = vpop.f32.mrb[0].mxu0
        %v4916 = vadd.f32 0.0, %v4915
        %v4917 = vpop.f32.mrb[0].mxu0
        %v4918 = vadd.f32 0.0, %v4917
        %4919 = vmatprep.mubr.bf16.mxu0 %v4460
        %4920 = vmatmul.mubr.bf16.gmra.mrb[0].mxu0 %v4459
        %v4921 = vpop.f32.mrb[0].mxu0
        %v4922 = vadd.f32 0.0, %v4921
        %v4923 = vpop.f32.mrb[0].mxu0
        %v4924 = vadd.f32 0.0, %v4923
        %v4925 = vpop.f32.mrb[0].mxu0
        %v4926 = vadd.f32 0.0, %v4925
        %v4927 = vpop.f32.mrb[0].mxu0
        %v4928 = vadd.f32 0.0, %v4927
        %4929 = vmatprep.mubr.bf16.mxu0 %v4464
        %4930 = vmatmul.mubr.bf16.gmra.mrb[0].mxu0 %v4463
        %v4931 = vpop.f32.mrb[0].mxu0
        %v4932 = vadd.f32 0.0, %v4931
        %v4933 = vpop.f32.mrb[0].mxu0
        %v4934 = vadd.f32 0.0, %v4933
        %v4935 = vpop.f32.mrb[0].mxu0
        %v4936 = vadd.f32 0.0, %v4935
        %v4937 = vpop.f32.mrb[0].mxu0
        %v4938 = vadd.f32 0.0, %v4937
        %4939 = vmatprep.mubr.bf16.mxu0 %v4468
        %4940 = vmatmul.mubr.bf16.gmra.mrb[0].mxu0 %v4467
        %v4941 = vpop.f32.mrb[0].mxu0
        %v4942 = vadd.f32 0.0, %v4941
        %v4943 = vpop.f32.mrb[0].mxu0
        %v4944 = vadd.f32 0.0, %v4943
        %v4945 = vpop.f32.mrb[0].mxu0
        %v4946 = vadd.f32 0.0, %v4945
        %v4947 = vpop.f32.mrb[0].mxu0
        %v4948 = vadd.f32 0.0, %v4947
        %4949 = vmatprep.mubr.bf16.mxu0 %v4472
        %4950 = vmatmul.mubr.bf16.gmra.mrb[0].mxu0 %v4471
        %v4951 = vpop.f32.mrb[0].mxu0
        %v4952 = vadd.f32 0.0, %v4951
        %v4953 = vpop.f32.mrb[0].mxu0
        %v4954 = vadd.f32 0.0, %v4953
        %v4955 = vpop.f32.mrb[0].mxu0
        %v4956 = vadd.f32 0.0, %v4955
        %v4957 = vpop.f32.mrb[0].mxu0
        %v4958 = vadd.f32 0.0, %v4957
        %4959 = vmatprep.mubr.bf16.mxu0 %v4476
        %4960 = vmatmul.mubr.bf16.gmra.mrb[0].mxu0 %v4475
        %v4961 = vpop.f32.mrb[0].mxu0
        %v4962 = vadd.f32 0.0, %v4961
        %v4963 = vpop.f32.mrb[0].mxu0
        %v4964 = vadd.f32 0.0, %v4963
        %v4965 = vpop.f32.mrb[0].mxu0
        %v4966 = vadd.f32 0.0, %v4965
        %v4967 = vpop.f32.mrb[0].mxu0
        %v4968 = vadd.f32 0.0, %v4967
        %4969 = vmatprep.mubr.bf16.mxu0 %v4480
        %4970 = vmatmul.mubr.bf16.gmra.mrb[0].mxu0 %v4479
        %v4971 = vpop.f32.mrb[0].mxu0
        %v4972 = vadd.f32 0.0, %v4971
        %v4973 = vpop.f32.mrb[0].mxu0
        %v4974 = vadd.f32 0.0, %v4973
        %v4975 = vpop.f32.mrb[0].mxu0
        %v4976 = vadd.f32 0.0, %v4975
        %v4977 = vpop.f32.mrb[0].mxu0
        %v4978 = vadd.f32 0.0, %v4977
        %4979 = vdwg.mxu0
        %4980 = vmatprep.subr.bf16.mxu0 %v4772
        %4981 = vmatpush1.bf16.msra.mxu0 %v4771
        %4982 = vmatprep.subr.bf16.mxu0 %v4774
        %4983 = vmatpush1.bf16.msra.mxu0 %v4773
        %4984 = vmatprep.subr.bf16.mxu0 %v4776
        %4985 = vmatpush1.bf16.msra.mxu0 %v4775
        %4986 = vmatprep.subr.bf16.mxu0 %v4778
        %4987 = vmatpush1.bf16.msra.mxu0 %v4777
        %4988 = vmatprep.subr.bf16.mxu0 %v4780
        %4989 = vmatpush1.bf16.msra.mxu0 %v4779
        %4990 = vmatprep.subr.bf16.mxu0 %v4782
        %4991 = vmatpush1.bf16.msra.mxu0 %v4781
        %4992 = vmatprep.subr.bf16.mxu0 %v4784
        %4993 = vmatpush1.bf16.msra.mxu0 %v4783
        %4994 = vmatprep.subr.bf16.mxu0 %v4786
        %4995 = vmatpush1.bf16.msra.mxu0 %v4785
        %4996 = vmatprep.subr.bf16.mxu0 %v4788
        %4997 = vmatpush1.bf16.msra.mxu0 %v4787
        %4998 = vmatprep.subr.bf16.mxu0 %v4790
        %4999 = vmatpush1.bf16.msra.mxu0 %v4789
        %5000 = vmatprep.subr.bf16.mxu0 %v4792
        %5001 = vmatpush1.bf16.msra.mxu0 %v4791
        %5002 = vmatprep.subr.bf16.mxu0 %v4794
        %5003 = vmatpush1.bf16.msra.mxu0 %v4793
        %5004 = vmatprep.subr.bf16.mxu0 %v4796
        %5005 = vmatpush1.bf16.msra.mxu0 %v4795
        %5006 = vmatprep.subr.bf16.mxu0 %v4798
        %5007 = vmatpush1.bf16.msra.mxu0 %v4797
        %5008 = vmatprep.subr.bf16.mxu0 %v4800
        %5009 = vmatpush1.bf16.msra.mxu0 %v4799
        %5010 = vmatprep.subr.bf16.mxu0 %v4802
        %5011 = vmatpush1.bf16.msra.mxu0 %v4801
        %5012 = vmatprep.mubr.bf16.mxu0 %v4454
        %5013 = vmatmul.mubr.bf16.gmra.mrb[0].mxu0 %v4453
        %v5014 = vpop.f32.mrb[0].mxu0
        %v5015 = vadd.f32 %v4902, %v5014
        %v5016 = vpop.f32.mrb[0].mxu0
        %v5017 = vadd.f32 %v4904, %v5016
        %v5018 = vpop.f32.mrb[0].mxu0
        %v5019 = vadd.f32 %v4906, %v5018
        %v5020 = vpop.f32.mrb[0].mxu0
        %v5021 = vadd.f32 %v4908, %v5020
        %5022 = vmatprep.mubr.bf16.mxu0 %v4458
        %5023 = vmatmul.mubr.bf16.gmra.mrb[0].mxu0 %v4457
        %v5024 = vpop.f32.mrb[0].mxu0
        %v5025 = vadd.f32 %v4912, %v5024
        %v5026 = vpop.f32.mrb[0].mxu0
        %v5027 = vadd.f32 %v4914, %v5026
        %v5028 = vpop.f32.mrb[0].mxu0
        %v5029 = vadd.f32 %v4916, %v5028
        %v5030 = vpop.f32.mrb[0].mxu0
        %v5031 = vadd.f32 %v4918, %v5030
        %5032 = vmatprep.mubr.bf16.mxu0 %v4462
        %5033 = vmatmul.mubr.bf16.gmra.mrb[0].mxu0 %v4461
        %v5034 = vpop.f32.mrb[0].mxu0
        %v5035 = vadd.f32 %v4922, %v5034
        %v5036 = vpop.f32.mrb[0].mxu0
        %v5037 = vadd.f32 %v4924, %v5036
        %v5038 = vpop.f32.mrb[0].mxu0
        %v5039 = vadd.f32 %v4926, %v5038
        %v5040 = vpop.f32.mrb[0].mxu0
        %v5041 = vadd.f32 %v4928, %v5040
        %5042 = vmatprep.mubr.bf16.mxu0 %v4466
        %5043 = vmatmul.mubr.bf16.gmra.mrb[0].mxu0 %v4465
        %v5044 = vpop.f32.mrb[0].mxu0
        %v5045 = vadd.f32 %v4932, %v5044
        %v5046 = vpop.f32.mrb[0].mxu0
        %v5047 = vadd.f32 %v4934, %v5046
        %v5048 = vpop.f32.mrb[0].mxu0
        %v5049 = vadd.f32 %v4936, %v5048
        %v5050 = vpop.f32.mrb[0].mxu0
        %v5051 = vadd.f32 %v4938, %v5050
        %5052 = vmatprep.mubr.bf16.mxu0 %v4470
        %5053 = vmatmul.mubr.bf16.gmra.mrb[0].mxu0 %v4469
        %v5054 = vpop.f32.mrb[0].mxu0
        %v5055 = vadd.f32 %v4942, %v5054
        %v5056 = vpop.f32.mrb[0].mxu0
        %v5057 = vadd.f32 %v4944, %v5056
        %v5058 = vpop.f32.mrb[0].mxu0
        %v5059 = vadd.f32 %v4946, %v5058
        %v5060 = vpop.f32.mrb[0].mxu0
        %v5061 = vadd.f32 %v4948, %v5060
        %5062 = vmatprep.mubr.bf16.mxu0 %v4474
        %5063 = vmatmul.mubr.bf16.gmra.mrb[0].mxu0 %v4473
        %v5064 = vpop.f32.mrb[0].mxu0
        %v5065 = vadd.f32 %v4952, %v5064
        %v5066 = vpop.f32.mrb[0].mxu0
        %v5067 = vadd.f32 %v4954, %v5066
        %v5068 = vpop.f32.mrb[0].mxu0
        %v5069 = vadd.f32 %v4956, %v5068
        %v5070 = vpop.f32.mrb[0].mxu0
        %v5071 = vadd.f32 %v4958, %v5070
        %5072 = vmatprep.mubr.bf16.mxu0 %v4478
        %5073 = vmatmul.mubr.bf16.gmra.mrb[0].mxu0 %v4477
        %v5074 = vpop.f32.mrb[0].mxu0
        %v5075 = vadd.f32 %v4962, %v5074
        %v5076 = vpop.f32.mrb[0].mxu0
        %v5077 = vadd.f32 %v4964, %v5076
        %v5078 = vpop.f32.mrb[0].mxu0
        %v5079 = vadd.f32 %v4966, %v5078
        %v5080 = vpop.f32.mrb[0].mxu0
        %v5081 = vadd.f32 %v4968, %v5080
        %5082 = vmatprep.mubr.bf16.mxu0 %v4482
        %5083 = vmatmul.mubr.bf16.gmra.mrb[0].mxu0 %v4481
        %v5084 = vpop.f32.mrb[0].mxu0
        %v5085 = vadd.f32 %v4972, %v5084
        %v5086 = vpop.f32.mrb[0].mxu0
        %v5087 = vadd.f32 %v4974, %v5086
        %v5088 = vpop.f32.mrb[0].mxu0
        %v5089 = vadd.f32 %v4976, %v5088
        %v5090 = vpop.f32.mrb[0].mxu0
        %v5091 = vadd.f32 %v4978, %v5090
        %5092 = vdwg.mxu0
        %v5093 = vadd.f32 %v3195, %v5015
        %v5094 = vadd.f32 %v3196, %v5017
        %v5095 = vadd.f32 %v3197, %v5019
        %v5096 = vadd.f32 %v3198, %v5021
        %v5097 = vadd.f32 %v3199, %v5025
        %v5098 = vadd.f32 %v3200, %v5027
        %v5099 = vadd.f32 %v3201, %v5029
        %v5100 = vadd.f32 %v3202, %v5031
        %v5101 = vadd.f32 %v3203, %v5035
        %v5102 = vadd.f32 %v3204, %v5037
        %v5103 = vadd.f32 %v3205, %v5039
        %v5104 = vadd.f32 %v3206, %v5041
        %v5105 = vadd.f32 %v3207, %v5045
        %v5106 = vadd.f32 %v3208, %v5047
        %v5107 = vadd.f32 %v3209, %v5049
        %v5108 = vadd.f32 %v3210, %v5051
        %v5109 = vadd.f32 %v3211, %v5055
        %v5110 = vadd.f32 %v3212, %v5057
        %v5111 = vadd.f32 %v3213, %v5059
        %v5112 = vadd.f32 %v3214, %v5061
        %v5113 = vadd.f32 %v3215, %v5065
        %v5114 = vadd.f32 %v3216, %v5067
        %v5115 = vadd.f32 %v3217, %v5069
        %v5116 = vadd.f32 %v3218, %v5071
        %v5117 = vadd.f32 %v3219, %v5075
        %v5118 = vadd.f32 %v3220, %v5077
        %v5119 = vadd.f32 %v3221, %v5079
        %v5120 = vadd.f32 %v3222, %v5081
        %v5121 = vadd.f32 %v3223, %v5085
        %v5122 = vadd.f32 %v3224, %v5087
        %v5123 = vadd.f32 %v3225, %v5089
        %v5124 = vadd.f32 %v3226, %v5091
        %v5125 = vld [vmem:[%s677] sm:$0x3]
        %v5127 = vlaneseq
        %v5128 = vshrl.u32 %v5127, 7
        %v5129 = vsub.s32 0, %v5128
        %v5130 = vrot.slane %v5125, %v5129
        %v5131 = vlaneseq
        %v5132 = vshrl.u32 %v5131, 7
        %v5133 = vsub.s32 1, %v5132
        %v5134 = vrot.slane %v5125, %v5133
        %v5137 = vadd.f32 %v5093, %v5130
        %v5138 = vadd.f32 %v5094, %v5134
        %v5139 = vadd.f32 %v5095, %v5130
        %v5140 = vadd.f32 %v5096, %v5134
        %v5141 = vadd.f32 %v5097, %v5130
        %v5142 = vadd.f32 %v5098, %v5134
        %v5143 = vadd.f32 %v5099, %v5130
        %v5144 = vadd.f32 %v5100, %v5134
        %v5145 = vadd.f32 %v5101, %v5130
        %v5146 = vadd.f32 %v5102, %v5134
        %v5147 = vadd.f32 %v5103, %v5130
        %v5148 = vadd.f32 %v5104, %v5134
        %v5149 = vadd.f32 %v5105, %v5130
        %v5150 = vadd.f32 %v5106, %v5134
        %v5151 = vadd.f32 %v5107, %v5130
        %v5152 = vadd.f32 %v5108, %v5134
        %v5153 = vadd.f32 %v5109, %v5130
        %v5154 = vadd.f32 %v5110, %v5134
        %v5155 = vadd.f32 %v5111, %v5130
        %v5156 = vadd.f32 %v5112, %v5134
        %v5157 = vadd.f32 %v5113, %v5130
        %v5158 = vadd.f32 %v5114, %v5134
        %v5159 = vadd.f32 %v5115, %v5130
        %v5160 = vadd.f32 %v5116, %v5134
        %v5161 = vadd.f32 %v5117, %v5130
        %v5162 = vadd.f32 %v5118, %v5134
        %v5163 = vadd.f32 %v5119, %v5130
        %v5164 = vadd.f32 %v5120, %v5134
        %v5165 = vadd.f32 %v5121, %v5130
        %v5166 = vadd.f32 %v5122, %v5134
        %v5167 = vadd.f32 %v5123, %v5130
        %v5168 = vadd.f32 %v5124, %v5134
        %v5169 = vadd.f32 %v5137, %v5138
        %5170 = vadd.xlane.f32.xlu0 %v5169
        %v5171 = vpop.xlane.xlu0 %5170
        %v5172 = vadd.f32 %v5139, %v5140
        %5173 = vadd.xlane.f32.xlu0 %v5172
        %v5174 = vpop.xlane.xlu0 %5173
        %v5175 = vadd.f32 %v5141, %v5142
        %5176 = vadd.xlane.f32.xlu0 %v5175
        %v5177 = vpop.xlane.xlu0 %5176
        %v5178 = vadd.f32 %v5143, %v5144
        %5179 = vadd.xlane.f32.xlu0 %v5178
        %v5180 = vpop.xlane.xlu0 %5179
        %v5181 = vadd.f32 %v5145, %v5146
        %5182 = vadd.xlane.f32.xlu0 %v5181
        %v5183 = vpop.xlane.xlu0 %5182
        %v5184 = vadd.f32 %v5147, %v5148
        %5185 = vadd.xlane.f32.xlu0 %v5184
        %v5186 = vpop.xlane.xlu0 %5185
        %v5187 = vadd.f32 %v5149, %v5150
        %5188 = vadd.xlane.f32.xlu0 %v5187
        %v5189 = vpop.xlane.xlu0 %5188
        %v5190 = vadd.f32 %v5151, %v5152
        %5191 = vadd.xlane.f32.xlu0 %v5190
        %v5192 = vpop.xlane.xlu0 %5191
        %v5193 = vadd.f32 %v5153, %v5154
        %5194 = vadd.xlane.f32.xlu0 %v5193
        %v5195 = vpop.xlane.xlu0 %5194
        %v5196 = vadd.f32 %v5155, %v5156
        %5197 = vadd.xlane.f32.xlu0 %v5196
        %v5198 = vpop.xlane.xlu0 %5197
        %v5199 = vadd.f32 %v5157, %v5158
        %5200 = vadd.xlane.f32.xlu0 %v5199
        %v5201 = vpop.xlane.xlu0 %5200
        %v5202 = vadd.f32 %v5159, %v5160
        %5203 = vadd.xlane.f32.xlu0 %v5202
        %v5204 = vpop.xlane.xlu0 %5203
        %v5205 = vadd.f32 %v5161, %v5162
        %5206 = vadd.xlane.f32.xlu0 %v5205
        %v5207 = vpop.xlane.xlu0 %5206
        %v5208 = vadd.f32 %v5163, %v5164
        %5209 = vadd.xlane.f32.xlu0 %v5208
        %v5210 = vpop.xlane.xlu0 %5209
        %v5211 = vadd.f32 %v5165, %v5166
        %5212 = vadd.xlane.f32.xlu0 %v5211
        %v5213 = vpop.xlane.xlu0 %5212
        %v5214 = vadd.f32 %v5167, %v5168
        %5215 = vadd.xlane.f32.xlu0 %v5214
        %v5216 = vpop.xlane.xlu0 %5215
        %v5217 = vmul.f32 %v5171, %v2917
        %v5218 = vmul.f32 %v5174, %v2917
        %v5219 = vmul.f32 %v5177, %v2917
        %v5220 = vmul.f32 %v5180, %v2917
        %v5221 = vmul.f32 %v5183, %v2917
        %v5222 = vmul.f32 %v5186, %v2917
        %v5223 = vmul.f32 %v5189, %v2917
        %v5224 = vmul.f32 %v5192, %v2917
        %v5225 = vmul.f32 %v5195, %v2917
        %v5226 = vmul.f32 %v5198, %v2917
        %v5227 = vmul.f32 %v5201, %v2917
        %v5228 = vmul.f32 %v5204, %v2917
        %v5229 = vmul.f32 %v5207, %v2917
        %v5230 = vmul.f32 %v5210, %v2917
        %v5231 = vmul.f32 %v5213, %v2917
        %v5232 = vmul.f32 %v5216, %v2917
        %v5233 = vsub.f32 %v5137, %v5217
        %v5234 = vsub.f32 %v5138, %v5217
        %v5235 = vsub.f32 %v5139, %v5218
        %v5236 = vsub.f32 %v5140, %v5218
        %v5237 = vsub.f32 %v5141, %v5219
        %v5238 = vsub.f32 %v5142, %v5219
        %v5239 = vsub.f32 %v5143, %v5220
        %v5240 = vsub.f32 %v5144, %v5220
        %v5241 = vsub.f32 %v5145, %v5221
        %v5242 = vsub.f32 %v5146, %v5221
        %v5243 = vsub.f32 %v5147, %v5222
        %v5244 = vsub.f32 %v5148, %v5222
        %v5245 = vsub.f32 %v5149, %v5223
        %v5246 = vsub.f32 %v5150, %v5223
        %v5247 = vsub.f32 %v5151, %v5224
        %v5248 = vsub.f32 %v5152, %v5224
        %v5249 = vsub.f32 %v5153, %v5225
        %v5250 = vsub.f32 %v5154, %v5225
        %v5251 = vsub.f32 %v5155, %v5226
        %v5252 = vsub.f32 %v5156, %v5226
        %v5253 = vsub.f32 %v5157, %v5227
        %v5254 = vsub.f32 %v5158, %v5227
        %v5255 = vsub.f32 %v5159, %v5228
        %v5256 = vsub.f32 %v5160, %v5228
        %v5257 = vsub.f32 %v5161, %v5229
        %v5258 = vsub.f32 %v5162, %v5229
        %v5259 = vsub.f32 %v5163, %v5230
        %v5260 = vsub.f32 %v5164, %v5230
        %v5261 = vsub.f32 %v5165, %v5231
        %v5262 = vsub.f32 %v5166, %v5231
        %v5263 = vsub.f32 %v5167, %v5232
        %v5264 = vsub.f32 %v5168, %v5232
        %v5265 = vmul.f32 %v5233, %v5233
        %v5266 = vmul.f32 %v5234, %v5234
        %v5267 = vmul.f32 %v5235, %v5235
        %v5268 = vmul.f32 %v5236, %v5236
        %v5269 = vmul.f32 %v5237, %v5237
        %v5270 = vmul.f32 %v5238, %v5238
        %v5271 = vmul.f32 %v5239, %v5239
        %v5272 = vmul.f32 %v5240, %v5240
        %v5273 = vmul.f32 %v5241, %v5241
        %v5274 = vmul.f32 %v5242, %v5242
        %v5275 = vmul.f32 %v5243, %v5243
        %v5276 = vmul.f32 %v5244, %v5244
        %v5277 = vmul.f32 %v5245, %v5245
        %v5278 = vmul.f32 %v5246, %v5246
        %v5279 = vmul.f32 %v5247, %v5247
        %v5280 = vmul.f32 %v5248, %v5248
        %v5281 = vmul.f32 %v5249, %v5249
        %v5282 = vmul.f32 %v5250, %v5250
        %v5283 = vmul.f32 %v5251, %v5251
        %v5284 = vmul.f32 %v5252, %v5252
        %v5285 = vmul.f32 %v5253, %v5253
        %v5286 = vmul.f32 %v5254, %v5254
        %v5287 = vmul.f32 %v5255, %v5255
        %v5288 = vmul.f32 %v5256, %v5256
        %v5289 = vmul.f32 %v5257, %v5257
        %v5290 = vmul.f32 %v5258, %v5258
        %v5291 = vmul.f32 %v5259, %v5259
        %v5292 = vmul.f32 %v5260, %v5260
        %v5293 = vmul.f32 %v5261, %v5261
        %v5294 = vmul.f32 %v5262, %v5262
        %v5295 = vmul.f32 %v5263, %v5263
        %v5296 = vmul.f32 %v5264, %v5264
        %v5297 = vadd.f32 %v5265, %v5266
        %5298 = vadd.xlane.f32.xlu0 %v5297
        %v5299 = vpop.xlane.xlu0 %5298
        %v5300 = vadd.f32 %v5267, %v5268
        %5301 = vadd.xlane.f32.xlu0 %v5300
        %v5302 = vpop.xlane.xlu0 %5301
        %v5303 = vadd.f32 %v5269, %v5270
        %5304 = vadd.xlane.f32.xlu0 %v5303
        %v5305 = vpop.xlane.xlu0 %5304
        %v5306 = vadd.f32 %v5271, %v5272
        %5307 = vadd.xlane.f32.xlu0 %v5306
        %v5308 = vpop.xlane.xlu0 %5307
        %v5309 = vadd.f32 %v5273, %v5274
        %5310 = vadd.xlane.f32.xlu0 %v5309
        %v5311 = vpop.xlane.xlu0 %5310
        %v5312 = vadd.f32 %v5275, %v5276
        %5313 = vadd.xlane.f32.xlu0 %v5312
        %v5314 = vpop.xlane.xlu0 %5313
        %v5315 = vadd.f32 %v5277, %v5278
        %5316 = vadd.xlane.f32.xlu0 %v5315
        %v5317 = vpop.xlane.xlu0 %5316
        %v5318 = vadd.f32 %v5279, %v5280
        %5319 = vadd.xlane.f32.xlu0 %v5318
        %v5320 = vpop.xlane.xlu0 %5319
        %v5321 = vadd.f32 %v5281, %v5282
        %5322 = vadd.xlane.f32.xlu0 %v5321
        %v5323 = vpop.xlane.xlu0 %5322
        %v5324 = vadd.f32 %v5283, %v5284
        %5325 = vadd.xlane.f32.xlu0 %v5324
        %v5326 = vpop.xlane.xlu0 %5325
        %v5327 = vadd.f32 %v5285, %v5286
        %5328 = vadd.xlane.f32.xlu0 %v5327
        %v5329 = vpop.xlane.xlu0 %5328
        %v5330 = vadd.f32 %v5287, %v5288
        %5331 = vadd.xlane.f32.xlu0 %v5330
        %v5332 = vpop.xlane.xlu0 %5331
        %v5333 = vadd.f32 %v5289, %v5290
        %5334 = vadd.xlane.f32.xlu0 %v5333
        %v5335 = vpop.xlane.xlu0 %5334
        %v5336 = vadd.f32 %v5291, %v5292
        %5337 = vadd.xlane.f32.xlu0 %v5336
        %v5338 = vpop.xlane.xlu0 %5337
        %v5339 = vadd.f32 %v5293, %v5294
        %5340 = vadd.xlane.f32.xlu0 %v5339
        %v5341 = vpop.xlane.xlu0 %5340
        %v5342 = vadd.f32 %v5295, %v5296
        %5343 = vadd.xlane.f32.xlu0 %v5342
        %v5344 = vpop.xlane.xlu0 %5343
        %v5345 = vmul.f32 %v5299, %v2917
        %v5346 = vmul.f32 %v5302, %v2917
        %v5347 = vmul.f32 %v5305, %v2917
        %v5348 = vmul.f32 %v5308, %v2917
        %v5349 = vmul.f32 %v5311, %v2917
        %v5350 = vmul.f32 %v5314, %v2917
        %v5351 = vmul.f32 %v5317, %v2917
        %v5352 = vmul.f32 %v5320, %v2917
        %v5353 = vmul.f32 %v5323, %v2917
        %v5354 = vmul.f32 %v5326, %v2917
        %v5355 = vmul.f32 %v5329, %v2917
        %v5356 = vmul.f32 %v5332, %v2917
        %v5357 = vmul.f32 %v5335, %v2917
        %v5358 = vmul.f32 %v5338, %v2917
        %v5359 = vmul.f32 %v5341, %v2917
        %v5360 = vmul.f32 %v5344, %v2917
        %v5361 = vadd.f32 %v5345, 1e-12
        %v5362 = vadd.f32 %v5346, 1e-12
        %v5363 = vadd.f32 %v5347, 1e-12
        %v5364 = vadd.f32 %v5348, 1e-12
        %v5365 = vadd.f32 %v5349, 1e-12
        %v5366 = vadd.f32 %v5350, 1e-12
        %v5367 = vadd.f32 %v5351, 1e-12
        %v5368 = vadd.f32 %v5352, 1e-12
        %v5369 = vadd.f32 %v5353, 1e-12
        %v5370 = vadd.f32 %v5354, 1e-12
        %v5371 = vadd.f32 %v5355, 1e-12
        %v5372 = vadd.f32 %v5356, 1e-12
        %v5373 = vadd.f32 %v5357, 1e-12
        %v5374 = vadd.f32 %v5358, 1e-12
        %v5375 = vadd.f32 %v5359, 1e-12
        %v5376 = vadd.f32 %v5360, 1e-12
        %v5377 = vrsqrt.pop %v5361
        %v5378 = vrsqrt.pop %v5362
        %v5379 = vrsqrt.pop %v5363
        %v5380 = vrsqrt.pop %v5364
        %v5381 = vrsqrt.pop %v5365
        %v5382 = vrsqrt.pop %v5366
        %v5383 = vrsqrt.pop %v5367
        %v5384 = vrsqrt.pop %v5368
        %v5385 = vrsqrt.pop %v5369
        %v5386 = vrsqrt.pop %v5370
        %v5387 = vrsqrt.pop %v5371
        %v5388 = vrsqrt.pop %v5372
        %v5389 = vrsqrt.pop %v5373
        %v5390 = vrsqrt.pop %v5374
        %v5391 = vrsqrt.pop %v5375
        %v5392 = vrsqrt.pop %v5376
        %v5393 = vmul.f32 %v5233, %v5377
        %v5394 = vmul.f32 %v5234, %v5377
        %v5395 = vmul.f32 %v5235, %v5378
        %v5396 = vmul.f32 %v5236, %v5378
        %v5397 = vmul.f32 %v5237, %v5379
        %v5398 = vmul.f32 %v5238, %v5379
        %v5399 = vmul.f32 %v5239, %v5380
        %v5400 = vmul.f32 %v5240, %v5380
        %v5401 = vmul.f32 %v5241, %v5381
        %v5402 = vmul.f32 %v5242, %v5381
        %v5403 = vmul.f32 %v5243, %v5382
        %v5404 = vmul.f32 %v5244, %v5382
        %v5405 = vmul.f32 %v5245, %v5383
        %v5406 = vmul.f32 %v5246, %v5383
        %v5407 = vmul.f32 %v5247, %v5384
        %v5408 = vmul.f32 %v5248, %v5384
        %v5409 = vmul.f32 %v5249, %v5385
        %v5410 = vmul.f32 %v5250, %v5385
        %v5411 = vmul.f32 %v5251, %v5386
        %v5412 = vmul.f32 %v5252, %v5386
        %v5413 = vmul.f32 %v5253, %v5387
        %v5414 = vmul.f32 %v5254, %v5387
        %v5415 = vmul.f32 %v5255, %v5388
        %v5416 = vmul.f32 %v5256, %v5388
        %v5417 = vmul.f32 %v5257, %v5389
        %v5418 = vmul.f32 %v5258, %v5389
        %v5419 = vmul.f32 %v5259, %v5390
        %v5420 = vmul.f32 %v5260, %v5390
        %v5421 = vmul.f32 %v5261, %v5391
        %v5422 = vmul.f32 %v5262, %v5391
        %v5423 = vmul.f32 %v5263, %v5392
        %v5424 = vmul.f32 %v5264, %v5392
        %v5425 = vlaneseq
        %v5426 = vshrl.u32 %v5425, 7
        %v5427 = vsub.s32 2, %v5426
        %v5428 = vrot.slane %v784, %v5427
        %v5429 = vlaneseq
        %v5430 = vshrl.u32 %v5429, 7
        %v5431 = vsub.s32 6, %v5430
        %v5432 = vrot.slane %v784, %v5431
        %v5435 = vlaneseq
        %v5436 = vshrl.u32 %v5435, 7
        %v5437 = vsub.s32 2, %v5436
        %v5438 = vrot.slane %v5428, %v5437
        %v5439 = vlaneseq
        %v5440 = vshrl.u32 %v5439, 7
        %v5441 = vsub.s32 2, %v5440
        %v5442 = vrot.slane %v5432, %v5441
        %v5443 = vmul.f32 %v5393, %v5438
        %v5444 = vmul.f32 %v5394, %v5442
        %v5445 = vmul.f32 %v5395, %v5438
        %v5446 = vmul.f32 %v5396, %v5442
        %v5447 = vmul.f32 %v5397, %v5438
        %v5448 = vmul.f32 %v5398, %v5442
        %v5449 = vmul.f32 %v5399, %v5438
        %v5450 = vmul.f32 %v5400, %v5442
        %v5451 = vmul.f32 %v5401, %v5438
        %v5452 = vmul.f32 %v5402, %v5442
        %v5453 = vmul.f32 %v5403, %v5438
        %v5454 = vmul.f32 %v5404, %v5442
        %v5455 = vmul.f32 %v5405, %v5438
        %v5456 = vmul.f32 %v5406, %v5442
        %v5457 = vmul.f32 %v5407, %v5438
        %v5458 = vmul.f32 %v5408, %v5442
        %v5459 = vmul.f32 %v5409, %v5438
        %v5460 = vmul.f32 %v5410, %v5442
        %v5461 = vmul.f32 %v5411, %v5438
        %v5462 = vmul.f32 %v5412, %v5442
        %v5463 = vmul.f32 %v5413, %v5438
        %v5464 = vmul.f32 %v5414, %v5442
        %v5465 = vmul.f32 %v5415, %v5438
        %v5466 = vmul.f32 %v5416, %v5442
        %v5467 = vmul.f32 %v5417, %v5438
        %v5468 = vmul.f32 %v5418, %v5442
        %v5469 = vmul.f32 %v5419, %v5438
        %v5470 = vmul.f32 %v5420, %v5442
        %v5471 = vmul.f32 %v5421, %v5438
        %v5472 = vmul.f32 %v5422, %v5442
        %v5473 = vmul.f32 %v5423, %v5438
        %v5474 = vmul.f32 %v5424, %v5442
        %v5475 = vlaneseq
        %v5476 = vshrl.u32 %v5475, 7
        %v5477 = vsub.s32 3, %v5476
        %v5478 = vrot.slane %v784, %v5477
        %v5479 = vlaneseq
        %v5480 = vshrl.u32 %v5479, 7
        %v5481 = vsub.s32 7, %v5480
        %v5482 = vrot.slane %v784, %v5481
        %v5485 = vlaneseq
        %v5486 = vshrl.u32 %v5485, 7
        %v5487 = vsub.s32 3, %v5486
        %v5488 = vrot.slane %v5478, %v5487
        %v5489 = vlaneseq
        %v5490 = vshrl.u32 %v5489, 7
        %v5491 = vsub.s32 3, %v5490
        %v5492 = vrot.slane %v5482, %v5491
        %v5493 = vadd.f32 %v5443, %v5488
        %v5494 = vadd.f32 %v5444, %v5492
        %v5495 = vadd.f32 %v5445, %v5488
        %v5496 = vadd.f32 %v5446, %v5492
        %v5497 = vadd.f32 %v5447, %v5488
        %v5498 = vadd.f32 %v5448, %v5492
        %v5499 = vadd.f32 %v5449, %v5488
        %v5500 = vadd.f32 %v5450, %v5492
        %v5501 = vadd.f32 %v5451, %v5488
        %v5502 = vadd.f32 %v5452, %v5492
        %v5503 = vadd.f32 %v5453, %v5488
        %v5504 = vadd.f32 %v5454, %v5492
        %v5505 = vadd.f32 %v5455, %v5488
        %v5506 = vadd.f32 %v5456, %v5492
        %v5507 = vadd.f32 %v5457, %v5488
        %v5508 = vadd.f32 %v5458, %v5492
        %v5509 = vadd.f32 %v5459, %v5488
        %v5510 = vadd.f32 %v5460, %v5492
        %v5511 = vadd.f32 %v5461, %v5488
        %v5512 = vadd.f32 %v5462, %v5492
        %v5513 = vadd.f32 %v5463, %v5488
        %v5514 = vadd.f32 %v5464, %v5492
        %v5515 = vadd.f32 %v5465, %v5488
        %v5516 = vadd.f32 %v5466, %v5492
        %v5517 = vadd.f32 %v5467, %v5488
        %v5518 = vadd.f32 %v5468, %v5492
        %v5519 = vadd.f32 %v5469, %v5488
        %v5520 = vadd.f32 %v5470, %v5492
        %v5521 = vadd.f32 %v5471, %v5488
        %v5522 = vadd.f32 %v5472, %v5492
        %v5523 = vadd.f32 %v5473, %v5488
        %v5524 = vadd.f32 %v5474, %v5492
        %5525 = vst [vmem:[#allocation2] sm:$0xff] %v5493
        %5526 = vst [vmem:[#allocation2 + $0x8] sm:$0xff] %v5494
        %5527 = vst [vmem:[#allocation2 + $0x10] sm:$0xff] %v5495
        %5528 = vst [vmem:[#allocation2 + $0x18] sm:$0xff] %v5496
        %5529 = vst [vmem:[#allocation2 + $0x20] sm:$0xff] %v5497
        %5530 = vst [vmem:[#allocation2 + $0x28] sm:$0xff] %v5498
        %5531 = vst [vmem:[#allocation2 + $0x30] sm:$0xff] %v5499
        %5532 = vst [vmem:[#allocation2 + $0x38] sm:$0xff] %v5500
        %5533 = vst [vmem:[#allocation2 + $0x40] sm:$0xff] %v5501
        %5534 = vst [vmem:[#allocation2 + $0x48] sm:$0xff] %v5502
        %5535 = vst [vmem:[#allocation2 + $0x50] sm:$0xff] %v5503
        %5536 = vst [vmem:[#allocation2 + $0x58] sm:$0xff] %v5504
        %5537 = vst [vmem:[#allocation2 + $0x60] sm:$0xff] %v5505
        %5538 = vst [vmem:[#allocation2 + $0x68] sm:$0xff] %v5506
        %5539 = vst [vmem:[#allocation2 + $0x70] sm:$0xff] %v5507
        %5540 = vst [vmem:[#allocation2 + $0x78] sm:$0xff] %v5508
        %5541 = vst [vmem:[#allocation2 + $0x80] sm:$0xff] %v5509
        %5542 = vst [vmem:[#allocation2 + $0x88] sm:$0xff] %v5510
        %5543 = vst [vmem:[#allocation2 + $0x90] sm:$0xff] %v5511
        %5544 = vst [vmem:[#allocation2 + $0x98] sm:$0xff] %v5512
        %5545 = vst [vmem:[#allocation2 + $0xa0] sm:$0xff] %v5513
        %5546 = vst [vmem:[#allocation2 + $0xa8] sm:$0xff] %v5514
        %5547 = vst [vmem:[#allocation2 + $0xb0] sm:$0xff] %v5515
        %5548 = vst [vmem:[#allocation2 + $0xb8] sm:$0xff] %v5516
        %5549 = vst [vmem:[#allocation2 + $0xc0] sm:$0xff] %v5517
        %5550 = vst [vmem:[#allocation2 + $0xc8] sm:$0xff] %v5518
        %5551 = vst [vmem:[#allocation2 + $0xd0] sm:$0xff] %v5519
        %5552 = vst [vmem:[#allocation2 + $0xd8] sm:$0xff] %v5520
        %5553 = vst [vmem:[#allocation2 + $0xe0] sm:$0xff] %v5521
        %5554 = vst [vmem:[#allocation2 + $0xe8] sm:$0xff] %v5522
        %5555 = vst [vmem:[#allocation2 + $0xf0] sm:$0xff] %v5523
        %5556 = vst [vmem:[#allocation2 + $0xf8] sm:$0xff] %v5524
        %p5557 = scmp.eq.s32.totalorder %s32, 1
        // Predicated region
        $region89: #{forward.1} parent=83 // pred_check
          %p5558 = pneg %p5557
        $region90: #{forward.1} parent=83 // pred_check_branch
          %5560 = sbr.rel (%p5558) target = $region92
        $region91: #{forward.1} parent=83 // pred_region
          %v5563 = vrot.slane %v5509, 7
          %v5564 = vrot.slane %v5510, 7
          %vm5567 = vcmask 1040384
          %v5568 = vsel %vm5567, %v5493, %v5563
          %v5569 = vsel %vm5567, %v5494, %v5564
          %v5570 = vld [vmem:[%s11] sm:$0xff]
          %v5571 = vld [vmem:[%s11 + $0x8] sm:$0xff]
          %v5572 = vld [vmem:[%s11 + $0x10] sm:$0xff]
          %v5573 = vld [vmem:[%s11 + $0x18] sm:$0xff]
          %v5574 = vld [vmem:[%s11 + $0x20] sm:$0xff]
          %v5575 = vld [vmem:[%s11 + $0x28] sm:$0xff]
          %v5576 = vld [vmem:[%s11 + $0x30] sm:$0xff]
          %v5577 = vld [vmem:[%s11 + $0x38] sm:$0xff]
          %v5578 = vld [vmem:[%s11 + $0x40] sm:$0xff]
          %v5579 = vld [vmem:[%s11 + $0x48] sm:$0xff]
          %v5580 = vld [vmem:[%s11 + $0x50] sm:$0xff]
          %v5581 = vld [vmem:[%s11 + $0x58] sm:$0xff]
          %v5582 = vld [vmem:[%s11 + $0x60] sm:$0xff]
          %v5583 = vld [vmem:[%s11 + $0x68] sm:$0xff]
          %v5584 = vld [vmem:[%s11 + $0x70] sm:$0xff]
          %v5585 = vld [vmem:[%s11 + $0x78] sm:$0xff]
          %v5586 = vld [vmem:[%s11 + $0x80] sm:$0xff]
          %v5587 = vld [vmem:[%s11 + $0x88] sm:$0xff]
          %v5588 = vld [vmem:[%s11 + $0x90] sm:$0xff]
          %v5589 = vld [vmem:[%s11 + $0x98] sm:$0xff]
          %v5590 = vld [vmem:[%s11 + $0xa0] sm:$0xff]
          %v5591 = vld [vmem:[%s11 + $0xa8] sm:$0xff]
          %v5592 = vld [vmem:[%s11 + $0xb0] sm:$0xff]
          %v5593 = vld [vmem:[%s11 + $0xb8] sm:$0xff]
          %v5594 = vld [vmem:[%s11 + $0xc0] sm:$0xff]
          %v5595 = vld [vmem:[%s11 + $0xc8] sm:$0xff]
          %v5596 = vld [vmem:[%s11 + $0xd0] sm:$0xff]
          %v5597 = vld [vmem:[%s11 + $0xd8] sm:$0xff]
          %v5598 = vld [vmem:[%s11 + $0xe0] sm:$0xff]
          %v5599 = vld [vmem:[%s11 + $0xe8] sm:$0xff]
          %v5600 = vld [vmem:[%s11 + $0xf0] sm:$0xff]
          %v5601 = vld [vmem:[%s11 + $0xf8] sm:$0xff]
          %v5602 = vld [vmem:[%s11 + $0x100] sm:$0xff]
          %v5603 = vld [vmem:[%s11 + $0x108] sm:$0xff]
          %v5604 = vld [vmem:[%s11 + $0x110] sm:$0xff]
          %v5605 = vld [vmem:[%s11 + $0x118] sm:$0xff]
          %v5606 = vld [vmem:[%s11 + $0x120] sm:$0xff]
          %v5607 = vld [vmem:[%s11 + $0x128] sm:$0xff]
          %v5608 = vld [vmem:[%s11 + $0x130] sm:$0xff]
          %v5609 = vld [vmem:[%s11 + $0x138] sm:$0xff]
          %v5610 = vld [vmem:[%s11 + $0x140] sm:$0xff]
          %v5611 = vld [vmem:[%s11 + $0x148] sm:$0xff]
          %v5612 = vld [vmem:[%s11 + $0x150] sm:$0xff]
          %v5613 = vld [vmem:[%s11 + $0x158] sm:$0xff]
          %v5614 = vld [vmem:[%s11 + $0x160] sm:$0xff]
          %v5615 = vld [vmem:[%s11 + $0x168] sm:$0xff]
          %v5616 = vld [vmem:[%s11 + $0x170] sm:$0xff]
          %v5617 = vld [vmem:[%s11 + $0x178] sm:$0xff]
          %v5618 = vld [vmem:[%s11 + $0x180] sm:$0xff]
          %v5619 = vld [vmem:[%s11 + $0x188] sm:$0xff]
          %v5620 = vld [vmem:[%s11 + $0x190] sm:$0xff]
          %v5621 = vld [vmem:[%s11 + $0x198] sm:$0xff]
          %v5622 = vld [vmem:[%s11 + $0x1a0] sm:$0xff]
          %v5623 = vld [vmem:[%s11 + $0x1a8] sm:$0xff]
          %v5624 = vld [vmem:[%s11 + $0x1b0] sm:$0xff]
          %v5625 = vld [vmem:[%s11 + $0x1b8] sm:$0xff]
          %v5626 = vld [vmem:[%s11 + $0x1c0] sm:$0xff]
          %v5627 = vld [vmem:[%s11 + $0x1c8] sm:$0xff]
          %v5628 = vld [vmem:[%s11 + $0x1d0] sm:$0xff]
          %v5629 = vld [vmem:[%s11 + $0x1d8] sm:$0xff]
          %v5630 = vld [vmem:[%s11 + $0x1e0] sm:$0xff]
          %v5631 = vld [vmem:[%s11 + $0x1e8] sm:$0xff]
          %v5632 = vld [vmem:[%s11 + $0x1f0] sm:$0xff]
          %v5633 = vld [vmem:[%s11 + $0x1f8] sm:$0xff]
          %v5634 = vld [vmem:[%s12] sm:$0x3]
          %v5636 = vlaneseq
          %v5637 = vshrl.u32 %v5636, 7
          %v5638 = vsub.s32 0, %v5637
          %v5639 = vrot.slane %v5634, %v5638
          %v5640 = vlaneseq
          %v5641 = vshrl.u32 %v5640, 7
          %v5642 = vsub.s32 1, %v5641
          %v5643 = vrot.slane %v5634, %v5642
          %5646 = vmatprep.subr.mxu0 %v5571
          %5647 = vmatpush1.msra.mxu0 %v5570
          %5648 = vmatprep.subr.mxu0 %v5573
          %5649 = vmatpush1.msra.mxu0 %v5572
          %5650 = vmatprep.subr.mxu0 %v5575
          %5651 = vmatpush1.msra.mxu0 %v5574
          %5652 = vmatprep.subr.mxu0 %v5577
          %5653 = vmatpush1.msra.mxu0 %v5576
          %5654 = vmatprep.subr.mxu0 %v5579
          %5655 = vmatpush1.msra.mxu0 %v5578
          %5656 = vmatprep.subr.mxu0 %v5581
          %5657 = vmatpush1.msra.mxu0 %v5580
          %5658 = vmatprep.subr.mxu0 %v5583
          %5659 = vmatpush1.msra.mxu0 %v5582
          %5660 = vmatprep.subr.mxu0 %v5585
          %5661 = vmatpush1.msra.mxu0 %v5584
          %5662 = vmatprep.subr.mxu0 %v5587
          %5663 = vmatpush1.msra.mxu0 %v5586
          %5664 = vmatprep.subr.mxu0 %v5589
          %5665 = vmatpush1.msra.mxu0 %v5588
          %5666 = vmatprep.subr.mxu0 %v5591
          %5667 = vmatpush1.msra.mxu0 %v5590
          %5668 = vmatprep.subr.mxu0 %v5593
          %5669 = vmatpush1.msra.mxu0 %v5592
          %5670 = vmatprep.subr.mxu0 %v5595
          %5671 = vmatpush1.msra.mxu0 %v5594
          %5672 = vmatprep.subr.mxu0 %v5597
          %5673 = vmatpush1.msra.mxu0 %v5596
          %5674 = vmatprep.subr.mxu0 %v5599
          %5675 = vmatpush1.msra.mxu0 %v5598
          %5676 = vmatprep.subr.mxu0 %v5601
          %5677 = vmatpush1.msra.mxu0 %v5600
          %5678 = vmatprep.subr.mxu0 %v5603
          %5679 = vmatpush1.msra.mxu0 %v5602
          %5680 = vmatprep.subr.mxu0 %v5605
          %5681 = vmatpush1.msra.mxu0 %v5604
          %5682 = vmatprep.subr.mxu0 %v5607
          %5683 = vmatpush1.msra.mxu0 %v5606
          %5684 = vmatprep.subr.mxu0 %v5609
          %5685 = vmatpush1.msra.mxu0 %v5608
          %5686 = vmatprep.subr.mxu0 %v5611
          %5687 = vmatpush1.msra.mxu0 %v5610
          %5688 = vmatprep.subr.mxu0 %v5613
          %5689 = vmatpush1.msra.mxu0 %v5612
          %5690 = vmatprep.subr.mxu0 %v5615
          %5691 = vmatpush1.msra.mxu0 %v5614
          %5692 = vmatprep.subr.mxu0 %v5617
          %5693 = vmatpush1.msra.mxu0 %v5616
          %5694 = vmatprep.subr.mxu0 %v5619
          %5695 = vmatpush1.msra.mxu0 %v5618
          %5696 = vmatprep.subr.mxu0 %v5621
          %5697 = vmatpush1.msra.mxu0 %v5620
          %5698 = vmatprep.subr.mxu0 %v5623
          %5699 = vmatpush1.msra.mxu0 %v5622
          %5700 = vmatprep.subr.mxu0 %v5625
          %5701 = vmatpush1.msra.mxu0 %v5624
          %5702 = vmatprep.subr.mxu0 %v5627
          %5703 = vmatpush1.msra.mxu0 %v5626
          %5704 = vmatprep.subr.mxu0 %v5629
          %5705 = vmatpush1.msra.mxu0 %v5628
          %5706 = vmatprep.subr.mxu0 %v5631
          %5707 = vmatpush1.msra.mxu0 %v5630
          %5708 = vmatprep.subr.mxu0 %v5633
          %5709 = vmatpush1.msra.mxu0 %v5632
          %5710 = vmatprep.mubr.f32.mxu0 %v5569
          %5711 = vmatmul.mubr.f32.gmra.mrb[0].mxu0 %v5568
          %v5712 = vpop.f32.mrb[0].mxu0
          %v5713 = vadd.f32 %v5639, %v5712
          %v5714 = vpop.f32.mrb[0].mxu0
          %v5715 = vadd.f32 %v5643, %v5714
          %5716 = vdwg.mxu0
          %v5717 = vtanh.pop %v5713
          %v5718 = vtanh.pop %v5715
          %v5719 = vld [vmem:[%s13] sm:$0x3]
          %v5721 = vlaneseq
          %v5722 = vshrl.u32 %v5721, 7
          %v5723 = vsub.s32 0, %v5722
          %v5724 = vrot.slane %v5719, %v5723
          %v5725 = vlaneseq
          %v5726 = vshrl.u32 %v5725, 7
          %v5727 = vsub.s32 1, %v5726
          %v5728 = vrot.slane %v5719, %v5727
          %v5731 = vmul.f32 %v5717, %v5724
          %v5732 = vmul.f32 %v5718, %v5728
          %vm5733 = vcmask 1041408
          %v5734 = vsel %vm5733, %v5731, 0.0
          %v5735 = vsel %vm5733, %v5732, 0.0
          %v5736 = vadd.f32 %v5734, %v5735
          %5737 = vadd.xlane.f32.xlu0 %v5736
          %v5738 = vpop.xlane.xlu0 %5737
          %v5739 = vld [vmem:[#allocation3] sm:$0x1]
          %v5741 = vlaneseq
          %v5742 = vshrl.u32 %v5741, 7
          %v5743 = vsub.s32 0, %v5742
          %v5744 = vrot.slane %v5739, %v5743
          %v5746 = vadd.f32 %v5738, %v5744
          %vm5747 = vcmask 1024
          %5748 = vst.msk [vmem:[%s16] sm:$0x3] %vm5747, %v5746
          %v5749 = vld [vmem:[%s15] sm:$0x3]
          %v5750 = vmax.f32 %v5746, 0.0
          %v5751 = vmul.f32 %v5746, %v5749
          %v5752 = vsub.f32 %v5750, %v5751
          %v5753 = vand.u32 2147483647, %v5746
          %v5754 = vsub.f32 0.0, %v5753
          %v5755 = vmul.f32 %v5754, 1.442695
          %v5756 = vpow.pop %v5755
          %v5757 = vadd.f32 %v5756, 1.0
          %v5758 = vlog2.pop %v5757
          %v5759 = vmul.f32 %v5758, 0.6931472
          %v5760 = vadd.f32 %v5752, %v5759
          %v5761 = vsel %vm5747, %v5760, 0.0
          %5762 = vadd.xlane.f32.xlu0 %v5761
          %v5763 = vpop.xlane.xlu0 %5762
          %v5764 = vrot.slane %v5763, 4
          %v5765 = vadd.f32 %v5763, %v5764
          %v5766 = vrot.slane %v5765, 2
          %v5767 = vadd.f32 %v5765, %v5766
          %v5768 = vrot.slane %v5767, 1
          %v5769 = vadd.f32 %v5767, %v5768
          %s5770 = vtos %v5769
          %v5771 = vstv %s5770
          %v5772 = vrcp.pop 2.0
          %v5773 = vmul.f32 %v5771, %v5772
          %vm5774 = vcmask 0
          %5775 = vst.msk [vmem:[#allocation4] sm:$0x1] %vm5774, %v5773
        $region92: #{forward.1} parent=83 // pred_fallthru
          _
        // Predicated region
        $region93: #{forward.1} parent=83 // pred_check
          %p5776 = pneg %p426
        $region94: #{forward.1} parent=83 // pred_check_branch
          %5778 = sbr.rel (%p5776) target = $region96
        $region95: #{forward.1} parent=83 // pred_region
          _
        $region96: #{forward.1} parent=83 // pred_fallthru
          _
        // Predicated region
        $region97: #{forward.1} parent=83 // pred_check
          %p5779 = pneg %p447
        $region98: #{forward.1} parent=83 // pred_check_branch
          %5781 = sbr.rel (%p5779) target = $region100
        $region99: #{forward.1} parent=83 // pred_region
          %s5783 = ssub.s32 16, 16
          %5784 = vsyncadd [#allocation5], %s5783
          %s5786 = sshll.u32 [#allocation4], 4
          %s5787 = int_to_ptr.vmem [resolvable:$true] %s5786
          %5789 = dma.vmem_to_hbm [thread:$0]  %s5787, 16, %s17, [#allocation5]
        $region100: #{forward.1} parent=83 // pred_fallthru
          _
        // Predicated region
        $region101: #{forward.1} parent=83 // pred_check
          %p5790 = pneg %p426
        $region102: #{forward.1} parent=83 // pred_check_branch
          %5792 = sbr.rel (%p5790) target = $region104
        $region103: #{forward.1} parent=83 // pred_region
          _
        $region104: #{forward.1} parent=83 // pred_fallthru
          _
        // Predicated region
        $region105: #{forward.1} parent=83 // pred_check
          %p5793 = pneg %p447
        $region106: #{forward.1} parent=83 // pred_check_branch
          %5795 = sbr.rel (%p5793) target = $region108
        $region107: #{forward.1} parent=83 // pred_region
          %5796 = dma.done [#allocation5], 16
        $region108: #{forward.1} parent=83 // pred_fallthru
          _
      $region84: #{forward.1} parent=5 // pred_fallthru
        _
      %p5797 = scmp.le.s32.totalorder 2, %s27
      // Predicated region
      $region109: #{forward.1} parent=5 // pred_check
        %p5798 = pneg %p5797
      $region110: #{forward.1} parent=5 // pred_check_branch
        %5800 = sbr.rel (%p5798) target = $region112
      $region111: #{forward.1} parent=5 // pred_region
        %s5801 = ssub.s32 %s27, 2
      $region112: #{forward.1} parent=5 // pred_fallthru
        _
    $region6: #{forward.1} parent=1 // loop_footer
      %s31 = sadd.s32 1, %s27
    $region7: #{forward.1} parent=1 // loop_footer_branch
      %26 = sbr.rel target = $region3
    $region8: #{forward.1} parent=1 // loop_exit
      _
    %5802 = vsyncpa [#allocation5], 1
    %s5803 = scalar_lea.sflag [#allocation5], 1
    %5804 = vsyncpa %s5803, 1

</llo_original>
